<compile_context>
chip_gen: v7x
topology: tpu7x:2x2x1
jax: 0.10.0
libtpu: 0.0.40
codegen_flags: <defaults>
</compile_context>

<pallas_src>
import math
import functools

import numpy as np
import jax
import jax.numpy as jnp
from jax.experimental import pallas as pl
from jax.experimental.pallas import tpu as pltpu


# --------------------------------------------------------------------------------------
# Fused per-batch encoder kernel:
#   QKV proj -> MHA (all heads) -> out proj -> +res -> LN1 -> MLP(GELU) -> +res -> LN2
# --------------------------------------------------------------------------------------
def encoder_kernel(x_ref, wqkv_ref, bqkv_ref,
                   wo_ref, bo_ref,
                   g1_ref, be1_ref,
                   w1_ref, b1_ref, w2_ref, b2_ref,
                   g2_ref, be2_ref,
                   o_ref,
                   qkv_s, ctx_s,
                   *, num_heads, scale):
    f32 = jnp.float32
    S, D = x_ref.shape
    dh = D // num_heads
    cdt = wqkv_ref.dtype                      # MXU compute dtype (f32 or bf16)

    x = x_ref[...]                            # (S, D), f32 — kept exact for the residual
    xc = x.astype(cdt)                        # cast once for all MXU uses

    # ---- fused QKV projection: one K=D matmul, lane-dense (S, 3D) result ----
    qkv = jnp.dot(xc, wqkv_ref[...], preferred_element_type=f32)
    qkv = qkv + bqkv_ref[...].astype(f32)                    # bias in f32
    qkv_s[...] = qkv.astype(cdt)                             # stage in VMEM scratch

    # ---- split heads in VMEM with static lane-window reads (no HBM head-major tensor) ----
    def head_stack(base):
        return jnp.stack(
            [qkv_s[:, base + h * dh: base + (h + 1) * dh] for h in range(num_heads)],
            axis=0)                                           # (nH, S, dh)

    q3 = head_stack(0)
    k3 = head_stack(D)
    v3 = head_stack(2 * D)

    # ---- batched multi-head attention (head axis = dot_general batch dim) ----
    s = jnp.einsum("hqd,hkd->hqk", q3, k3, preferred_element_type=f32) * scale   # (nH, S, S)
    s = s - jnp.max(s, axis=-1, keepdims=True)
    e = jnp.exp(s)
    p = e / jnp.sum(e, axis=-1, keepdims=True)                # exact softmax (f32)
    # attn_drop(p=0.1) is identity in eval mode
    ctx3 = jnp.einsum("hqk,hkd->hqd", p.astype(cdt), v3,
                      preferred_element_type=f32)             # (nH, S, dh)

    # ---- pack heads back to a lane-dense (S, D) tile (PyTorch transpose(1,2).view order) ----
    for h in range(num_heads):
        ctx_s[:, h * dh:(h + 1) * dh] = ctx3[h].astype(ctx_s.dtype)

    # ---- output projection: single K=D matmul with wo in natural (D, D) layout ----
    attn = jnp.dot(ctx_s[...], wo_ref[...], preferred_element_type=f32)
    attn = attn + bo_ref[...].astype(f32)                     # (S, D)

    # dropout(p=0.1) is identity in eval mode
    h1 = x.astype(f32) + attn

    def layernorm(val, g_r, b_r, eps=1e-12):
        mu = jnp.mean(val, axis=-1, keepdims=True)
        c = val - mu
        var = jnp.mean(c * c, axis=-1, keepdims=True)
        return c * jax.lax.rsqrt(var + eps) * g_r[...].astype(f32) + b_r[...].astype(f32)

    h1n = layernorm(h1, g1_ref, be1_ref)                      # LayerNorm1

    # ---- MLP: Linear -> GELU(exact erf) -> Linear -> Dropout(identity) ----
    m = jnp.dot(h1n.astype(cdt), w1_ref[...], preferred_element_type=f32)
    m = m + b1_ref[...].astype(f32)
    m = 0.5 * m * (1.0 + jax.lax.erf(m * (1.0 / math.sqrt(2.0))))
    m = jnp.dot(m.astype(cdt), w2_ref[...], preferred_element_type=f32)
    m = m + b2_ref[...].astype(f32)

    h2 = h1n + m
    o_ref[...] = layernorm(h2, g2_ref, be2_ref).astype(o_ref.dtype)   # LayerNorm2


# --------------------------------------------------------------------------------------
# Wrapper: one pallas_call, grid over batch (parallel for megacore / v7x 2-TC).
# --------------------------------------------------------------------------------------
def encoder_forward(x, params, *, num_heads, compute_dtype=jnp.float32):
    """x: (B, S, D) float32. params: (in, out)-layout weights / (1, out) biases."""
    B, S, D = x.shape
    dh = D // num_heads
    assert dh * num_heads == D, "dim must be divisible by num_heads"
    hidden = params["w1"].shape[1]
    cdt = compute_dtype

    x2d = x.reshape(B * S, D)
    # Fuse Q|K|V weights once on the host side (weight-only transform, no activation traffic).
    wqkv = jnp.concatenate([params["wq"], params["wk"], params["wv"]], axis=1).astype(cdt)
    bqkv = jnp.concatenate([params["bq"], params["bk"], params["bv"]], axis=1).astype(jnp.float32)

    def const2d(shape):
        return pl.BlockSpec(shape, lambda b: (0, 0))

    out2d = pl.pallas_call(
        functools.partial(encoder_kernel, num_heads=num_heads, scale=1.0 / math.sqrt(dh)),
        out_shape=jax.ShapeDtypeStruct((B * S, D), x.dtype),
        grid_spec=pltpu.PrefetchScalarGridSpec(
            num_scalar_prefetch=0,
            grid=(B,),
            in_specs=[
                pl.BlockSpec((S, D), lambda b: (b, 0)),     # x rows of batch b (lane-dense)
                const2d((D, 3 * D)),                        # fused Wqkv
                const2d((1, 3 * D)),                        # fused bqkv
                const2d((D, D)),                            # wo (natural layout)
                const2d((1, D)),                            # bo
                const2d((1, D)), const2d((1, D)),           # ln1 gamma, beta
                const2d((D, hidden)),                       # mlp w1
                const2d((1, hidden)),                       # mlp b1
                const2d((hidden, D)),                       # mlp w2
                const2d((1, D)),                            # mlp b2
                const2d((1, D)), const2d((1, D)),           # ln2 gamma, beta
            ],
            out_specs=pl.BlockSpec((S, D), lambda b: (b, 0)),
            scratch_shapes=[
                pltpu.VMEM((S, 3 * D), cdt),                # staged lane-dense QKV slab
                pltpu.VMEM((S, D), cdt),                    # packed attention context
            ],
        ),
        compiler_params=pltpu.CompilerParams(dimension_semantics=("parallel",)),
    )(x2d, wqkv, bqkv,
      params["wo"].astype(cdt), params["bo"],
      params["g1"], params["be1"],
      params["w1"].astype(cdt), params["b1"],
      params["w2"].astype(cdt), params["b2"],
      params["g2"], params["be2"])

    return out2d.reshape(B, S, D)


# --------------------------------------------------------------------------------------
# Pure-JAX reference mirroring the PyTorch Encoder (eval mode).
# --------------------------------------------------------------------------------------
def reference_forward(x, p, *, num_heads):
    B, S, D = x.shape
    dh = D // num_heads

    def lin(a, w, b):
        return a @ w + b

    q = lin(x, p["wq"], p["bq"]).reshape(B, S, num_heads, dh).transpose(0, 2, 1, 3)
    k = lin(x, p["wk"], p["bk"]).reshape(B, S, num_heads, dh).transpose(0, 2, 1, 3)
    v = lin(x, p["wv"], p["bv"]).reshape(B, S, num_heads, dh).transpose(0, 2, 1, 3)
    s = jnp.einsum("bhqd,bhkd->bhqk", q, k) / math.sqrt(dh)
    w = jax.nn.softmax(s, axis=-1)
    o = jnp.einsum("bhqk,bhkd->bhqd", w, v).transpose(0, 2, 1, 3).reshape(B, S, D)
    o = lin(o, p["wo"], p["bo"])

    def ln(a, g, b, eps=1e-12):
        mu = jnp.mean(a, axis=-1, keepdims=True)
        var = jnp.mean((a - mu) ** 2, axis=-1, keepdims=True)
        return (a - mu) * jax.lax.rsqrt(var + eps) * g + b

    h1 = ln(x + o, p["g1"], p["be1"])
    m = lin(h1, p["w1"], p["b1"])
    m = jax.nn.gelu(m, approximate=False)
    m = lin(m, p["w2"], p["b2"])
    return ln(h1 + m, p["g2"], p["be2"])


if __name__ == "__main__":
    # Small shapes consistent with the module: num_heads=16 (fixed by MultiHeadAttention),
    # dim divisible by 16, hidden = 2*dim (as in Encoder(dim, hidden_dim=2*dim)).
    B, S, D, HID = 2, 16, 256, 512
    NUM_HEADS = 16

    key = jax.random.PRNGKey(0)
    keys = jax.random.split(key, 16)

    def w_init(k, shape, scale=0.02):
        return (scale * jax.random.normal(k, shape)).astype(jnp.float32)

    params = {
        # attention projections, stored as (in, out)
        "wq": w_init(keys[0], (D, D)), "bq": w_init(keys[1], (1, D)),
        "wk": w_init(keys[2], (D, D)), "bk": w_init(keys[3], (1, D)),
        "wv": w_init(keys[4], (D, D)), "bv": w_init(keys[5], (1, D)),
        "wo": w_init(keys[6], (D, D)), "bo": w_init(keys[7], (1, D)),
        # LayerNorm1 / LayerNorm2
        "g1": jnp.ones((1, D), jnp.float32), "be1": jnp.zeros((1, D), jnp.float32),
        "g2": jnp.ones((1, D), jnp.float32), "be2": jnp.zeros((1, D), jnp.float32),
        # MLP
        "w1": w_init(keys[8], (D, HID)), "b1": w_init(keys[9], (1, HID)),
        "w2": w_init(keys[10], (HID, D)), "b2": w_init(keys[11], (1, D)),
    }

    x = jax.random.normal(keys[12], (B, S, D), dtype=jnp.float32)

    ref = jax.block_until_ready(reference_forward(x, params, num_heads=NUM_HEADS))

    # f32 MXU path (tight check — exact softmax divide, f32 accumulation everywhere).
    out_f32 = jax.block_until_ready(
        encoder_forward(x, params, num_heads=NUM_HEADS, compute_dtype=jnp.float32))
    assert out_f32.shape == (B, S, D)
    assert np.allclose(np.asarray(out_f32), np.asarray(ref), atol=5e-3, rtol=5e-3), (
        "f32 Pallas output mismatch vs JAX reference")

    # bf16 MXU-operand path (v6e/v7x friendly): bf16 matmul inputs, f32 accumulation,
    # f32 softmax / GELU / LayerNorm.  Looser tolerance vs the f32 reference.
    out_bf16 = jax.block_until_ready(
        encoder_forward(x, params, num_heads=NUM_HEADS, compute_dtype=jnp.bfloat16))
    assert out_bf16.shape == (B, S, D)
    assert np.allclose(np.asarray(out_bf16), np.asarray(ref), atol=2.5e-2, rtol=2.5e-2), (
        "bf16 Pallas output mismatch vs JAX reference")

    print("KERNEL_OK")
</pallas_src>

<mosaic_0001>
module attributes {stable_mosaic.version = 11 : i64} {
  func.func @encoder_kernel(%arg0: i32, %arg1: memref<16x256xf32, #tpu.memory_space<vmem>>, %arg2: memref<256x768xf32, #tpu.memory_space<vmem>>, %arg3: memref<1x768xf32, #tpu.memory_space<vmem>>, %arg4: memref<256x256xf32, #tpu.memory_space<vmem>>, %arg5: memref<1x256xf32, #tpu.memory_space<vmem>>, %arg6: memref<1x256xf32, #tpu.memory_space<vmem>>, %arg7: memref<1x256xf32, #tpu.memory_space<vmem>>, %arg8: memref<256x512xf32, #tpu.memory_space<vmem>>, %arg9: memref<1x512xf32, #tpu.memory_space<vmem>>, %arg10: memref<512x256xf32, #tpu.memory_space<vmem>>, %arg11: memref<1x256xf32, #tpu.memory_space<vmem>>, %arg12: memref<1x256xf32, #tpu.memory_space<vmem>>, %arg13: memref<1x256xf32, #tpu.memory_space<vmem>>, %arg14: memref<16x256xf32, #tpu.memory_space<vmem>>, %arg15: memref<16x768xf32, #tpu.memory_space<vmem>>, %arg16: memref<16x256xf32, #tpu.memory_space<vmem>>) attributes {dimension_semantics = [#tpu.dimension_semantics<parallel>], iteration_bounds = array<i64: 2>, scalar_prefetch = 0 : i64, scratch_operands = 2 : i64, tpu.core_type = #tpu.core_type<tc>, window_params = [{transform_indices = @transform_0, window_bounds = array<i64: 16, 256>}, {pipeline_mode = #tpu.pipeline_mode<synchronous>, transform_indices = @transform_1, window_bounds = array<i64: 256, 768>}, {pipeline_mode = #tpu.pipeline_mode<synchronous>, transform_indices = @transform_2, window_bounds = array<i64: 1, 768>}, {pipeline_mode = #tpu.pipeline_mode<synchronous>, transform_indices = @transform_3, window_bounds = array<i64: 256, 256>}, {pipeline_mode = #tpu.pipeline_mode<synchronous>, transform_indices = @transform_4, window_bounds = array<i64: 1, 256>}, {pipeline_mode = #tpu.pipeline_mode<synchronous>, transform_indices = @transform_5, window_bounds = array<i64: 1, 256>}, {pipeline_mode = #tpu.pipeline_mode<synchronous>, transform_indices = @transform_6, window_bounds = array<i64: 1, 256>}, {pipeline_mode = #tpu.pipeline_mode<synchronous>, transform_indices = @transform_7, window_bounds = array<i64: 256, 512>}, {pipeline_mode = #tpu.pipeline_mode<synchronous>, transform_indices = @transform_8, window_bounds = array<i64: 1, 512>}, {pipeline_mode = #tpu.pipeline_mode<synchronous>, transform_indices = @transform_9, window_bounds = array<i64: 512, 256>}, {pipeline_mode = #tpu.pipeline_mode<synchronous>, transform_indices = @transform_10, window_bounds = array<i64: 1, 256>}, {pipeline_mode = #tpu.pipeline_mode<synchronous>, transform_indices = @transform_11, window_bounds = array<i64: 1, 256>}, {pipeline_mode = #tpu.pipeline_mode<synchronous>, transform_indices = @transform_12, window_bounds = array<i64: 1, 256>}, {transform_indices = @transform_13, window_bounds = array<i64: 16, 256>}]} {
    %c0 = arith.constant 0 : index
    %c0_0 = arith.constant 0 : index
    %0 = vector.load %arg1[%c0, %c0_0] : memref<16x256xf32, #tpu.memory_space<vmem>>, vector<16x256xf32>
    %c0_1 = arith.constant 0 : index
    %c0_2 = arith.constant 0 : index
    %1 = vector.load %arg2[%c0_1, %c0_2] : memref<256x768xf32, #tpu.memory_space<vmem>>, vector<256x768xf32>
    %cst = arith.constant dense<0.000000e+00> : vector<16x768xf32>
    %2 = tpu.matmul %0, %1, %cst {dimension_numbers = #tpu.dot_dimension_numbers<[1], [0], [0], [1], [0, 0, 1, 1], [], []>} : vector<16x256xf32>, vector<256x768xf32>, vector<16x768xf32> -> vector<16x768xf32>
    %c0_3 = arith.constant 0 : index
    %c0_4 = arith.constant 0 : index
    %3 = vector.load %arg3[%c0_3, %c0_4] : memref<1x768xf32, #tpu.memory_space<vmem>>, vector<1x768xf32>
    %4 = vector.broadcast %3 : vector<1x768xf32> to vector<16x768xf32>
    %5 = arith.addf %2, %4 : vector<16x768xf32>
    %c0_5 = arith.constant 0 : index
    %c0_6 = arith.constant 0 : index
    %6 = vector.load %arg15[%c0_5, %c0_6] : memref<16x768xf32, #tpu.memory_space<vmem>>, vector<16x768xf32>
    tpu.vector_store %arg15[%c0_5, %c0_6], %5 {strides = array<i32>} : memref<16x768xf32, #tpu.memory_space<vmem>>, vector<16x768xf32>,
    %c0_7 = arith.constant 0 : index
    %c0_8 = arith.constant 0 : index
    %7 = vector.load %arg15[%c0_7, %c0_8] : memref<16x768xf32, #tpu.memory_space<vmem>>, vector<16x16xf32>
    %c0_9 = arith.constant 0 : index
    %c16 = arith.constant 16 : index
    %8 = vector.load %arg15[%c0_9, %c16] : memref<16x768xf32, #tpu.memory_space<vmem>>, vector<16x16xf32>
    %c0_10 = arith.constant 0 : index
    %c32 = arith.constant 32 : index
    %9 = vector.load %arg15[%c0_10, %c32] : memref<16x768xf32, #tpu.memory_space<vmem>>, vector<16x16xf32>
    %c0_11 = arith.constant 0 : index
    %c48 = arith.constant 48 : index
    %10 = vector.load %arg15[%c0_11, %c48] : memref<16x768xf32, #tpu.memory_space<vmem>>, vector<16x16xf32>
    %c0_12 = arith.constant 0 : index
    %c64 = arith.constant 64 : index
    %11 = vector.load %arg15[%c0_12, %c64] : memref<16x768xf32, #tpu.memory_space<vmem>>, vector<16x16xf32>
    %c0_13 = arith.constant 0 : index
    %c80 = arith.constant 80 : index
    %12 = vector.load %arg15[%c0_13, %c80] : memref<16x768xf32, #tpu.memory_space<vmem>>, vector<16x16xf32>
    %c0_14 = arith.constant 0 : index
    %c96 = arith.constant 96 : index
    %13 = vector.load %arg15[%c0_14, %c96] : memref<16x768xf32, #tpu.memory_space<vmem>>, vector<16x16xf32>
    %c0_15 = arith.constant 0 : index
    %c112 = arith.constant 112 : index
    %14 = vector.load %arg15[%c0_15, %c112] : memref<16x768xf32, #tpu.memory_space<vmem>>, vector<16x16xf32>
    %c0_16 = arith.constant 0 : index
    %c128 = arith.constant 128 : index
    %15 = vector.load %arg15[%c0_16, %c128] : memref<16x768xf32, #tpu.memory_space<vmem>>, vector<16x16xf32>
    %c0_17 = arith.constant 0 : index
    %c144 = arith.constant 144 : index
    %16 = vector.load %arg15[%c0_17, %c144] : memref<16x768xf32, #tpu.memory_space<vmem>>, vector<16x16xf32>
    %c0_18 = arith.constant 0 : index
    %c160 = arith.constant 160 : index
    %17 = vector.load %arg15[%c0_18, %c160] : memref<16x768xf32, #tpu.memory_space<vmem>>, vector<16x16xf32>
    %c0_19 = arith.constant 0 : index
    %c176 = arith.constant 176 : index
    %18 = vector.load %arg15[%c0_19, %c176] : memref<16x768xf32, #tpu.memory_space<vmem>>, vector<16x16xf32>
    %c0_20 = arith.constant 0 : index
    %c192 = arith.constant 192 : index
    %19 = vector.load %arg15[%c0_20, %c192] : memref<16x768xf32, #tpu.memory_space<vmem>>, vector<16x16xf32>
    %c0_21 = arith.constant 0 : index
    %c208 = arith.constant 208 : index
    %20 = vector.load %arg15[%c0_21, %c208] : memref<16x768xf32, #tpu.memory_space<vmem>>, vector<16x16xf32>
    %c0_22 = arith.constant 0 : index
    %c224 = arith.constant 224 : index
    %21 = vector.load %arg15[%c0_22, %c224] : memref<16x768xf32, #tpu.memory_space<vmem>>, vector<16x16xf32>
    %c0_23 = arith.constant 0 : index
    %c240 = arith.constant 240 : index
    %22 = vector.load %arg15[%c0_23, %c240] : memref<16x768xf32, #tpu.memory_space<vmem>>, vector<16x16xf32>
    %23 = vector.shape_cast %7 : vector<16x16xf32> to vector<1x16x16xf32>
    %24 = vector.shape_cast %8 : vector<16x16xf32> to vector<1x16x16xf32>
    %25 = vector.shape_cast %9 : vector<16x16xf32> to vector<1x16x16xf32>
    %26 = vector.shape_cast %10 : vector<16x16xf32> to vector<1x16x16xf32>
    %27 = vector.shape_cast %11 : vector<16x16xf32> to vector<1x16x16xf32>
    %28 = vector.shape_cast %12 : vector<16x16xf32> to vector<1x16x16xf32>
    %29 = vector.shape_cast %13 : vector<16x16xf32> to vector<1x16x16xf32>
    %30 = vector.shape_cast %14 : vector<16x16xf32> to vector<1x16x16xf32>
    %31 = vector.shape_cast %15 : vector<16x16xf32> to vector<1x16x16xf32>
    %32 = vector.shape_cast %16 : vector<16x16xf32> to vector<1x16x16xf32>
    %33 = vector.shape_cast %17 : vector<16x16xf32> to vector<1x16x16xf32>
    %34 = vector.shape_cast %18 : vector<16x16xf32> to vector<1x16x16xf32>
    %35 = vector.shape_cast %19 : vector<16x16xf32> to vector<1x16x16xf32>
    %36 = vector.shape_cast %20 : vector<16x16xf32> to vector<1x16x16xf32>
    %37 = vector.shape_cast %21 : vector<16x16xf32> to vector<1x16x16xf32>
    %38 = vector.shape_cast %22 : vector<16x16xf32> to vector<1x16x16xf32>
    %39 = tpu.concatenate %23, %24, %25, %26, %27, %28, %29, %30, %31, %32, %33, %34, %35, %36, %37, %38 in 0 : vector<1x16x16xf32>, vector<1x16x16xf32>, vector<1x16x16xf32>, vector<1x16x16xf32>, vector<1x16x16xf32>, vector<1x16x16xf32>, vector<1x16x16xf32>, vector<1x16x16xf32>, vector<1x16x16xf32>, vector<1x16x16xf32>, vector<1x16x16xf32>, vector<1x16x16xf32>, vector<1x16x16xf32>, vector<1x16x16xf32>, vector<1x16x16xf32>, vector<1x16x16xf32> -> vector<16x16x16xf32>
    %c0_24 = arith.constant 0 : index
    %c256 = arith.constant 256 : index
    %40 = vector.load %arg15[%c0_24, %c256] : memref<16x768xf32, #tpu.memory_space<vmem>>, vector<16x16xf32>
    %c0_25 = arith.constant 0 : index
    %c272 = arith.constant 272 : index
    %41 = vector.load %arg15[%c0_25, %c272] : memref<16x768xf32, #tpu.memory_space<vmem>>, vector<16x16xf32>
    %c0_26 = arith.constant 0 : index
    %c288 = arith.constant 288 : index
    %42 = vector.load %arg15[%c0_26, %c288] : memref<16x768xf32, #tpu.memory_space<vmem>>, vector<16x16xf32>
    %c0_27 = arith.constant 0 : index
    %c304 = arith.constant 304 : index
    %43 = vector.load %arg15[%c0_27, %c304] : memref<16x768xf32, #tpu.memory_space<vmem>>, vector<16x16xf32>
    %c0_28 = arith.constant 0 : index
    %c320 = arith.constant 320 : index
    %44 = vector.load %arg15[%c0_28, %c320] : memref<16x768xf32, #tpu.memory_space<vmem>>, vector<16x16xf32>
    %c0_29 = arith.constant 0 : index
    %c336 = arith.constant 336 : index
    %45 = vector.load %arg15[%c0_29, %c336] : memref<16x768xf32, #tpu.memory_space<vmem>>, vector<16x16xf32>
    %c0_30 = arith.constant 0 : index
    %c352 = arith.constant 352 : index
    %46 = vector.load %arg15[%c0_30, %c352] : memref<16x768xf32, #tpu.memory_space<vmem>>, vector<16x16xf32>
    %c0_31 = arith.constant 0 : index
    %c368 = arith.constant 368 : index
    %47 = vector.load %arg15[%c0_31, %c368] : memref<16x768xf32, #tpu.memory_space<vmem>>, vector<16x16xf32>
    %c0_32 = arith.constant 0 : index
    %c384 = arith.constant 384 : index
    %48 = vector.load %arg15[%c0_32, %c384] : memref<16x768xf32, #tpu.memory_space<vmem>>, vector<16x16xf32>
    %c0_33 = arith.constant 0 : index
    %c400 = arith.constant 400 : index
    %49 = vector.load %arg15[%c0_33, %c400] : memref<16x768xf32, #tpu.memory_space<vmem>>, vector<16x16xf32>
    %c0_34 = arith.constant 0 : index
    %c416 = arith.constant 416 : index
    %50 = vector.load %arg15[%c0_34, %c416] : memref<16x768xf32, #tpu.memory_space<vmem>>, vector<16x16xf32>
    %c0_35 = arith.constant 0 : index
    %c432 = arith.constant 432 : index
    %51 = vector.load %arg15[%c0_35, %c432] : memref<16x768xf32, #tpu.memory_space<vmem>>, vector<16x16xf32>
    %c0_36 = arith.constant 0 : index
    %c448 = arith.constant 448 : index
    %52 = vector.load %arg15[%c0_36, %c448] : memref<16x768xf32, #tpu.memory_space<vmem>>, vector<16x16xf32>
    %c0_37 = arith.constant 0 : index
    %c464 = arith.constant 464 : index
    %53 = vector.load %arg15[%c0_37, %c464] : memref<16x768xf32, #tpu.memory_space<vmem>>, vector<16x16xf32>
    %c0_38 = arith.constant 0 : index
    %c480 = arith.constant 480 : index
    %54 = vector.load %arg15[%c0_38, %c480] : memref<16x768xf32, #tpu.memory_space<vmem>>, vector<16x16xf32>
    %c0_39 = arith.constant 0 : index
    %c496 = arith.constant 496 : index
    %55 = vector.load %arg15[%c0_39, %c496] : memref<16x768xf32, #tpu.memory_space<vmem>>, vector<16x16xf32>
    %56 = vector.shape_cast %40 : vector<16x16xf32> to vector<1x16x16xf32>
    %57 = vector.shape_cast %41 : vector<16x16xf32> to vector<1x16x16xf32>
    %58 = vector.shape_cast %42 : vector<16x16xf32> to vector<1x16x16xf32>
    %59 = vector.shape_cast %43 : vector<16x16xf32> to vector<1x16x16xf32>
    %60 = vector.shape_cast %44 : vector<16x16xf32> to vector<1x16x16xf32>
    %61 = vector.shape_cast %45 : vector<16x16xf32> to vector<1x16x16xf32>
    %62 = vector.shape_cast %46 : vector<16x16xf32> to vector<1x16x16xf32>
    %63 = vector.shape_cast %47 : vector<16x16xf32> to vector<1x16x16xf32>
    %64 = vector.shape_cast %48 : vector<16x16xf32> to vector<1x16x16xf32>
    %65 = vector.shape_cast %49 : vector<16x16xf32> to vector<1x16x16xf32>
    %66 = vector.shape_cast %50 : vector<16x16xf32> to vector<1x16x16xf32>
    %67 = vector.shape_cast %51 : vector<16x16xf32> to vector<1x16x16xf32>
    %68 = vector.shape_cast %52 : vector<16x16xf32> to vector<1x16x16xf32>
    %69 = vector.shape_cast %53 : vector<16x16xf32> to vector<1x16x16xf32>
    %70 = vector.shape_cast %54 : vector<16x16xf32> to vector<1x16x16xf32>
    %71 = vector.shape_cast %55 : vector<16x16xf32> to vector<1x16x16xf32>
    %72 = tpu.concatenate %56, %57, %58, %59, %60, %61, %62, %63, %64, %65, %66, %67, %68, %69, %70, %71 in 0 : vector<1x16x16xf32>, vector<1x16x16xf32>, vector<1x16x16xf32>, vector<1x16x16xf32>, vector<1x16x16xf32>, vector<1x16x16xf32>, vector<1x16x16xf32>, vector<1x16x16xf32>, vector<1x16x16xf32>, vector<1x16x16xf32>, vector<1x16x16xf32>, vector<1x16x16xf32>, vector<1x16x16xf32>, vector<1x16x16xf32>, vector<1x16x16xf32>, vector<1x16x16xf32> -> vector<16x16x16xf32>
    %c0_40 = arith.constant 0 : index
    %c512 = arith.constant 512 : index
    %73 = vector.load %arg15[%c0_40, %c512] : memref<16x768xf32, #tpu.memory_space<vmem>>, vector<16x16xf32>
    %c0_41 = arith.constant 0 : index
    %c528 = arith.constant 528 : index
    %74 = vector.load %arg15[%c0_41, %c528] : memref<16x768xf32, #tpu.memory_space<vmem>>, vector<16x16xf32>
    %c0_42 = arith.constant 0 : index
    %c544 = arith.constant 544 : index
    %75 = vector.load %arg15[%c0_42, %c544] : memref<16x768xf32, #tpu.memory_space<vmem>>, vector<16x16xf32>
    %c0_43 = arith.constant 0 : index
    %c560 = arith.constant 560 : index
    %76 = vector.load %arg15[%c0_43, %c560] : memref<16x768xf32, #tpu.memory_space<vmem>>, vector<16x16xf32>
    %c0_44 = arith.constant 0 : index
    %c576 = arith.constant 576 : index
    %77 = vector.load %arg15[%c0_44, %c576] : memref<16x768xf32, #tpu.memory_space<vmem>>, vector<16x16xf32>
    %c0_45 = arith.constant 0 : index
    %c592 = arith.constant 592 : index
    %78 = vector.load %arg15[%c0_45, %c592] : memref<16x768xf32, #tpu.memory_space<vmem>>, vector<16x16xf32>
    %c0_46 = arith.constant 0 : index
    %c608 = arith.constant 608 : index
    %79 = vector.load %arg15[%c0_46, %c608] : memref<16x768xf32, #tpu.memory_space<vmem>>, vector<16x16xf32>
    %c0_47 = arith.constant 0 : index
    %c624 = arith.constant 624 : index
    %80 = vector.load %arg15[%c0_47, %c624] : memref<16x768xf32, #tpu.memory_space<vmem>>, vector<16x16xf32>
    %c0_48 = arith.constant 0 : index
    %c640 = arith.constant 640 : index
    %81 = vector.load %arg15[%c0_48, %c640] : memref<16x768xf32, #tpu.memory_space<vmem>>, vector<16x16xf32>
    %c0_49 = arith.constant 0 : index
    %c656 = arith.constant 656 : index
    %82 = vector.load %arg15[%c0_49, %c656] : memref<16x768xf32, #tpu.memory_space<vmem>>, vector<16x16xf32>
    %c0_50 = arith.constant 0 : index
    %c672 = arith.constant 672 : index
    %83 = vector.load %arg15[%c0_50, %c672] : memref<16x768xf32, #tpu.memory_space<vmem>>, vector<16x16xf32>
    %c0_51 = arith.constant 0 : index
    %c688 = arith.constant 688 : index
    %84 = vector.load %arg15[%c0_51, %c688] : memref<16x768xf32, #tpu.memory_space<vmem>>, vector<16x16xf32>
    %c0_52 = arith.constant 0 : index
    %c704 = arith.constant 704 : index
    %85 = vector.load %arg15[%c0_52, %c704] : memref<16x768xf32, #tpu.memory_space<vmem>>, vector<16x16xf32>
    %c0_53 = arith.constant 0 : index
    %c720 = arith.constant 720 : index
    %86 = vector.load %arg15[%c0_53, %c720] : memref<16x768xf32, #tpu.memory_space<vmem>>, vector<16x16xf32>
    %c0_54 = arith.constant 0 : index
    %c736 = arith.constant 736 : index
    %87 = vector.load %arg15[%c0_54, %c736] : memref<16x768xf32, #tpu.memory_space<vmem>>, vector<16x16xf32>
    %c0_55 = arith.constant 0 : index
    %c752 = arith.constant 752 : index
    %88 = vector.load %arg15[%c0_55, %c752] : memref<16x768xf32, #tpu.memory_space<vmem>>, vector<16x16xf32>
    %89 = vector.shape_cast %73 : vector<16x16xf32> to vector<1x16x16xf32>
    %90 = vector.shape_cast %74 : vector<16x16xf32> to vector<1x16x16xf32>
    %91 = vector.shape_cast %75 : vector<16x16xf32> to vector<1x16x16xf32>
    %92 = vector.shape_cast %76 : vector<16x16xf32> to vector<1x16x16xf32>
    %93 = vector.shape_cast %77 : vector<16x16xf32> to vector<1x16x16xf32>
    %94 = vector.shape_cast %78 : vector<16x16xf32> to vector<1x16x16xf32>
    %95 = vector.shape_cast %79 : vector<16x16xf32> to vector<1x16x16xf32>
    %96 = vector.shape_cast %80 : vector<16x16xf32> to vector<1x16x16xf32>
    %97 = vector.shape_cast %81 : vector<16x16xf32> to vector<1x16x16xf32>
    %98 = vector.shape_cast %82 : vector<16x16xf32> to vector<1x16x16xf32>
    %99 = vector.shape_cast %83 : vector<16x16xf32> to vector<1x16x16xf32>
    %100 = vector.shape_cast %84 : vector<16x16xf32> to vector<1x16x16xf32>
    %101 = vector.shape_cast %85 : vector<16x16xf32> to vector<1x16x16xf32>
    %102 = vector.shape_cast %86 : vector<16x16xf32> to vector<1x16x16xf32>
    %103 = vector.shape_cast %87 : vector<16x16xf32> to vector<1x16x16xf32>
    %104 = vector.shape_cast %88 : vector<16x16xf32> to vector<1x16x16xf32>
    %105 = tpu.concatenate %89, %90, %91, %92, %93, %94, %95, %96, %97, %98, %99, %100, %101, %102, %103, %104 in 0 : vector<1x16x16xf32>, vector<1x16x16xf32>, vector<1x16x16xf32>, vector<1x16x16xf32>, vector<1x16x16xf32>, vector<1x16x16xf32>, vector<1x16x16xf32>, vector<1x16x16xf32>, vector<1x16x16xf32>, vector<1x16x16xf32>, vector<1x16x16xf32>, vector<1x16x16xf32>, vector<1x16x16xf32>, vector<1x16x16xf32>, vector<1x16x16xf32>, vector<1x16x16xf32> -> vector<16x16x16xf32>
    "tpu.trace_start"() <{level = 10 : i32, message = "hqd,hkd->hqk"}> : () -> ()
    %cst_56 = arith.constant dense<0.000000e+00> : vector<16x16x16xf32>
    %106 = tpu.matmul %39, %72, %cst_56 {dimension_numbers = #tpu.dot_dimension_numbers<[2], [2], [1], [1], [0, 0, 0, 1, 1, 1], [0], [0]>} : vector<16x16x16xf32>, vector<16x16x16xf32>, vector<16x16x16xf32> -> vector<16x16x16xf32>
    "tpu.trace_stop"() : () -> ()
    %cst_57 = arith.constant 2.500000e-01 : f32
    %107 = vector.broadcast %cst_57 : f32 to vector<16x16x16xf32>
    %108 = arith.mulf %106, %107 : vector<16x16x16xf32>
    %cst_58 = arith.constant dense<0xFF800000> : vector<16x16xf32>
    %109 = vector.multi_reduction <maximumf>, %108, %cst_58 [2] : vector<16x16x16xf32> to vector<16x16xf32>
    %110 = vector.shape_cast %109 : vector<16x16xf32> to vector<16x16x1xf32>
    %111 = vector.broadcast %110 : vector<16x16x1xf32> to vector<16x16x16xf32>
    %112 = arith.subf %108, %111 : vector<16x16x16xf32>
    %113 = math.exp %112 : vector<16x16x16xf32>
    %cst_59 = arith.constant dense<0.000000e+00> : vector<16x16xf32>
    %114 = vector.multi_reduction <add>, %113, %cst_59 [2] : vector<16x16x16xf32> to vector<16x16xf32>
    %115 = vector.shape_cast %114 : vector<16x16xf32> to vector<16x16x1xf32>
    %116 = vector.broadcast %115 : vector<16x16x1xf32> to vector<16x16x16xf32>
    %117 = arith.divf %113, %116 : vector<16x16x16xf32>
    "tpu.trace_start"() <{level = 10 : i32, message = "hqk,hkd->hqd"}> : () -> ()
    %cst_60 = arith.constant dense<0.000000e+00> : vector<16x16x16xf32>
    %118 = tpu.matmul %117, %105, %cst_60 {dimension_numbers = #tpu.dot_dimension_numbers<[2], [1], [1], [2], [0, 0, 0, 1, 1, 2], [0], [0]>} : vector<16x16x16xf32>, vector<16x16x16xf32>, vector<16x16x16xf32> -> vector<16x16x16xf32>
    "tpu.trace_stop"() : () -> ()
    %119 = vector.extract_strided_slice %118 {offsets = [0, 0, 0], sizes = [1, 16, 16], strides = [1, 1, 1]} : vector<16x16x16xf32> to vector<1x16x16xf32>
    %120 = vector.shape_cast %119 : vector<1x16x16xf32> to vector<16x16xf32>
    %c0_61 = arith.constant 0 : index
    %c0_62 = arith.constant 0 : index
    %121 = vector.load %arg16[%c0_61, %c0_62] : memref<16x256xf32, #tpu.memory_space<vmem>>, vector<16x16xf32>
    tpu.vector_store %arg16[%c0_61, %c0_62], %120 {strides = array<i32>} : memref<16x256xf32, #tpu.memory_space<vmem>>, vector<16x16xf32>,
    %122 = vector.extract_strided_slice %118 {offsets = [1, 0, 0], sizes = [1, 16, 16], strides = [1, 1, 1]} : vector<16x16x16xf32> to vector<1x16x16xf32>
    %123 = vector.shape_cast %122 : vector<1x16x16xf32> to vector<16x16xf32>
    %c0_63 = arith.constant 0 : index
    %c16_64 = arith.constant 16 : index
    %124 = vector.load %arg16[%c0_63, %c16_64] : memref<16x256xf32, #tpu.memory_space<vmem>>, vector<16x16xf32>
    tpu.vector_store %arg16[%c0_63, %c16_64], %123 {strides = array<i32>} : memref<16x256xf32, #tpu.memory_space<vmem>>, vector<16x16xf32>,
    %125 = vector.extract_strided_slice %118 {offsets = [2, 0, 0], sizes = [1, 16, 16], strides = [1, 1, 1]} : vector<16x16x16xf32> to vector<1x16x16xf32>
    %126 = vector.shape_cast %125 : vector<1x16x16xf32> to vector<16x16xf32>
    %c0_65 = arith.constant 0 : index
    %c32_66 = arith.constant 32 : index
    %127 = vector.load %arg16[%c0_65, %c32_66] : memref<16x256xf32, #tpu.memory_space<vmem>>, vector<16x16xf32>
    tpu.vector_store %arg16[%c0_65, %c32_66], %126 {strides = array<i32>} : memref<16x256xf32, #tpu.memory_space<vmem>>, vector<16x16xf32>,
    %128 = vector.extract_strided_slice %118 {offsets = [3, 0, 0], sizes = [1, 16, 16], strides = [1, 1, 1]} : vector<16x16x16xf32> to vector<1x16x16xf32>
    %129 = vector.shape_cast %128 : vector<1x16x16xf32> to vector<16x16xf32>
    %c0_67 = arith.constant 0 : index
    %c48_68 = arith.constant 48 : index
    %130 = vector.load %arg16[%c0_67, %c48_68] : memref<16x256xf32, #tpu.memory_space<vmem>>, vector<16x16xf32>
    tpu.vector_store %arg16[%c0_67, %c48_68], %129 {strides = array<i32>} : memref<16x256xf32, #tpu.memory_space<vmem>>, vector<16x16xf32>,
    %131 = vector.extract_strided_slice %118 {offsets = [4, 0, 0], sizes = [1, 16, 16], strides = [1, 1, 1]} : vector<16x16x16xf32> to vector<1x16x16xf32>
    %132 = vector.shape_cast %131 : vector<1x16x16xf32> to vector<16x16xf32>
    %c0_69 = arith.constant 0 : index
    %c64_70 = arith.constant 64 : index
    %133 = vector.load %arg16[%c0_69, %c64_70] : memref<16x256xf32, #tpu.memory_space<vmem>>, vector<16x16xf32>
    tpu.vector_store %arg16[%c0_69, %c64_70], %132 {strides = array<i32>} : memref<16x256xf32, #tpu.memory_space<vmem>>, vector<16x16xf32>,
    %134 = vector.extract_strided_slice %118 {offsets = [5, 0, 0], sizes = [1, 16, 16], strides = [1, 1, 1]} : vector<16x16x16xf32> to vector<1x16x16xf32>
    %135 = vector.shape_cast %134 : vector<1x16x16xf32> to vector<16x16xf32>
    %c0_71 = arith.constant 0 : index
    %c80_72 = arith.constant 80 : index
    %136 = vector.load %arg16[%c0_71, %c80_72] : memref<16x256xf32, #tpu.memory_space<vmem>>, vector<16x16xf32>
    tpu.vector_store %arg16[%c0_71, %c80_72], %135 {strides = array<i32>} : memref<16x256xf32, #tpu.memory_space<vmem>>, vector<16x16xf32>,
    %137 = vector.extract_strided_slice %118 {offsets = [6, 0, 0], sizes = [1, 16, 16], strides = [1, 1, 1]} : vector<16x16x16xf32> to vector<1x16x16xf32>
    %138 = vector.shape_cast %137 : vector<1x16x16xf32> to vector<16x16xf32>
    %c0_73 = arith.constant 0 : index
    %c96_74 = arith.constant 96 : index
    %139 = vector.load %arg16[%c0_73, %c96_74] : memref<16x256xf32, #tpu.memory_space<vmem>>, vector<16x16xf32>
    tpu.vector_store %arg16[%c0_73, %c96_74], %138 {strides = array<i32>} : memref<16x256xf32, #tpu.memory_space<vmem>>, vector<16x16xf32>,
    %140 = vector.extract_strided_slice %118 {offsets = [7, 0, 0], sizes = [1, 16, 16], strides = [1, 1, 1]} : vector<16x16x16xf32> to vector<1x16x16xf32>
    %141 = vector.shape_cast %140 : vector<1x16x16xf32> to vector<16x16xf32>
    %c0_75 = arith.constant 0 : index
    %c112_76 = arith.constant 112 : index
    %142 = vector.load %arg16[%c0_75, %c112_76] : memref<16x256xf32, #tpu.memory_space<vmem>>, vector<16x16xf32>
    tpu.vector_store %arg16[%c0_75, %c112_76], %141 {strides = array<i32>} : memref<16x256xf32, #tpu.memory_space<vmem>>, vector<16x16xf32>,
    %143 = vector.extract_strided_slice %118 {offsets = [8, 0, 0], sizes = [1, 16, 16], strides = [1, 1, 1]} : vector<16x16x16xf32> to vector<1x16x16xf32>
    %144 = vector.shape_cast %143 : vector<1x16x16xf32> to vector<16x16xf32>
    %c0_77 = arith.constant 0 : index
    %c128_78 = arith.constant 128 : index
    %145 = vector.load %arg16[%c0_77, %c128_78] : memref<16x256xf32, #tpu.memory_space<vmem>>, vector<16x16xf32>
    tpu.vector_store %arg16[%c0_77, %c128_78], %144 {strides = array<i32>} : memref<16x256xf32, #tpu.memory_space<vmem>>, vector<16x16xf32>,
    %146 = vector.extract_strided_slice %118 {offsets = [9, 0, 0], sizes = [1, 16, 16], strides = [1, 1, 1]} : vector<16x16x16xf32> to vector<1x16x16xf32>
    %147 = vector.shape_cast %146 : vector<1x16x16xf32> to vector<16x16xf32>
    %c0_79 = arith.constant 0 : index
    %c144_80 = arith.constant 144 : index
    %148 = vector.load %arg16[%c0_79, %c144_80] : memref<16x256xf32, #tpu.memory_space<vmem>>, vector<16x16xf32>
    tpu.vector_store %arg16[%c0_79, %c144_80], %147 {strides = array<i32>} : memref<16x256xf32, #tpu.memory_space<vmem>>, vector<16x16xf32>,
    %149 = vector.extract_strided_slice %118 {offsets = [10, 0, 0], sizes = [1, 16, 16], strides = [1, 1, 1]} : vector<16x16x16xf32> to vector<1x16x16xf32>
    %150 = vector.shape_cast %149 : vector<1x16x16xf32> to vector<16x16xf32>
    %c0_81 = arith.constant 0 : index
    %c160_82 = arith.constant 160 : index
    %151 = vector.load %arg16[%c0_81, %c160_82] : memref<16x256xf32, #tpu.memory_space<vmem>>, vector<16x16xf32>
    tpu.vector_store %arg16[%c0_81, %c160_82], %150 {strides = array<i32>} : memref<16x256xf32, #tpu.memory_space<vmem>>, vector<16x16xf32>,
    %152 = vector.extract_strided_slice %118 {offsets = [11, 0, 0], sizes = [1, 16, 16], strides = [1, 1, 1]} : vector<16x16x16xf32> to vector<1x16x16xf32>
    %153 = vector.shape_cast %152 : vector<1x16x16xf32> to vector<16x16xf32>
    %c0_83 = arith.constant 0 : index
    %c176_84 = arith.constant 176 : index
    %154 = vector.load %arg16[%c0_83, %c176_84] : memref<16x256xf32, #tpu.memory_space<vmem>>, vector<16x16xf32>
    tpu.vector_store %arg16[%c0_83, %c176_84], %153 {strides = array<i32>} : memref<16x256xf32, #tpu.memory_space<vmem>>, vector<16x16xf32>,
    %155 = vector.extract_strided_slice %118 {offsets = [12, 0, 0], sizes = [1, 16, 16], strides = [1, 1, 1]} : vector<16x16x16xf32> to vector<1x16x16xf32>
    %156 = vector.shape_cast %155 : vector<1x16x16xf32> to vector<16x16xf32>
    %c0_85 = arith.constant 0 : index
    %c192_86 = arith.constant 192 : index
    %157 = vector.load %arg16[%c0_85, %c192_86] : memref<16x256xf32, #tpu.memory_space<vmem>>, vector<16x16xf32>
    tpu.vector_store %arg16[%c0_85, %c192_86], %156 {strides = array<i32>} : memref<16x256xf32, #tpu.memory_space<vmem>>, vector<16x16xf32>,
    %158 = vector.extract_strided_slice %118 {offsets = [13, 0, 0], sizes = [1, 16, 16], strides = [1, 1, 1]} : vector<16x16x16xf32> to vector<1x16x16xf32>
    %159 = vector.shape_cast %158 : vector<1x16x16xf32> to vector<16x16xf32>
    %c0_87 = arith.constant 0 : index
    %c208_88 = arith.constant 208 : index
    %160 = vector.load %arg16[%c0_87, %c208_88] : memref<16x256xf32, #tpu.memory_space<vmem>>, vector<16x16xf32>
    tpu.vector_store %arg16[%c0_87, %c208_88], %159 {strides = array<i32>} : memref<16x256xf32, #tpu.memory_space<vmem>>, vector<16x16xf32>,
    %161 = vector.extract_strided_slice %118 {offsets = [14, 0, 0], sizes = [1, 16, 16], strides = [1, 1, 1]} : vector<16x16x16xf32> to vector<1x16x16xf32>
    %162 = vector.shape_cast %161 : vector<1x16x16xf32> to vector<16x16xf32>
    %c0_89 = arith.constant 0 : index
    %c224_90 = arith.constant 224 : index
    %163 = vector.load %arg16[%c0_89, %c224_90] : memref<16x256xf32, #tpu.memory_space<vmem>>, vector<16x16xf32>
    tpu.vector_store %arg16[%c0_89, %c224_90], %162 {strides = array<i32>} : memref<16x256xf32, #tpu.memory_space<vmem>>, vector<16x16xf32>,
    %164 = vector.extract_strided_slice %118 {offsets = [15, 0, 0], sizes = [1, 16, 16], strides = [1, 1, 1]} : vector<16x16x16xf32> to vector<1x16x16xf32>
    %165 = vector.shape_cast %164 : vector<1x16x16xf32> to vector<16x16xf32>
    %c0_91 = arith.constant 0 : index
    %c240_92 = arith.constant 240 : index
    %166 = vector.load %arg16[%c0_91, %c240_92] : memref<16x256xf32, #tpu.memory_space<vmem>>, vector<16x16xf32>
    tpu.vector_store %arg16[%c0_91, %c240_92], %165 {strides = array<i32>} : memref<16x256xf32, #tpu.memory_space<vmem>>, vector<16x16xf32>,
    %c0_93 = arith.constant 0 : index
    %c0_94 = arith.constant 0 : index
    %167 = vector.load %arg16[%c0_93, %c0_94] : memref<16x256xf32, #tpu.memory_space<vmem>>, vector<16x256xf32>
    %c0_95 = arith.constant 0 : index
    %c0_96 = arith.constant 0 : index
    %168 = vector.load %arg4[%c0_95, %c0_96] : memref<256x256xf32, #tpu.memory_space<vmem>>, vector<256x256xf32>
    %cst_97 = arith.constant dense<0.000000e+00> : vector<16x256xf32>
    %169 = tpu.matmul %167, %168, %cst_97 {dimension_numbers = #tpu.dot_dimension_numbers<[1], [0], [0], [1], [0, 0, 1, 1], [], []>} : vector<16x256xf32>, vector<256x256xf32>, vector<16x256xf32> -> vector<16x256xf32>
    %c0_98 = arith.constant 0 : index
    %c0_99 = arith.constant 0 : index
    %170 = vector.load %arg5[%c0_98, %c0_99] : memref<1x256xf32, #tpu.memory_space<vmem>>, vector<1x256xf32>
    %171 = vector.broadcast %170 : vector<1x256xf32> to vector<16x256xf32>
    %172 = arith.addf %169, %171 : vector<16x256xf32>
    %173 = arith.addf %0, %172 : vector<16x256xf32>
    %cst_100 = arith.constant dense<0.000000e+00> : vector<16xf32>
    %174 = vector.multi_reduction <add>, %173, %cst_100 [1] : vector<16x256xf32> to vector<16xf32>
    %175 = vector.shape_cast %174 : vector<16xf32> to vector<16x1xf32>
    %cst_101 = arith.constant 2.560000e+02 : f32
    %176 = vector.broadcast %cst_101 : f32 to vector<16x1xf32>
    %177 = arith.divf %175, %176 : vector<16x1xf32>
    %178 = vector.broadcast %177 : vector<16x1xf32> to vector<16x256xf32>
    %179 = arith.subf %173, %178 : vector<16x256xf32>
    %180 = arith.mulf %179, %179 : vector<16x256xf32>
    %cst_102 = arith.constant dense<0.000000e+00> : vector<16xf32>
    %181 = vector.multi_reduction <add>, %180, %cst_102 [1] : vector<16x256xf32> to vector<16xf32>
    %182 = vector.shape_cast %181 : vector<16xf32> to vector<16x1xf32>
    %cst_103 = arith.constant 2.560000e+02 : f32
    %183 = vector.broadcast %cst_103 : f32 to vector<16x1xf32>
    %184 = arith.divf %182, %183 : vector<16x1xf32>
    %cst_104 = arith.constant 9.99999996E-13 : f32
    %185 = vector.broadcast %cst_104 : f32 to vector<16x1xf32>
    %186 = arith.addf %184, %185 : vector<16x1xf32>
    %187 = math.rsqrt %186 : vector<16x1xf32>
    %188 = vector.broadcast %187 : vector<16x1xf32> to vector<16x256xf32>
    %189 = arith.mulf %179, %188 : vector<16x256xf32>
    %c0_105 = arith.constant 0 : index
    %c0_106 = arith.constant 0 : index
    %190 = vector.load %arg6[%c0_105, %c0_106] : memref<1x256xf32, #tpu.memory_space<vmem>>, vector<1x256xf32>
    %191 = vector.broadcast %190 : vector<1x256xf32> to vector<16x256xf32>
    %192 = arith.mulf %189, %191 : vector<16x256xf32>
    %c0_107 = arith.constant 0 : index
    %c0_108 = arith.constant 0 : index
    %193 = vector.load %arg7[%c0_107, %c0_108] : memref<1x256xf32, #tpu.memory_space<vmem>>, vector<1x256xf32>
    %194 = vector.broadcast %193 : vector<1x256xf32> to vector<16x256xf32>
    %195 = arith.addf %192, %194 : vector<16x256xf32>
    %c0_109 = arith.constant 0 : index
    %c0_110 = arith.constant 0 : index
    %196 = vector.load %arg8[%c0_109, %c0_110] : memref<256x512xf32, #tpu.memory_space<vmem>>, vector<256x512xf32>
    %cst_111 = arith.constant dense<0.000000e+00> : vector<16x512xf32>
    %197 = tpu.matmul %195, %196, %cst_111 {dimension_numbers = #tpu.dot_dimension_numbers<[1], [0], [0], [1], [0, 0, 1, 1], [], []>} : vector<16x256xf32>, vector<256x512xf32>, vector<16x512xf32> -> vector<16x512xf32>
    %c0_112 = arith.constant 0 : index
    %c0_113 = arith.constant 0 : index
    %198 = vector.load %arg9[%c0_112, %c0_113] : memref<1x512xf32, #tpu.memory_space<vmem>>, vector<1x512xf32>
    %199 = vector.broadcast %198 : vector<1x512xf32> to vector<16x512xf32>
    %200 = arith.addf %197, %199 : vector<16x512xf32>
    %cst_114 = arith.constant 5.000000e-01 : f32
    %201 = vector.broadcast %cst_114 : f32 to vector<16x512xf32>
    %202 = arith.mulf %201, %200 : vector<16x512xf32>
    %cst_115 = arith.constant 0.707106769 : f32
    %203 = vector.broadcast %cst_115 : f32 to vector<16x512xf32>
    %204 = arith.mulf %200, %203 : vector<16x512xf32>
    %205 = math.erf %204 : vector<16x512xf32>
    %cst_116 = arith.constant 1.000000e+00 : f32
    %206 = vector.broadcast %cst_116 : f32 to vector<16x512xf32>
    %207 = arith.addf %206, %205 : vector<16x512xf32>
    %208 = arith.mulf %202, %207 : vector<16x512xf32>
    %c0_117 = arith.constant 0 : index
    %c0_118 = arith.constant 0 : index
    %209 = vector.load %arg10[%c0_117, %c0_118] : memref<512x256xf32, #tpu.memory_space<vmem>>, vector<512x256xf32>
    %cst_119 = arith.constant dense<0.000000e+00> : vector<16x256xf32>
    %210 = tpu.matmul %208, %209, %cst_119 {dimension_numbers = #tpu.dot_dimension_numbers<[1], [0], [0], [1], [0, 0, 1, 1], [], []>} : vector<16x512xf32>, vector<512x256xf32>, vector<16x256xf32> -> vector<16x256xf32>
    %c0_120 = arith.constant 0 : index
    %c0_121 = arith.constant 0 : index
    %211 = vector.load %arg11[%c0_120, %c0_121] : memref<1x256xf32, #tpu.memory_space<vmem>>, vector<1x256xf32>
    %212 = vector.broadcast %211 : vector<1x256xf32> to vector<16x256xf32>
    %213 = arith.addf %210, %212 : vector<16x256xf32>
    %214 = arith.addf %195, %213 : vector<16x256xf32>
    %cst_122 = arith.constant dense<0.000000e+00> : vector<16xf32>
    %215 = vector.multi_reduction <add>, %214, %cst_122 [1] : vector<16x256xf32> to vector<16xf32>
    %216 = vector.shape_cast %215 : vector<16xf32> to vector<16x1xf32>
    %cst_123 = arith.constant 2.560000e+02 : f32
    %217 = vector.broadcast %cst_123 : f32 to vector<16x1xf32>
    %218 = arith.divf %216, %217 : vector<16x1xf32>
    %219 = vector.broadcast %218 : vector<16x1xf32> to vector<16x256xf32>
    %220 = arith.subf %214, %219 : vector<16x256xf32>
    %221 = arith.mulf %220, %220 : vector<16x256xf32>
    %cst_124 = arith.constant dense<0.000000e+00> : vector<16xf32>
    %222 = vector.multi_reduction <add>, %221, %cst_124 [1] : vector<16x256xf32> to vector<16xf32>
    %223 = vector.shape_cast %222 : vector<16xf32> to vector<16x1xf32>
    %cst_125 = arith.constant 2.560000e+02 : f32
    %224 = vector.broadcast %cst_125 : f32 to vector<16x1xf32>
    %225 = arith.divf %223, %224 : vector<16x1xf32>
    %cst_126 = arith.constant 9.99999996E-13 : f32
    %226 = vector.broadcast %cst_126 : f32 to vector<16x1xf32>
    %227 = arith.addf %225, %226 : vector<16x1xf32>
    %228 = math.rsqrt %227 : vector<16x1xf32>
    %229 = vector.broadcast %228 : vector<16x1xf32> to vector<16x256xf32>
    %230 = arith.mulf %220, %229 : vector<16x256xf32>
    %c0_127 = arith.constant 0 : index
    %c0_128 = arith.constant 0 : index
    %231 = vector.load %arg12[%c0_127, %c0_128] : memref<1x256xf32, #tpu.memory_space<vmem>>, vector<1x256xf32>
    %232 = vector.broadcast %231 : vector<1x256xf32> to vector<16x256xf32>
    %233 = arith.mulf %230, %232 : vector<16x256xf32>
    %c0_129 = arith.constant 0 : index
    %c0_130 = arith.constant 0 : index
    %234 = vector.load %arg13[%c0_129, %c0_130] : memref<1x256xf32, #tpu.memory_space<vmem>>, vector<1x256xf32>
    %235 = vector.broadcast %234 : vector<1x256xf32> to vector<16x256xf32>
    %236 = arith.addf %233, %235 : vector<16x256xf32>
    %c0_131 = arith.constant 0 : index
    %c0_132 = arith.constant 0 : index
    %237 = vector.load %arg14[%c0_131, %c0_132] : memref<16x256xf32, #tpu.memory_space<vmem>>, vector<16x256xf32>
    tpu.vector_store %arg14[%c0_131, %c0_132], %236 {strides = array<i32>} : memref<16x256xf32, #tpu.memory_space<vmem>>, vector<16x256xf32>,
    return
  }
  func.func @transform_0(%arg0: i32) -> (i32, i32) {
    %c0_i32 = arith.constant 0 : i32
    %c0_i32_0 = arith.constant 0 : i32
    return %arg0, %c0_i32 : i32, i32
  }
  func.func @transform_1(%arg0: i32) -> (i32, i32) {
    %c0_i32 = arith.constant 0 : i32
    %c0_i32_0 = arith.constant 0 : i32
    %c0_i32_1 = arith.constant 0 : i32
    return %c0_i32, %c0_i32_0 : i32, i32
  }
  func.func @transform_2(%arg0: i32) -> (i32, i32) {
    %c0_i32 = arith.constant 0 : i32
    %c0_i32_0 = arith.constant 0 : i32
    %c0_i32_1 = arith.constant 0 : i32
    return %c0_i32, %c0_i32_0 : i32, i32
  }
  func.func @transform_3(%arg0: i32) -> (i32, i32) {
    %c0_i32 = arith.constant 0 : i32
    %c0_i32_0 = arith.constant 0 : i32
    %c0_i32_1 = arith.constant 0 : i32
    return %c0_i32, %c0_i32_0 : i32, i32
  }
  func.func @transform_4(%arg0: i32) -> (i32, i32) {
    %c0_i32 = arith.constant 0 : i32
    %c0_i32_0 = arith.constant 0 : i32
    %c0_i32_1 = arith.constant 0 : i32
    return %c0_i32, %c0_i32_0 : i32, i32
  }
  func.func @transform_5(%arg0: i32) -> (i32, i32) {
    %c0_i32 = arith.constant 0 : i32
    %c0_i32_0 = arith.constant 0 : i32
    %c0_i32_1 = arith.constant 0 : i32
    return %c0_i32, %c0_i32_0 : i32, i32
  }
  func.func @transform_6(%arg0: i32) -> (i32, i32) {
    %c0_i32 = arith.constant 0 : i32
    %c0_i32_0 = arith.constant 0 : i32
    %c0_i32_1 = arith.constant 0 : i32
    return %c0_i32, %c0_i32_0 : i32, i32
  }
  func.func @transform_7(%arg0: i32) -> (i32, i32) {
    %c0_i32 = arith.constant 0 : i32
    %c0_i32_0 = arith.constant 0 : i32
    %c0_i32_1 = arith.constant 0 : i32
    return %c0_i32, %c0_i32_0 : i32, i32
  }
  func.func @transform_8(%arg0: i32) -> (i32, i32) {
    %c0_i32 = arith.constant 0 : i32
    %c0_i32_0 = arith.constant 0 : i32
    %c0_i32_1 = arith.constant 0 : i32
    return %c0_i32, %c0_i32_0 : i32, i32
  }
  func.func @transform_9(%arg0: i32) -> (i32, i32) {
    %c0_i32 = arith.constant 0 : i32
    %c0_i32_0 = arith.constant 0 : i32
    %c0_i32_1 = arith.constant 0 : i32
    return %c0_i32, %c0_i32_0 : i32, i32
  }
  func.func @transform_10(%arg0: i32) -> (i32, i32) {
    %c0_i32 = arith.constant 0 : i32
    %c0_i32_0 = arith.constant 0 : i32
    %c0_i32_1 = arith.constant 0 : i32
    return %c0_i32, %c0_i32_0 : i32, i32
  }
  func.func @transform_11(%arg0: i32) -> (i32, i32) {
    %c0_i32 = arith.constant 0 : i32
    %c0_i32_0 = arith.constant 0 : i32
    %c0_i32_1 = arith.constant 0 : i32
    return %c0_i32, %c0_i32_0 : i32, i32
  }
  func.func @transform_12(%arg0: i32) -> (i32, i32) {
    %c0_i32 = arith.constant 0 : i32
    %c0_i32_0 = arith.constant 0 : i32
    %c0_i32_1 = arith.constant 0 : i32
    return %c0_i32, %c0_i32_0 : i32, i32
  }
  func.func @transform_13(%arg0: i32) -> (i32, i32) {
    %c0_i32 = arith.constant 0 : i32
    %c0_i32_0 = arith.constant 0 : i32
    return %arg0, %c0_i32 : i32, i32
  }
}

</mosaic_0001>

<llo_original>
// kernel: tpu_custom_call.1
$region0: #{tpu_custom_call.1}
  #allocation0 [shape = 'u32[]', space=smem, size = 0x4, offset = 0x4, fixed_abs, tag = 'smem constant byte address 0x4 - core index']
  #allocation1 [shape = 'u32[144,128]{1,0:T(1,128)}', space=vmem, size = 0x12000, scoped, tag = 'internal scratch']
  #allocation2 [shape = 'f32[16,768]{1,0:T(8,128)}', space=vmem, size = 0xc000, scoped, tag = 'scratch operand']
  #allocation3 [shape = 'f32[16,256]{1,0:T(8,128)}', space=vmem, size = 0x4000, scoped, tag = 'scratch operand']
  %s0 = inlined_call_operand.hbm [shape: f32[32,256], index: 0, kind: input, shape index: {}]
  %s1 = inlined_call_operand.hbm [shape: f32[256,768], index: 1, kind: input, shape index: {}]
  %s2 = inlined_call_operand.vmem [shape: f32[1,768], index: 2, kind: input, shape index: {}]
  %s3 = inlined_call_operand.hbm [shape: f32[256,256], index: 3, kind: input, shape index: {}]
  %s4 = inlined_call_operand.vmem [shape: f32[1,256], index: 4, kind: input, shape index: {}]
  %s5 = inlined_call_operand.vmem [shape: f32[1,256], index: 5, kind: input, shape index: {}]
  %s6 = inlined_call_operand.vmem [shape: f32[1,256], index: 6, kind: input, shape index: {}]
  %s7 = inlined_call_operand.hbm [shape: f32[256,512], index: 7, kind: input, shape index: {}]
  %s8 = inlined_call_operand.vmem [shape: f32[1,512], index: 8, kind: input, shape index: {}]
  %s9 = inlined_call_operand.hbm [shape: f32[512,256], index: 9, kind: input, shape index: {}]
  %s10 = inlined_call_operand.vmem [shape: f32[1,256], index: 10, kind: input, shape index: {}]
  %s11 = inlined_call_operand.vmem [shape: f32[1,256], index: 11, kind: input, shape index: {}]
  %s12 = inlined_call_operand.vmem [shape: f32[1,256], index: 12, kind: input, shape index: {}]
  %s13 = inlined_call_operand.hbm [shape: f32[32,256], index: 13, kind: output, shape index: {}]
  %s14 = sld [smem:[#allocation0]]
  $region105: #{tpu_custom_call.1} parent=0
    _
  %s16 = ssub.s32 1, %s14
  %s17 = scalar_select 0, %s16, %s14
  $region1: #{tpu_custom_call.1} parent=0
    #allocation4 [shape = 'u8[32768]{0}', space=vmem, size = 0x8000, scoped, tag = 'input window, operand 0']
    #allocation5 [shape = 's32[2]{0}', space=sflag, size = 0x8, scoped, tag = 'scoped memory for tpu_custom_call.1']
    #allocation6 [shape = 's32[2]{0}', space=sflag, size = 0x8, scoped, tag = 'scoped memory for tpu_custom_call.1']
    #allocation7 [shape = 'u8[786432]{0}', space=vmem, size = 0xc0000, scoped, tag = 'input window, operand 1, single buffered']
    #allocation8 [shape = 's32[1]{0}', space=sflag, size = 0x4, scoped, tag = 'scoped memory for tpu_custom_call.1']
    #allocation9 [shape = 'u8[262144]{0}', space=vmem, size = 0x40000, scoped, tag = 'input window, operand 3, single buffered']
    #allocation10 [shape = 'u8[524288]{0}', space=vmem, size = 0x80000, scoped, tag = 'input window, operand 7, single buffered']
    #allocation11 [shape = 's32[1]{0}', space=sflag, size = 0x4, scoped, tag = 'scoped memory for tpu_custom_call.1']
    #allocation12 [shape = 'u8[524288]{0}', space=vmem, size = 0x80000, scoped, tag = 'input window, operand 9, single buffered']
    #allocation13 [shape = 'u8[32768]{0}', space=vmem, size = 0x8000, scoped, tag = 'output window, operand 0']
    %18 = vsyncpa [#allocation5], 0
    %s19 = scalar_lea.sflag [#allocation5], 1
    %20 = vsyncpa %s19, 0
    %21 = vsyncpa [#allocation8], 0
    %22 = vsyncpa [#allocation11], 0
    %23 = vsyncpa [#allocation6], 0
    %s24 = scalar_lea.sflag [#allocation6], 1
    %25 = vsyncpa %s24, 0
    loop: start=0, step=1, limit=4
    $region2: #{tpu_custom_call.1} parent=1 // loop_pre_header
      _
    $region3: #{tpu_custom_call.1} parent=1 // loop_header
      %s27 = sphi 0, %s31
      %p28 = scmp.ge.s32.totalorder %s27, 4
      %s37 = sphi 0, %s39
      %s40 = sphi 0, %s37
      %s41 = sphi 0, %s40
      %s57 = sphi 0, %s41
      %s61 = sphi 0, %s61
      %s63 = sphi 0, %s61
      %s64 = sphi 0, %s63
      %s78 = sphi 0, %s64
      %s82 = sphi 0, %s82
      %s84 = sphi 0, %s82
      %s85 = sphi 0, %s84
      %s99 = sphi 0, %s85
      %s103 = sphi 0, %s103
      %s105 = sphi 0, %s103
      %s106 = sphi 0, %s105
      %s120 = sphi 0, %s106
      %s124 = sphi 0, %s124
      %s126 = sphi 0, %s124
      %s127 = sphi 0, %s126
      %s141 = sphi 0, %s127
      %s145 = sphi 0, %s145
      %s147 = sphi 0, %s145
      %s148 = sphi 0, %s147
      %s162 = sphi 0, %s148
      %s166 = sphi 0, %s166
      %s168 = sphi 0, %s166
      %s169 = sphi 0, %s168
      %s183 = sphi 0, %s169
      %s187 = sphi 0, %s187
      %s189 = sphi 0, %s187
      %s190 = sphi 0, %s189
      %s204 = sphi 0, %s190
      %s208 = sphi 0, %s208
      %s210 = sphi 0, %s208
      %s211 = sphi 0, %s210
      %s225 = sphi 0, %s211
      %s229 = sphi 0, %s229
      %s231 = sphi 0, %s229
      %s232 = sphi 0, %s231
      %s246 = sphi 0, %s232
      %s250 = sphi 0, %s250
      %s252 = sphi 0, %s250
      %s253 = sphi 0, %s252
      %s267 = sphi 0, %s253
      %s271 = sphi 0, %s271
      %s273 = sphi 0, %s271
      %s274 = sphi 0, %s273
      %s288 = sphi 0, %s274
      %s292 = sphi 0, %s292
      %s294 = sphi 0, %s292
      %s295 = sphi 0, %s294
      %s309 = sphi 0, %s295
      %s315 = sphi 0, %s317
      %s318 = sphi 0, %s315
      %s319 = sphi 0, %s318
      %s335 = sphi 0, %s319
    $region4: #{tpu_custom_call.1} parent=1 // loop_header_branch
      %30 = sbr.rel (%p28) target = $region8
    $region5: #{tpu_custom_call.1} parent=1 // loop_body
      %s32 = ssub.s32 %s27, 1
      %s33 = ssub.s32 %s27, 2
      %s34 = sadd.s32 %s27, 1
      %s35 = ssub.s32 %s27, %s34
      %p36 = scmp.eq.s32.totalorder %s35, 0
      %s38 = sadd.s32 %s37, 1
      %s39 = scalar_select %p36, %s37, %s38
      %p42 = pneg %p36
      %p43 = scmp.eq.s32.totalorder %s27, 1
      %p44 = por %p42, %p43
      %p45 = scmp.ne.s32.totalorder %s37, %s40
      %p46 = scmp.eq.s32.totalorder %s27, 0
      %p47 = por %p45, %p46
      %p48 = scmp.ne.s32.totalorder %s37, %s40
      %p49 = scmp.eq.s32.totalorder %s32, 1
      %p50 = por %p48, %p49
      %p51 = scmp.ne.s32.totalorder %s40, %s41
      %p52 = scmp.eq.s32.totalorder %s32, 0
      %p53 = por %p51, %p52
      %p54 = scmp.ne.s32.totalorder %s40, %s41
      %p55 = scmp.eq.s32.totalorder %s33, 1
      %p56 = por %p54, %p55
      %p58 = scmp.ne.s32.totalorder %s41, %s57
      %p59 = scmp.eq.s32.totalorder %s33, 0
      %p60 = por %p58, %p59
      %s62 = sadd.s32 %s61, 1
      %p65 = scmp.eq.s32.totalorder %s27, 1
      %p66 = scmp.ne.s32.totalorder %s61, %s63
      %p67 = scmp.eq.s32.totalorder %s27, 0
      %p68 = por %p66, %p67
      %p69 = scmp.ne.s32.totalorder %s61, %s63
      %p70 = scmp.eq.s32.totalorder %s32, 1
      %p71 = por %p69, %p70
      %p72 = scmp.ne.s32.totalorder %s63, %s64
      %p73 = scmp.eq.s32.totalorder %s32, 0
      %p74 = por %p72, %p73
      %p75 = scmp.ne.s32.totalorder %s63, %s64
      %p76 = scmp.eq.s32.totalorder %s33, 1
      %p77 = por %p75, %p76
      %p79 = scmp.ne.s32.totalorder %s64, %s78
      %p80 = scmp.eq.s32.totalorder %s33, 0
      %p81 = por %p79, %p80
      %s83 = sadd.s32 %s82, 1
      %p86 = scmp.eq.s32.totalorder %s27, 1
      %p87 = scmp.ne.s32.totalorder %s82, %s84
      %p88 = scmp.eq.s32.totalorder %s27, 0
      %p89 = por %p87, %p88
      %p90 = scmp.ne.s32.totalorder %s82, %s84
      %p91 = scmp.eq.s32.totalorder %s32, 1
      %p92 = por %p90, %p91
      %p93 = scmp.ne.s32.totalorder %s84, %s85
      %p94 = scmp.eq.s32.totalorder %s32, 0
      %p95 = por %p93, %p94
      %p96 = scmp.ne.s32.totalorder %s84, %s85
      %p97 = scmp.eq.s32.totalorder %s33, 1
      %p98 = por %p96, %p97
      %p100 = scmp.ne.s32.totalorder %s85, %s99
      %p101 = scmp.eq.s32.totalorder %s33, 0
      %p102 = por %p100, %p101
      %s104 = sadd.s32 %s103, 1
      %p107 = scmp.eq.s32.totalorder %s27, 1
      %p108 = scmp.ne.s32.totalorder %s103, %s105
      %p109 = scmp.eq.s32.totalorder %s27, 0
      %p110 = por %p108, %p109
      %p111 = scmp.ne.s32.totalorder %s103, %s105
      %p112 = scmp.eq.s32.totalorder %s32, 1
      %p113 = por %p111, %p112
      %p114 = scmp.ne.s32.totalorder %s105, %s106
      %p115 = scmp.eq.s32.totalorder %s32, 0
      %p116 = por %p114, %p115
      %p117 = scmp.ne.s32.totalorder %s105, %s106
      %p118 = scmp.eq.s32.totalorder %s33, 1
      %p119 = por %p117, %p118
      %p121 = scmp.ne.s32.totalorder %s106, %s120
      %p122 = scmp.eq.s32.totalorder %s33, 0
      %p123 = por %p121, %p122
      %s125 = sadd.s32 %s124, 1
      %p128 = scmp.eq.s32.totalorder %s27, 1
      %p129 = scmp.ne.s32.totalorder %s124, %s126
      %p130 = scmp.eq.s32.totalorder %s27, 0
      %p131 = por %p129, %p130
      %p132 = scmp.ne.s32.totalorder %s124, %s126
      %p133 = scmp.eq.s32.totalorder %s32, 1
      %p134 = por %p132, %p133
      %p135 = scmp.ne.s32.totalorder %s126, %s127
      %p136 = scmp.eq.s32.totalorder %s32, 0
      %p137 = por %p135, %p136
      %p138 = scmp.ne.s32.totalorder %s126, %s127
      %p139 = scmp.eq.s32.totalorder %s33, 1
      %p140 = por %p138, %p139
      %p142 = scmp.ne.s32.totalorder %s127, %s141
      %p143 = scmp.eq.s32.totalorder %s33, 0
      %p144 = por %p142, %p143
      %s146 = sadd.s32 %s145, 1
      %p149 = scmp.eq.s32.totalorder %s27, 1
      %p150 = scmp.ne.s32.totalorder %s145, %s147
      %p151 = scmp.eq.s32.totalorder %s27, 0
      %p152 = por %p150, %p151
      %p153 = scmp.ne.s32.totalorder %s145, %s147
      %p154 = scmp.eq.s32.totalorder %s32, 1
      %p155 = por %p153, %p154
      %p156 = scmp.ne.s32.totalorder %s147, %s148
      %p157 = scmp.eq.s32.totalorder %s32, 0
      %p158 = por %p156, %p157
      %p159 = scmp.ne.s32.totalorder %s147, %s148
      %p160 = scmp.eq.s32.totalorder %s33, 1
      %p161 = por %p159, %p160
      %p163 = scmp.ne.s32.totalorder %s148, %s162
      %p164 = scmp.eq.s32.totalorder %s33, 0
      %p165 = por %p163, %p164
      %s167 = sadd.s32 %s166, 1
      %p170 = scmp.eq.s32.totalorder %s27, 1
      %p171 = scmp.ne.s32.totalorder %s166, %s168
      %p172 = scmp.eq.s32.totalorder %s27, 0
      %p173 = por %p171, %p172
      %p174 = scmp.ne.s32.totalorder %s166, %s168
      %p175 = scmp.eq.s32.totalorder %s32, 1
      %p176 = por %p174, %p175
      %p177 = scmp.ne.s32.totalorder %s168, %s169
      %p178 = scmp.eq.s32.totalorder %s32, 0
      %p179 = por %p177, %p178
      %p180 = scmp.ne.s32.totalorder %s168, %s169
      %p181 = scmp.eq.s32.totalorder %s33, 1
      %p182 = por %p180, %p181
      %p184 = scmp.ne.s32.totalorder %s169, %s183
      %p185 = scmp.eq.s32.totalorder %s33, 0
      %p186 = por %p184, %p185
      %s188 = sadd.s32 %s187, 1
      %p191 = scmp.eq.s32.totalorder %s27, 1
      %p192 = scmp.ne.s32.totalorder %s187, %s189
      %p193 = scmp.eq.s32.totalorder %s27, 0
      %p194 = por %p192, %p193
      %p195 = scmp.ne.s32.totalorder %s187, %s189
      %p196 = scmp.eq.s32.totalorder %s32, 1
      %p197 = por %p195, %p196
      %p198 = scmp.ne.s32.totalorder %s189, %s190
      %p199 = scmp.eq.s32.totalorder %s32, 0
      %p200 = por %p198, %p199
      %p201 = scmp.ne.s32.totalorder %s189, %s190
      %p202 = scmp.eq.s32.totalorder %s33, 1
      %p203 = por %p201, %p202
      %p205 = scmp.ne.s32.totalorder %s190, %s204
      %p206 = scmp.eq.s32.totalorder %s33, 0
      %p207 = por %p205, %p206
      %s209 = sadd.s32 %s208, 1
      %p212 = scmp.eq.s32.totalorder %s27, 1
      %p213 = scmp.ne.s32.totalorder %s208, %s210
      %p214 = scmp.eq.s32.totalorder %s27, 0
      %p215 = por %p213, %p214
      %p216 = scmp.ne.s32.totalorder %s208, %s210
      %p217 = scmp.eq.s32.totalorder %s32, 1
      %p218 = por %p216, %p217
      %p219 = scmp.ne.s32.totalorder %s210, %s211
      %p220 = scmp.eq.s32.totalorder %s32, 0
      %p221 = por %p219, %p220
      %p222 = scmp.ne.s32.totalorder %s210, %s211
      %p223 = scmp.eq.s32.totalorder %s33, 1
      %p224 = por %p222, %p223
      %p226 = scmp.ne.s32.totalorder %s211, %s225
      %p227 = scmp.eq.s32.totalorder %s33, 0
      %p228 = por %p226, %p227
      %s230 = sadd.s32 %s229, 1
      %p233 = scmp.eq.s32.totalorder %s27, 1
      %p234 = scmp.ne.s32.totalorder %s229, %s231
      %p235 = scmp.eq.s32.totalorder %s27, 0
      %p236 = por %p234, %p235
      %p237 = scmp.ne.s32.totalorder %s229, %s231
      %p238 = scmp.eq.s32.totalorder %s32, 1
      %p239 = por %p237, %p238
      %p240 = scmp.ne.s32.totalorder %s231, %s232
      %p241 = scmp.eq.s32.totalorder %s32, 0
      %p242 = por %p240, %p241
      %p243 = scmp.ne.s32.totalorder %s231, %s232
      %p244 = scmp.eq.s32.totalorder %s33, 1
      %p245 = por %p243, %p244
      %p247 = scmp.ne.s32.totalorder %s232, %s246
      %p248 = scmp.eq.s32.totalorder %s33, 0
      %p249 = por %p247, %p248
      %s251 = sadd.s32 %s250, 1
      %p254 = scmp.eq.s32.totalorder %s27, 1
      %p255 = scmp.ne.s32.totalorder %s250, %s252
      %p256 = scmp.eq.s32.totalorder %s27, 0
      %p257 = por %p255, %p256
      %p258 = scmp.ne.s32.totalorder %s250, %s252
      %p259 = scmp.eq.s32.totalorder %s32, 1
      %p260 = por %p258, %p259
      %p261 = scmp.ne.s32.totalorder %s252, %s253
      %p262 = scmp.eq.s32.totalorder %s32, 0
      %p263 = por %p261, %p262
      %p264 = scmp.ne.s32.totalorder %s252, %s253
      %p265 = scmp.eq.s32.totalorder %s33, 1
      %p266 = por %p264, %p265
      %p268 = scmp.ne.s32.totalorder %s253, %s267
      %p269 = scmp.eq.s32.totalorder %s33, 0
      %p270 = por %p268, %p269
      %s272 = sadd.s32 %s271, 1
      %p275 = scmp.eq.s32.totalorder %s27, 1
      %p276 = scmp.ne.s32.totalorder %s271, %s273
      %p277 = scmp.eq.s32.totalorder %s27, 0
      %p278 = por %p276, %p277
      %p279 = scmp.ne.s32.totalorder %s271, %s273
      %p280 = scmp.eq.s32.totalorder %s32, 1
      %p281 = por %p279, %p280
      %p282 = scmp.ne.s32.totalorder %s273, %s274
      %p283 = scmp.eq.s32.totalorder %s32, 0
      %p284 = por %p282, %p283
      %p285 = scmp.ne.s32.totalorder %s273, %s274
      %p286 = scmp.eq.s32.totalorder %s33, 1
      %p287 = por %p285, %p286
      %p289 = scmp.ne.s32.totalorder %s274, %s288
      %p290 = scmp.eq.s32.totalorder %s33, 0
      %p291 = por %p289, %p290
      %s293 = sadd.s32 %s292, 1
      %p296 = scmp.eq.s32.totalorder %s27, 1
      %p297 = scmp.ne.s32.totalorder %s292, %s294
      %p298 = scmp.eq.s32.totalorder %s27, 0
      %p299 = por %p297, %p298
      %p300 = scmp.ne.s32.totalorder %s292, %s294
      %p301 = scmp.eq.s32.totalorder %s32, 1
      %p302 = por %p300, %p301
      %p303 = scmp.ne.s32.totalorder %s294, %s295
      %p304 = scmp.eq.s32.totalorder %s32, 0
      %p305 = por %p303, %p304
      %p306 = scmp.ne.s32.totalorder %s294, %s295
      %p307 = scmp.eq.s32.totalorder %s33, 1
      %p308 = por %p306, %p307
      %p310 = scmp.ne.s32.totalorder %s295, %s309
      %p311 = scmp.eq.s32.totalorder %s33, 0
      %p312 = por %p310, %p311
      %s313 = ssub.s32 %s27, %s34
      %p314 = scmp.eq.s32.totalorder %s313, 0
      %s316 = sadd.s32 %s315, 1
      %s317 = scalar_select %p314, %s315, %s316
      %p320 = pneg %p314
      %p321 = scmp.eq.s32.totalorder %s27, 1
      %p322 = por %p320, %p321
      %p323 = scmp.ne.s32.totalorder %s315, %s318
      %p324 = scmp.eq.s32.totalorder %s27, 0
      %p325 = por %p323, %p324
      %p326 = scmp.ne.s32.totalorder %s315, %s318
      %p327 = scmp.eq.s32.totalorder %s32, 1
      %p328 = por %p326, %p327
      %p329 = scmp.ne.s32.totalorder %s318, %s319
      %p330 = scmp.eq.s32.totalorder %s32, 0
      %p331 = por %p329, %p330
      %p332 = scmp.ne.s32.totalorder %s318, %s319
      %p333 = scmp.eq.s32.totalorder %s33, 1
      %p334 = por %p332, %p333
      %p336 = scmp.ne.s32.totalorder %s319, %s335
      %p337 = scmp.eq.s32.totalorder %s33, 0
      %p338 = por %p336, %p337
      %p339 = scmp.le.s32.totalorder 1, %s27
      %p340 = scmp.lt.s32.totalorder %s27, 3
      %p341 = pnand %p339, %p340
      %p342 = pneg %p341
      // Predicated region
      $region9: #{tpu_custom_call.1} parent=5 // pred_check
        _
      $region10: #{tpu_custom_call.1} parent=5 // pred_check_branch
        %344 = sbr.rel (%p341) target = $region12
      $region11: #{tpu_custom_call.1} parent=5 // pred_region
        %s345 = ssub.s32 %s27, 1
        // Predicated region
        $region13: #{tpu_custom_call.1} parent=11 // pred_check
          %p346 = pneg %p74
        $region14: #{tpu_custom_call.1} parent=11 // pred_check_branch
          %348 = sbr.rel (%p346) target = $region16
        $region15: #{tpu_custom_call.1} parent=11 // pred_region
          %s350 = ssub.s32 24576, 24576
          %351 = vsyncadd [#allocation8], %s350
          %s352 = sshll.u32 [#allocation7], 4
          %s353 = int_to_ptr.vmem [resolvable:$true] %s352
          %358 = dma.hbm_to_vmem [thread:$0]  %s1, 24576, %s353, [#allocation8], 768, 768, 48
        $region16: #{tpu_custom_call.1} parent=11 // pred_fallthru
          _
        // Predicated region
        $region17: #{tpu_custom_call.1} parent=11 // pred_check
          %p359 = pneg %p95
        $region18: #{tpu_custom_call.1} parent=11 // pred_check_branch
          %361 = sbr.rel (%p359) target = $region20
        $region19: #{tpu_custom_call.1} parent=11 // pred_region
          _
        $region20: #{tpu_custom_call.1} parent=11 // pred_fallthru
          _
        // Predicated region
        $region21: #{tpu_custom_call.1} parent=11 // pred_check
          %p362 = pneg %p116
        $region22: #{tpu_custom_call.1} parent=11 // pred_check_branch
          %364 = sbr.rel (%p362) target = $region24
        $region23: #{tpu_custom_call.1} parent=11 // pred_region
          %s366 = ssub.s32 8192, 8192
          %367 = vsyncadd [#allocation8], %s366
          %s368 = sshll.u32 [#allocation9], 4
          %s369 = int_to_ptr.vmem [resolvable:$true] %s368
          %374 = dma.hbm_to_vmem [thread:$0]  %s3, 8192, %s369, [#allocation8], 256, 256, 16
        $region24: #{tpu_custom_call.1} parent=11 // pred_fallthru
          _
        // Predicated region
        $region25: #{tpu_custom_call.1} parent=11 // pred_check
          %p375 = pneg %p137
        $region26: #{tpu_custom_call.1} parent=11 // pred_check_branch
          %377 = sbr.rel (%p375) target = $region28
        $region27: #{tpu_custom_call.1} parent=11 // pred_region
          _
        $region28: #{tpu_custom_call.1} parent=11 // pred_fallthru
          _
        // Predicated region
        $region29: #{tpu_custom_call.1} parent=11 // pred_check
          %p378 = pneg %p158
        $region30: #{tpu_custom_call.1} parent=11 // pred_check_branch
          %380 = sbr.rel (%p378) target = $region32
        $region31: #{tpu_custom_call.1} parent=11 // pred_region
          _
        $region32: #{tpu_custom_call.1} parent=11 // pred_fallthru
          _
        // Predicated region
        $region33: #{tpu_custom_call.1} parent=11 // pred_check
          %p381 = pneg %p179
        $region34: #{tpu_custom_call.1} parent=11 // pred_check_branch
          %383 = sbr.rel (%p381) target = $region36
        $region35: #{tpu_custom_call.1} parent=11 // pred_region
          _
        $region36: #{tpu_custom_call.1} parent=11 // pred_fallthru
          _
        // Predicated region
        $region37: #{tpu_custom_call.1} parent=11 // pred_check
          %p384 = pneg %p200
        $region38: #{tpu_custom_call.1} parent=11 // pred_check_branch
          %386 = sbr.rel (%p384) target = $region40
        $region39: #{tpu_custom_call.1} parent=11 // pred_region
          %s388 = ssub.s32 16384, 16384
          %389 = vsyncadd [#allocation11], %s388
          %s390 = sshll.u32 [#allocation10], 4
          %s391 = int_to_ptr.vmem [resolvable:$true] %s390
          %396 = dma.hbm_to_vmem [thread:$0]  %s7, 16384, %s391, [#allocation11], 512, 512, 32
        $region40: #{tpu_custom_call.1} parent=11 // pred_fallthru
          _
        // Predicated region
        $region41: #{tpu_custom_call.1} parent=11 // pred_check
          %p397 = pneg %p221
        $region42: #{tpu_custom_call.1} parent=11 // pred_check_branch
          %399 = sbr.rel (%p397) target = $region44
        $region43: #{tpu_custom_call.1} parent=11 // pred_region
          _
        $region44: #{tpu_custom_call.1} parent=11 // pred_fallthru
          _
        // Predicated region
        $region45: #{tpu_custom_call.1} parent=11 // pred_check
          %p400 = pneg %p242
        $region46: #{tpu_custom_call.1} parent=11 // pred_check_branch
          %402 = sbr.rel (%p400) target = $region48
        $region47: #{tpu_custom_call.1} parent=11 // pred_region
          %s404 = ssub.s32 16384, 16384
          %405 = vsyncadd [#allocation11], %s404
          %s406 = sshll.u32 [#allocation12], 4
          %s407 = int_to_ptr.vmem [resolvable:$true] %s406
          %412 = dma.hbm_to_vmem [thread:$0]  %s9, 16384, %s407, [#allocation11], 256, 256, 16
        $region48: #{tpu_custom_call.1} parent=11 // pred_fallthru
          _
        // Predicated region
        $region49: #{tpu_custom_call.1} parent=11 // pred_check
          %p413 = pneg %p263
        $region50: #{tpu_custom_call.1} parent=11 // pred_check_branch
          %415 = sbr.rel (%p413) target = $region52
        $region51: #{tpu_custom_call.1} parent=11 // pred_region
          _
        $region52: #{tpu_custom_call.1} parent=11 // pred_fallthru
          _
        // Predicated region
        $region53: #{tpu_custom_call.1} parent=11 // pred_check
          %p416 = pneg %p284
        $region54: #{tpu_custom_call.1} parent=11 // pred_check_branch
          %418 = sbr.rel (%p416) target = $region56
        $region55: #{tpu_custom_call.1} parent=11 // pred_region
          _
        $region56: #{tpu_custom_call.1} parent=11 // pred_fallthru
          _
        // Predicated region
        $region57: #{tpu_custom_call.1} parent=11 // pred_check
          %p419 = pneg %p305
        $region58: #{tpu_custom_call.1} parent=11 // pred_check_branch
          %421 = sbr.rel (%p419) target = $region60
        $region59: #{tpu_custom_call.1} parent=11 // pred_region
          _
        $region60: #{tpu_custom_call.1} parent=11 // pred_fallthru
          _
      $region12: #{tpu_custom_call.1} parent=5 // pred_fallthru
        _
      %p422 = scmp.lt.s32.totalorder %s27, 2
      // Predicated region
      $region61: #{tpu_custom_call.1} parent=5 // pred_check
        %p423 = pneg %p422
      $region62: #{tpu_custom_call.1} parent=5 // pred_check_branch
        %425 = sbr.rel (%p423) target = $region64
      $region63: #{tpu_custom_call.1} parent=5 // pred_region
        // Predicated region
        $region65: #{tpu_custom_call.1} parent=63 // pred_check
          %p426 = pneg %p47
        $region66: #{tpu_custom_call.1} parent=63 // pred_check_branch
          %428 = sbr.rel (%p426) target = $region68
        $region67: #{tpu_custom_call.1} parent=63 // pred_region
          %s429 = sand.u32 %s37, 1
          %s430 = scalar_lea.sflag [#allocation5], %s429
          %s431 = sand.u32 %s37, 1
          %s432 = smul.addr %s431, 32
          %s433 = scalar_lea.vmem [#allocation4], %s432
          %s434 = smul.u32 2, %s27
          %s436 = ssub.s32 512, 512
          %437 = vsyncadd %s430, %s436
          %s438 = smul.addr %s434, 2
          %s439 = smul.addr %s438, 128
          %s440 = scalar_lea.hbm %s0, %s439
          %s441 = sshll.u32 %s433, 4
          %s442 = int_to_ptr.vmem [resolvable:$true] %s441
          %447 = dma.hbm_to_vmem [thread:$0]  %s440, 512, %s442, %s430, 256, 256, 16
        $region68: #{tpu_custom_call.1} parent=63 // pred_fallthru
          _
      $region64: #{tpu_custom_call.1} parent=5 // pred_fallthru
        _
      %p448 = scmp.le.s32.totalorder 1, %s27
      %p449 = scmp.lt.s32.totalorder %s27, 3
      %p450 = pnand %p448, %p449
      %p451 = pneg %p450
      // Predicated region
      $region69: #{tpu_custom_call.1} parent=5 // pred_check
        _
      $region70: #{tpu_custom_call.1} parent=5 // pred_check_branch
        %453 = sbr.rel (%p450) target = $region72
      $region71: #{tpu_custom_call.1} parent=5 // pred_region
        %s454 = ssub.s32 %s27, 1
        %s455 = sand.u32 %s40, 1
        %s456 = scalar_lea.sflag [#allocation5], %s455
        %s457 = sand.u32 %s40, 1
        %s458 = smul.addr %s457, 32
        %s459 = scalar_lea.vmem [#allocation4], %s458
        // Predicated region
        $region73: #{tpu_custom_call.1} parent=71 // pred_check
          %p460 = pneg %p53
        $region74: #{tpu_custom_call.1} parent=71 // pred_check_branch
          %462 = sbr.rel (%p460) target = $region76
        $region75: #{tpu_custom_call.1} parent=71 // pred_region
          %463 = dma.done %s456, 512
        $region76: #{tpu_custom_call.1} parent=71 // pred_fallthru
          _
        // Predicated region
        $region77: #{tpu_custom_call.1} parent=71 // pred_check
          %p464 = pneg %p74
        $region78: #{tpu_custom_call.1} parent=71 // pred_check_branch
          %466 = sbr.rel (%p464) target = $region80
        $region79: #{tpu_custom_call.1} parent=71 // pred_region
          %467 = dma.done [#allocation8], 24576
        $region80: #{tpu_custom_call.1} parent=71 // pred_fallthru
          _
        // Predicated region
        $region81: #{tpu_custom_call.1} parent=71 // pred_check
          %p468 = pneg %p116
        $region82: #{tpu_custom_call.1} parent=71 // pred_check_branch
          %470 = sbr.rel (%p468) target = $region84
        $region83: #{tpu_custom_call.1} parent=71 // pred_region
          %471 = dma.done [#allocation8], 8192
        $region84: #{tpu_custom_call.1} parent=71 // pred_fallthru
          _
        // Predicated region
        $region85: #{tpu_custom_call.1} parent=71 // pred_check
          %p472 = pneg %p200
        $region86: #{tpu_custom_call.1} parent=71 // pred_check_branch
          %474 = sbr.rel (%p472) target = $region88
        $region87: #{tpu_custom_call.1} parent=71 // pred_region
          %475 = dma.done [#allocation11], 16384
        $region88: #{tpu_custom_call.1} parent=71 // pred_fallthru
          _
        // Predicated region
        $region89: #{tpu_custom_call.1} parent=71 // pred_check
          %p476 = pneg %p242
        $region90: #{tpu_custom_call.1} parent=71 // pred_check_branch
          %478 = sbr.rel (%p476) target = $region92
        $region91: #{tpu_custom_call.1} parent=71 // pred_region
          %479 = dma.done [#allocation11], 16384
        $region92: #{tpu_custom_call.1} parent=71 // pred_fallthru
          _
        %s480 = sand.u32 %s40, 1
        %s481 = scalar_lea.sflag [#allocation5], %s480
        %s482 = sand.u32 %s40, 1
        %s483 = smul.addr %s482, 32
        %s484 = scalar_lea.vmem [#allocation4], %s483
        %p485 = pneg %p53
        %p486 = pneg %p50
        %p487 = pneg %p74
        %p488 = pneg %p71
        %p489 = pneg %p95
        %p490 = pneg %p92
        %p491 = pneg %p116
        %p492 = pneg %p113
        %p493 = pneg %p137
        %p494 = pneg %p134
        %p495 = pneg %p158
        %p496 = pneg %p155
        %p497 = pneg %p179
        %p498 = pneg %p176
        %p499 = pneg %p200
        %p500 = pneg %p197
        %p501 = pneg %p221
        %p502 = pneg %p218
        %p503 = pneg %p242
        %p504 = pneg %p239
        %p505 = pneg %p263
        %p506 = pneg %p260
        %p507 = pneg %p284
        %p508 = pneg %p281
        %p509 = pneg %p305
        %p510 = pneg %p302
        %p511 = pneg %p331
        %p512 = pneg %p328
        %s513 = sand.u32 %s318, 1
        %s514 = scalar_lea.sflag [#allocation6], %s513
        %s515 = sand.u32 %s318, 1
        %s516 = smul.addr %s515, 32
        %s517 = scalar_lea.vmem [#allocation13], %s516
        %s518 = smul.u32 2, %s32
        %s519 = smul.u32 2, %s32
        %v520 = vld [vmem:[%s459] sm:$0xff]
        %v521 = vld [vmem:[%s459 + $0x8] sm:$0xff]
        %v522 = vld [vmem:[%s459 + $0x10] sm:$0xff]
        %v523 = vld [vmem:[%s459 + $0x18] sm:$0xff]
        %v524 = vld [vmem:[#allocation7] sm:$0xff]
        %v525 = vld [vmem:[#allocation7 + $0x8] sm:$0xff]
        %v526 = vld [vmem:[#allocation7 + $0x10] sm:$0xff]
        %v527 = vld [vmem:[#allocation7 + $0x18] sm:$0xff]
        %v528 = vld [vmem:[#allocation7 + $0x20] sm:$0xff]
        %v529 = vld [vmem:[#allocation7 + $0x28] sm:$0xff]
        %v530 = vld [vmem:[#allocation7 + $0x30] sm:$0xff]
        %v531 = vld [vmem:[#allocation7 + $0x38] sm:$0xff]
        %v532 = vld [vmem:[#allocation7 + $0x40] sm:$0xff]
        %v533 = vld [vmem:[#allocation7 + $0x48] sm:$0xff]
        %v534 = vld [vmem:[#allocation7 + $0x50] sm:$0xff]
        %v535 = vld [vmem:[#allocation7 + $0x58] sm:$0xff]
        %v536 = vld [vmem:[#allocation7 + $0x60] sm:$0xff]
        %v537 = vld [vmem:[#allocation7 + $0x68] sm:$0xff]
        %v538 = vld [vmem:[#allocation7 + $0x70] sm:$0xff]
        %v539 = vld [vmem:[#allocation7 + $0x78] sm:$0xff]
        %v540 = vld [vmem:[#allocation7 + $0x80] sm:$0xff]
        %v541 = vld [vmem:[#allocation7 + $0x88] sm:$0xff]
        %v542 = vld [vmem:[#allocation7 + $0x90] sm:$0xff]
        %v543 = vld [vmem:[#allocation7 + $0x98] sm:$0xff]
        %v544 = vld [vmem:[#allocation7 + $0xa0] sm:$0xff]
        %v545 = vld [vmem:[#allocation7 + $0xa8] sm:$0xff]
        %v546 = vld [vmem:[#allocation7 + $0xb0] sm:$0xff]
        %v547 = vld [vmem:[#allocation7 + $0xb8] sm:$0xff]
        %v548 = vld [vmem:[#allocation7 + $0xc0] sm:$0xff]
        %v549 = vld [vmem:[#allocation7 + $0xc8] sm:$0xff]
        %v550 = vld [vmem:[#allocation7 + $0xd0] sm:$0xff]
        %v551 = vld [vmem:[#allocation7 + $0xd8] sm:$0xff]
        %v552 = vld [vmem:[#allocation7 + $0xe0] sm:$0xff]
        %v553 = vld [vmem:[#allocation7 + $0xe8] sm:$0xff]
        %v554 = vld [vmem:[#allocation7 + $0xf0] sm:$0xff]
        %v555 = vld [vmem:[#allocation7 + $0xf8] sm:$0xff]
        %v556 = vld [vmem:[#allocation7 + $0x100] sm:$0xff]
        %v557 = vld [vmem:[#allocation7 + $0x108] sm:$0xff]
        %v558 = vld [vmem:[#allocation7 + $0x110] sm:$0xff]
        %v559 = vld [vmem:[#allocation7 + $0x118] sm:$0xff]
        %v560 = vld [vmem:[#allocation7 + $0x120] sm:$0xff]
        %v561 = vld [vmem:[#allocation7 + $0x128] sm:$0xff]
        %v562 = vld [vmem:[#allocation7 + $0x130] sm:$0xff]
        %v563 = vld [vmem:[#allocation7 + $0x138] sm:$0xff]
        %v564 = vld [vmem:[#allocation7 + $0x140] sm:$0xff]
        %v565 = vld [vmem:[#allocation7 + $0x148] sm:$0xff]
        %v566 = vld [vmem:[#allocation7 + $0x150] sm:$0xff]
        %v567 = vld [vmem:[#allocation7 + $0x158] sm:$0xff]
        %v568 = vld [vmem:[#allocation7 + $0x160] sm:$0xff]
        %v569 = vld [vmem:[#allocation7 + $0x168] sm:$0xff]
        %v570 = vld [vmem:[#allocation7 + $0x170] sm:$0xff]
        %v571 = vld [vmem:[#allocation7 + $0x178] sm:$0xff]
        %v572 = vld [vmem:[#allocation7 + $0x180] sm:$0xff]
        %v573 = vld [vmem:[#allocation7 + $0x188] sm:$0xff]
        %v574 = vld [vmem:[#allocation7 + $0x190] sm:$0xff]
        %v575 = vld [vmem:[#allocation7 + $0x198] sm:$0xff]
        %v576 = vld [vmem:[#allocation7 + $0x1a0] sm:$0xff]
        %v577 = vld [vmem:[#allocation7 + $0x1a8] sm:$0xff]
        %v578 = vld [vmem:[#allocation7 + $0x1b0] sm:$0xff]
        %v579 = vld [vmem:[#allocation7 + $0x1b8] sm:$0xff]
        %v580 = vld [vmem:[#allocation7 + $0x1c0] sm:$0xff]
        %v581 = vld [vmem:[#allocation7 + $0x1c8] sm:$0xff]
        %v582 = vld [vmem:[#allocation7 + $0x1d0] sm:$0xff]
        %v583 = vld [vmem:[#allocation7 + $0x1d8] sm:$0xff]
        %v584 = vld [vmem:[#allocation7 + $0x1e0] sm:$0xff]
        %v585 = vld [vmem:[#allocation7 + $0x1e8] sm:$0xff]
        %v586 = vld [vmem:[#allocation7 + $0x1f0] sm:$0xff]
        %v587 = vld [vmem:[#allocation7 + $0x1f8] sm:$0xff]
        %v588 = vld [vmem:[#allocation7 + $0x200] sm:$0xff]
        %v589 = vld [vmem:[#allocation7 + $0x208] sm:$0xff]
        %v590 = vld [vmem:[#allocation7 + $0x210] sm:$0xff]
        %v591 = vld [vmem:[#allocation7 + $0x218] sm:$0xff]
        %v592 = vld [vmem:[#allocation7 + $0x220] sm:$0xff]
        %v593 = vld [vmem:[#allocation7 + $0x228] sm:$0xff]
        %v594 = vld [vmem:[#allocation7 + $0x230] sm:$0xff]
        %v595 = vld [vmem:[#allocation7 + $0x238] sm:$0xff]
        %v596 = vld [vmem:[#allocation7 + $0x240] sm:$0xff]
        %v597 = vld [vmem:[#allocation7 + $0x248] sm:$0xff]
        %v598 = vld [vmem:[#allocation7 + $0x250] sm:$0xff]
        %v599 = vld [vmem:[#allocation7 + $0x258] sm:$0xff]
        %v600 = vld [vmem:[#allocation7 + $0x260] sm:$0xff]
        %v601 = vld [vmem:[#allocation7 + $0x268] sm:$0xff]
        %v602 = vld [vmem:[#allocation7 + $0x270] sm:$0xff]
        %v603 = vld [vmem:[#allocation7 + $0x278] sm:$0xff]
        %v604 = vld [vmem:[#allocation7 + $0x280] sm:$0xff]
        %v605 = vld [vmem:[#allocation7 + $0x288] sm:$0xff]
        %v606 = vld [vmem:[#allocation7 + $0x290] sm:$0xff]
        %v607 = vld [vmem:[#allocation7 + $0x298] sm:$0xff]
        %v608 = vld [vmem:[#allocation7 + $0x2a0] sm:$0xff]
        %v609 = vld [vmem:[#allocation7 + $0x2a8] sm:$0xff]
        %v610 = vld [vmem:[#allocation7 + $0x2b0] sm:$0xff]
        %v611 = vld [vmem:[#allocation7 + $0x2b8] sm:$0xff]
        %v612 = vld [vmem:[#allocation7 + $0x2c0] sm:$0xff]
        %v613 = vld [vmem:[#allocation7 + $0x2c8] sm:$0xff]
        %v614 = vld [vmem:[#allocation7 + $0x2d0] sm:$0xff]
        %v615 = vld [vmem:[#allocation7 + $0x2d8] sm:$0xff]
        %v616 = vld [vmem:[#allocation7 + $0x2e0] sm:$0xff]
        %v617 = vld [vmem:[#allocation7 + $0x2e8] sm:$0xff]
        %v618 = vld [vmem:[#allocation7 + $0x2f0] sm:$0xff]
        %v619 = vld [vmem:[#allocation7 + $0x2f8] sm:$0xff]
        %v620 = vld [vmem:[#allocation7 + $0x300] sm:$0xff]
        %v621 = vld [vmem:[#allocation7 + $0x308] sm:$0xff]
        %v622 = vld [vmem:[#allocation7 + $0x310] sm:$0xff]
        %v623 = vld [vmem:[#allocation7 + $0x318] sm:$0xff]
        %v624 = vld [vmem:[#allocation7 + $0x320] sm:$0xff]
        %v625 = vld [vmem:[#allocation7 + $0x328] sm:$0xff]
        %v626 = vld [vmem:[#allocation7 + $0x330] sm:$0xff]
        %v627 = vld [vmem:[#allocation7 + $0x338] sm:$0xff]
        %v628 = vld [vmem:[#allocation7 + $0x340] sm:$0xff]
        %v629 = vld [vmem:[#allocation7 + $0x348] sm:$0xff]
        %v630 = vld [vmem:[#allocation7 + $0x350] sm:$0xff]
        %v631 = vld [vmem:[#allocation7 + $0x358] sm:$0xff]
        %v632 = vld [vmem:[#allocation7 + $0x360] sm:$0xff]
        %v633 = vld [vmem:[#allocation7 + $0x368] sm:$0xff]
        %v634 = vld [vmem:[#allocation7 + $0x370] sm:$0xff]
        %v635 = vld [vmem:[#allocation7 + $0x378] sm:$0xff]
        %v636 = vld [vmem:[#allocation7 + $0x380] sm:$0xff]
        %v637 = vld [vmem:[#allocation7 + $0x388] sm:$0xff]
        %v638 = vld [vmem:[#allocation7 + $0x390] sm:$0xff]
        %v639 = vld [vmem:[#allocation7 + $0x398] sm:$0xff]
        %v640 = vld [vmem:[#allocation7 + $0x3a0] sm:$0xff]
        %v641 = vld [vmem:[#allocation7 + $0x3a8] sm:$0xff]
        %v642 = vld [vmem:[#allocation7 + $0x3b0] sm:$0xff]
        %v643 = vld [vmem:[#allocation7 + $0x3b8] sm:$0xff]
        %v644 = vld [vmem:[#allocation7 + $0x3c0] sm:$0xff]
        %v645 = vld [vmem:[#allocation7 + $0x3c8] sm:$0xff]
        %v646 = vld [vmem:[#allocation7 + $0x3d0] sm:$0xff]
        %v647 = vld [vmem:[#allocation7 + $0x3d8] sm:$0xff]
        %v648 = vld [vmem:[#allocation7 + $0x3e0] sm:$0xff]
        %v649 = vld [vmem:[#allocation7 + $0x3e8] sm:$0xff]
        %v650 = vld [vmem:[#allocation7 + $0x3f0] sm:$0xff]
        %v651 = vld [vmem:[#allocation7 + $0x3f8] sm:$0xff]
        %v652 = vld [vmem:[#allocation7 + $0x400] sm:$0xff]
        %v653 = vld [vmem:[#allocation7 + $0x408] sm:$0xff]
        %v654 = vld [vmem:[#allocation7 + $0x410] sm:$0xff]
        %v655 = vld [vmem:[#allocation7 + $0x418] sm:$0xff]
        %v656 = vld [vmem:[#allocation7 + $0x420] sm:$0xff]
        %v657 = vld [vmem:[#allocation7 + $0x428] sm:$0xff]
        %v658 = vld [vmem:[#allocation7 + $0x430] sm:$0xff]
        %v659 = vld [vmem:[#allocation7 + $0x438] sm:$0xff]
        %v660 = vld [vmem:[#allocation7 + $0x440] sm:$0xff]
        %v661 = vld [vmem:[#allocation7 + $0x448] sm:$0xff]
        %v662 = vld [vmem:[#allocation7 + $0x450] sm:$0xff]
        %v663 = vld [vmem:[#allocation7 + $0x458] sm:$0xff]
        %v664 = vld [vmem:[#allocation7 + $0x460] sm:$0xff]
        %v665 = vld [vmem:[#allocation7 + $0x468] sm:$0xff]
        %v666 = vld [vmem:[#allocation7 + $0x470] sm:$0xff]
        %v667 = vld [vmem:[#allocation7 + $0x478] sm:$0xff]
        %v668 = vld [vmem:[#allocation7 + $0x480] sm:$0xff]
        %v669 = vld [vmem:[#allocation7 + $0x488] sm:$0xff]
        %v670 = vld [vmem:[#allocation7 + $0x490] sm:$0xff]
        %v671 = vld [vmem:[#allocation7 + $0x498] sm:$0xff]
        %v672 = vld [vmem:[#allocation7 + $0x4a0] sm:$0xff]
        %v673 = vld [vmem:[#allocation7 + $0x4a8] sm:$0xff]
        %v674 = vld [vmem:[#allocation7 + $0x4b0] sm:$0xff]
        %v675 = vld [vmem:[#allocation7 + $0x4b8] sm:$0xff]
        %v676 = vld [vmem:[#allocation7 + $0x4c0] sm:$0xff]
        %v677 = vld [vmem:[#allocation7 + $0x4c8] sm:$0xff]
        %v678 = vld [vmem:[#allocation7 + $0x4d0] sm:$0xff]
        %v679 = vld [vmem:[#allocation7 + $0x4d8] sm:$0xff]
        %v680 = vld [vmem:[#allocation7 + $0x4e0] sm:$0xff]
        %v681 = vld [vmem:[#allocation7 + $0x4e8] sm:$0xff]
        %v682 = vld [vmem:[#allocation7 + $0x4f0] sm:$0xff]
        %v683 = vld [vmem:[#allocation7 + $0x4f8] sm:$0xff]
        %v684 = vld [vmem:[#allocation7 + $0x500] sm:$0xff]
        %v685 = vld [vmem:[#allocation7 + $0x508] sm:$0xff]
        %v686 = vld [vmem:[#allocation7 + $0x510] sm:$0xff]
        %v687 = vld [vmem:[#allocation7 + $0x518] sm:$0xff]
        %v688 = vld [vmem:[#allocation7 + $0x520] sm:$0xff]
        %v689 = vld [vmem:[#allocation7 + $0x528] sm:$0xff]
        %v690 = vld [vmem:[#allocation7 + $0x530] sm:$0xff]
        %v691 = vld [vmem:[#allocation7 + $0x538] sm:$0xff]
        %v692 = vld [vmem:[#allocation7 + $0x540] sm:$0xff]
        %v693 = vld [vmem:[#allocation7 + $0x548] sm:$0xff]
        %v694 = vld [vmem:[#allocation7 + $0x550] sm:$0xff]
        %v695 = vld [vmem:[#allocation7 + $0x558] sm:$0xff]
        %v696 = vld [vmem:[#allocation7 + $0x560] sm:$0xff]
        %v697 = vld [vmem:[#allocation7 + $0x568] sm:$0xff]
        %v698 = vld [vmem:[#allocation7 + $0x570] sm:$0xff]
        %v699 = vld [vmem:[#allocation7 + $0x578] sm:$0xff]
        %v700 = vld [vmem:[#allocation7 + $0x580] sm:$0xff]
        %v701 = vld [vmem:[#allocation7 + $0x588] sm:$0xff]
        %v702 = vld [vmem:[#allocation7 + $0x590] sm:$0xff]
        %v703 = vld [vmem:[#allocation7 + $0x598] sm:$0xff]
        %v704 = vld [vmem:[#allocation7 + $0x5a0] sm:$0xff]
        %v705 = vld [vmem:[#allocation7 + $0x5a8] sm:$0xff]
        %v706 = vld [vmem:[#allocation7 + $0x5b0] sm:$0xff]
        %v707 = vld [vmem:[#allocation7 + $0x5b8] sm:$0xff]
        %v708 = vld [vmem:[#allocation7 + $0x5c0] sm:$0xff]
        %v709 = vld [vmem:[#allocation7 + $0x5c8] sm:$0xff]
        %v710 = vld [vmem:[#allocation7 + $0x5d0] sm:$0xff]
        %v711 = vld [vmem:[#allocation7 + $0x5d8] sm:$0xff]
        %v712 = vld [vmem:[#allocation7 + $0x5e0] sm:$0xff]
        %v713 = vld [vmem:[#allocation7 + $0x5e8] sm:$0xff]
        %v714 = vld [vmem:[#allocation7 + $0x5f0] sm:$0xff]
        %v715 = vld [vmem:[#allocation7 + $0x5f8] sm:$0xff]
        %v716 = vld [vmem:[%s2] sm:$0x3f]
        %v718 = vlaneseq
        %v719 = vshrl.u32 %v718, 7
        %v720 = vsub.s32 0, %v719
        %v721 = vrot.slane %v716, %v720
        %v722 = vlaneseq
        %v723 = vshrl.u32 %v722, 7
        %v724 = vsub.s32 1, %v723
        %v725 = vrot.slane %v716, %v724
        %v726 = vlaneseq
        %v727 = vshrl.u32 %v726, 7
        %v728 = vsub.s32 2, %v727
        %v729 = vrot.slane %v716, %v728
        %v730 = vlaneseq
        %v731 = vshrl.u32 %v730, 7
        %v732 = vsub.s32 3, %v731
        %v733 = vrot.slane %v716, %v732
        %v734 = vlaneseq
        %v735 = vshrl.u32 %v734, 7
        %v736 = vsub.s32 4, %v735
        %v737 = vrot.slane %v716, %v736
        %v738 = vlaneseq
        %v739 = vshrl.u32 %v738, 7
        %v740 = vsub.s32 5, %v739
        %v741 = vrot.slane %v716, %v740
        %748 = vmatprep.subr.mxu0 %v525
        %749 = vmatpush1.msra.mxu0 %v524
        %750 = vmatprep.subr.mxu0 %v531
        %751 = vmatpush1.msra.mxu0 %v530
        %752 = vmatprep.subr.mxu0 %v537
        %753 = vmatpush1.msra.mxu0 %v536
        %754 = vmatprep.subr.mxu0 %v543
        %755 = vmatpush1.msra.mxu0 %v542
        %756 = vmatprep.subr.mxu0 %v549
        %757 = vmatpush1.msra.mxu0 %v548
        %758 = vmatprep.subr.mxu0 %v555
        %759 = vmatpush1.msra.mxu0 %v554
        %760 = vmatprep.subr.mxu0 %v561
        %761 = vmatpush1.msra.mxu0 %v560
        %762 = vmatprep.subr.mxu0 %v567
        %763 = vmatpush1.msra.mxu0 %v566
        %764 = vmatprep.subr.mxu0 %v573
        %765 = vmatpush1.msra.mxu0 %v572
        %766 = vmatprep.subr.mxu0 %v579
        %767 = vmatpush1.msra.mxu0 %v578
        %768 = vmatprep.subr.mxu0 %v585
        %769 = vmatpush1.msra.mxu0 %v584
        %770 = vmatprep.subr.mxu0 %v591
        %771 = vmatpush1.msra.mxu0 %v590
        %772 = vmatprep.subr.mxu0 %v597
        %773 = vmatpush1.msra.mxu0 %v596
        %774 = vmatprep.subr.mxu0 %v603
        %775 = vmatpush1.msra.mxu0 %v602
        %776 = vmatprep.subr.mxu0 %v609
        %777 = vmatpush1.msra.mxu0 %v608
        %778 = vmatprep.subr.mxu0 %v615
        %779 = vmatpush1.msra.mxu0 %v614
        %780 = vmatprep.subr.mxu0 %v621
        %781 = vmatpush1.msra.mxu0 %v620
        %782 = vmatprep.subr.mxu0 %v627
        %783 = vmatpush1.msra.mxu0 %v626
        %784 = vmatprep.subr.mxu0 %v633
        %785 = vmatpush1.msra.mxu0 %v632
        %786 = vmatprep.subr.mxu0 %v639
        %787 = vmatpush1.msra.mxu0 %v638
        %788 = vmatprep.subr.mxu0 %v645
        %789 = vmatpush1.msra.mxu0 %v644
        %790 = vmatprep.subr.mxu0 %v651
        %791 = vmatpush1.msra.mxu0 %v650
        %792 = vmatprep.subr.mxu0 %v657
        %793 = vmatpush1.msra.mxu0 %v656
        %794 = vmatprep.subr.mxu0 %v663
        %795 = vmatpush1.msra.mxu0 %v662
        %796 = vmatprep.subr.mxu0 %v669
        %797 = vmatpush1.msra.mxu0 %v668
        %798 = vmatprep.subr.mxu0 %v675
        %799 = vmatpush1.msra.mxu0 %v674
        %800 = vmatprep.subr.mxu0 %v681
        %801 = vmatpush1.msra.mxu0 %v680
        %802 = vmatprep.subr.mxu0 %v687
        %803 = vmatpush1.msra.mxu0 %v686
        %804 = vmatprep.subr.mxu0 %v693
        %805 = vmatpush1.msra.mxu0 %v692
        %806 = vmatprep.subr.mxu0 %v699
        %807 = vmatpush1.msra.mxu0 %v698
        %808 = vmatprep.subr.mxu0 %v705
        %809 = vmatpush1.msra.mxu0 %v704
        %810 = vmatprep.subr.mxu0 %v711
        %811 = vmatpush1.msra.mxu0 %v710
        %812 = vmatprep.mubr.f32.mxu0 %v521
        %813 = vmatmul.mubr.f32.gmra.mrb[0].mxu0 %v520
        %v814 = vpop.f32.mrb[0].mxu0
        %v815 = vadd.f32 %v721, %v814
        %v816 = vpop.f32.mrb[0].mxu0
        %v817 = vadd.f32 %v725, %v816
        %818 = vmatprep.mubr.f32.mxu0 %v523
        %819 = vmatmul.mubr.f32.gmra.mrb[0].mxu0 %v522
        %v820 = vpop.f32.mrb[0].mxu0
        %v821 = vadd.f32 %v721, %v820
        %v822 = vpop.f32.mrb[0].mxu0
        %v823 = vadd.f32 %v725, %v822
        %824 = vdwg.mxu0
        %825 = vmatprep.subr.mxu0 %v527
        %826 = vmatpush1.msra.mxu0 %v526
        %827 = vmatprep.subr.mxu0 %v533
        %828 = vmatpush1.msra.mxu0 %v532
        %829 = vmatprep.subr.mxu0 %v539
        %830 = vmatpush1.msra.mxu0 %v538
        %831 = vmatprep.subr.mxu0 %v545
        %832 = vmatpush1.msra.mxu0 %v544
        %833 = vmatprep.subr.mxu0 %v551
        %834 = vmatpush1.msra.mxu0 %v550
        %835 = vmatprep.subr.mxu0 %v557
        %836 = vmatpush1.msra.mxu0 %v556
        %837 = vmatprep.subr.mxu0 %v563
        %838 = vmatpush1.msra.mxu0 %v562
        %839 = vmatprep.subr.mxu0 %v569
        %840 = vmatpush1.msra.mxu0 %v568
        %841 = vmatprep.subr.mxu0 %v575
        %842 = vmatpush1.msra.mxu0 %v574
        %843 = vmatprep.subr.mxu0 %v581
        %844 = vmatpush1.msra.mxu0 %v580
        %845 = vmatprep.subr.mxu0 %v587
        %846 = vmatpush1.msra.mxu0 %v586
        %847 = vmatprep.subr.mxu0 %v593
        %848 = vmatpush1.msra.mxu0 %v592
        %849 = vmatprep.subr.mxu0 %v599
        %850 = vmatpush1.msra.mxu0 %v598
        %851 = vmatprep.subr.mxu0 %v605
        %852 = vmatpush1.msra.mxu0 %v604
        %853 = vmatprep.subr.mxu0 %v611
        %854 = vmatpush1.msra.mxu0 %v610
        %855 = vmatprep.subr.mxu0 %v617
        %856 = vmatpush1.msra.mxu0 %v616
        %857 = vmatprep.subr.mxu0 %v623
        %858 = vmatpush1.msra.mxu0 %v622
        %859 = vmatprep.subr.mxu0 %v629
        %860 = vmatpush1.msra.mxu0 %v628
        %861 = vmatprep.subr.mxu0 %v635
        %862 = vmatpush1.msra.mxu0 %v634
        %863 = vmatprep.subr.mxu0 %v641
        %864 = vmatpush1.msra.mxu0 %v640
        %865 = vmatprep.subr.mxu0 %v647
        %866 = vmatpush1.msra.mxu0 %v646
        %867 = vmatprep.subr.mxu0 %v653
        %868 = vmatpush1.msra.mxu0 %v652
        %869 = vmatprep.subr.mxu0 %v659
        %870 = vmatpush1.msra.mxu0 %v658
        %871 = vmatprep.subr.mxu0 %v665
        %872 = vmatpush1.msra.mxu0 %v664
        %873 = vmatprep.subr.mxu0 %v671
        %874 = vmatpush1.msra.mxu0 %v670
        %875 = vmatprep.subr.mxu0 %v677
        %876 = vmatpush1.msra.mxu0 %v676
        %877 = vmatprep.subr.mxu0 %v683
        %878 = vmatpush1.msra.mxu0 %v682
        %879 = vmatprep.subr.mxu0 %v689
        %880 = vmatpush1.msra.mxu0 %v688
        %881 = vmatprep.subr.mxu0 %v695
        %882 = vmatpush1.msra.mxu0 %v694
        %883 = vmatprep.subr.mxu0 %v701
        %884 = vmatpush1.msra.mxu0 %v700
        %885 = vmatprep.subr.mxu0 %v707
        %886 = vmatpush1.msra.mxu0 %v706
        %887 = vmatprep.subr.mxu0 %v713
        %888 = vmatpush1.msra.mxu0 %v712
        %889 = vmatprep.mubr.f32.mxu0 %v521
        %890 = vmatmul.mubr.f32.gmra.mrb[0].mxu0 %v520
        %v891 = vpop.f32.mrb[0].mxu0
        %v892 = vadd.f32 %v729, %v891
        %v893 = vpop.f32.mrb[0].mxu0
        %v894 = vadd.f32 %v733, %v893
        %895 = vmatprep.mubr.f32.mxu0 %v523
        %896 = vmatmul.mubr.f32.gmra.mrb[0].mxu0 %v522
        %v897 = vpop.f32.mrb[0].mxu0
        %v898 = vadd.f32 %v729, %v897
        %v899 = vpop.f32.mrb[0].mxu0
        %v900 = vadd.f32 %v733, %v899
        %901 = vdwg.mxu0
        %902 = vmatprep.subr.mxu0 %v529
        %903 = vmatpush1.msra.mxu0 %v528
        %904 = vmatprep.subr.mxu0 %v535
        %905 = vmatpush1.msra.mxu0 %v534
        %906 = vmatprep.subr.mxu0 %v541
        %907 = vmatpush1.msra.mxu0 %v540
        %908 = vmatprep.subr.mxu0 %v547
        %909 = vmatpush1.msra.mxu0 %v546
        %910 = vmatprep.subr.mxu0 %v553
        %911 = vmatpush1.msra.mxu0 %v552
        %912 = vmatprep.subr.mxu0 %v559
        %913 = vmatpush1.msra.mxu0 %v558
        %914 = vmatprep.subr.mxu0 %v565
        %915 = vmatpush1.msra.mxu0 %v564
        %916 = vmatprep.subr.mxu0 %v571
        %917 = vmatpush1.msra.mxu0 %v570
        %918 = vmatprep.subr.mxu0 %v577
        %919 = vmatpush1.msra.mxu0 %v576
        %920 = vmatprep.subr.mxu0 %v583
        %921 = vmatpush1.msra.mxu0 %v582
        %922 = vmatprep.subr.mxu0 %v589
        %923 = vmatpush1.msra.mxu0 %v588
        %924 = vmatprep.subr.mxu0 %v595
        %925 = vmatpush1.msra.mxu0 %v594
        %926 = vmatprep.subr.mxu0 %v601
        %927 = vmatpush1.msra.mxu0 %v600
        %928 = vmatprep.subr.mxu0 %v607
        %929 = vmatpush1.msra.mxu0 %v606
        %930 = vmatprep.subr.mxu0 %v613
        %931 = vmatpush1.msra.mxu0 %v612
        %932 = vmatprep.subr.mxu0 %v619
        %933 = vmatpush1.msra.mxu0 %v618
        %934 = vmatprep.subr.mxu0 %v625
        %935 = vmatpush1.msra.mxu0 %v624
        %936 = vmatprep.subr.mxu0 %v631
        %937 = vmatpush1.msra.mxu0 %v630
        %938 = vmatprep.subr.mxu0 %v637
        %939 = vmatpush1.msra.mxu0 %v636
        %940 = vmatprep.subr.mxu0 %v643
        %941 = vmatpush1.msra.mxu0 %v642
        %942 = vmatprep.subr.mxu0 %v649
        %943 = vmatpush1.msra.mxu0 %v648
        %944 = vmatprep.subr.mxu0 %v655
        %945 = vmatpush1.msra.mxu0 %v654
        %946 = vmatprep.subr.mxu0 %v661
        %947 = vmatpush1.msra.mxu0 %v660
        %948 = vmatprep.subr.mxu0 %v667
        %949 = vmatpush1.msra.mxu0 %v666
        %950 = vmatprep.subr.mxu0 %v673
        %951 = vmatpush1.msra.mxu0 %v672
        %952 = vmatprep.subr.mxu0 %v679
        %953 = vmatpush1.msra.mxu0 %v678
        %954 = vmatprep.subr.mxu0 %v685
        %955 = vmatpush1.msra.mxu0 %v684
        %956 = vmatprep.subr.mxu0 %v691
        %957 = vmatpush1.msra.mxu0 %v690
        %958 = vmatprep.subr.mxu0 %v697
        %959 = vmatpush1.msra.mxu0 %v696
        %960 = vmatprep.subr.mxu0 %v703
        %961 = vmatpush1.msra.mxu0 %v702
        %962 = vmatprep.subr.mxu0 %v709
        %963 = vmatpush1.msra.mxu0 %v708
        %964 = vmatprep.subr.mxu0 %v715
        %965 = vmatpush1.msra.mxu0 %v714
        %966 = vmatprep.mubr.f32.mxu0 %v521
        %967 = vmatmul.mubr.f32.gmra.mrb[0].mxu0 %v520
        %v968 = vpop.f32.mrb[0].mxu0
        %v969 = vadd.f32 %v737, %v968
        %v970 = vpop.f32.mrb[0].mxu0
        %v971 = vadd.f32 %v741, %v970
        %972 = vmatprep.mubr.f32.mxu0 %v523
        %973 = vmatmul.mubr.f32.gmra.mrb[0].mxu0 %v522
        %v974 = vpop.f32.mrb[0].mxu0
        %v975 = vadd.f32 %v737, %v974
        %v976 = vpop.f32.mrb[0].mxu0
        %v977 = vadd.f32 %v741, %v976
        %978 = vdwg.mxu0
        %979 = vst [vmem:[#allocation2] sm:$0xff] %v815
        %980 = vst [vmem:[#allocation2 + $0x8] sm:$0xff] %v817
        %981 = vst [vmem:[#allocation2 + $0x10] sm:$0xff] %v892
        %982 = vst [vmem:[#allocation2 + $0x18] sm:$0xff] %v894
        %983 = vst [vmem:[#allocation2 + $0x20] sm:$0xff] %v969
        %984 = vst [vmem:[#allocation2 + $0x28] sm:$0xff] %v971
        %985 = vst [vmem:[#allocation2 + $0x30] sm:$0xff] %v821
        %986 = vst [vmem:[#allocation2 + $0x38] sm:$0xff] %v823
        %987 = vst [vmem:[#allocation2 + $0x40] sm:$0xff] %v898
        %988 = vst [vmem:[#allocation2 + $0x48] sm:$0xff] %v900
        %989 = vst [vmem:[#allocation2 + $0x50] sm:$0xff] %v975
        %990 = vst [vmem:[#allocation2 + $0x58] sm:$0xff] %v977
        %v991 = vld [vmem:[#allocation2] sm:$0xff]
        %v992 = vld [vmem:[#allocation2 + $0x30] sm:$0xff]
        %v993 = vld [vmem:[#allocation2 + $0x8] sm:$0xff]
        %v994 = vld [vmem:[#allocation2 + $0x38] sm:$0xff]
        %997 = vrot.lane.b32.xlu0 %v991, 112
        %v998 = vpop.permute.xlu0 %997
        %999 = vrot.lane.b32.xlu0 %v992, 112
        %v1000 = vpop.permute.xlu0 %999
        %1001 = vrot.lane.b32.xlu0 %v991, 96
        %v1002 = vpop.permute.xlu0 %1001
        %1003 = vrot.lane.b32.xlu0 %v992, 96
        %v1004 = vpop.permute.xlu0 %1003
        %1005 = vrot.lane.b32.xlu0 %v991, 80
        %v1006 = vpop.permute.xlu0 %1005
        %1007 = vrot.lane.b32.xlu0 %v992, 80
        %v1008 = vpop.permute.xlu0 %1007
        %1009 = vrot.lane.b32.xlu0 %v991, 64
        %v1010 = vpop.permute.xlu0 %1009
        %1011 = vrot.lane.b32.xlu0 %v992, 64
        %v1012 = vpop.permute.xlu0 %1011
        %1013 = vrot.lane.b32.xlu0 %v991, 48
        %v1014 = vpop.permute.xlu0 %1013
        %1015 = vrot.lane.b32.xlu0 %v992, 48
        %v1016 = vpop.permute.xlu0 %1015
        %1017 = vrot.lane.b32.xlu0 %v991, 32
        %v1018 = vpop.permute.xlu0 %1017
        %1019 = vrot.lane.b32.xlu0 %v992, 32
        %v1020 = vpop.permute.xlu0 %1019
        %1021 = vrot.lane.b32.xlu0 %v991, 16
        %v1022 = vpop.permute.xlu0 %1021
        %1023 = vrot.lane.b32.xlu0 %v992, 16
        %v1024 = vpop.permute.xlu0 %1023
        %1027 = vrot.lane.b32.xlu0 %v993, 112
        %v1028 = vpop.permute.xlu0 %1027
        %1029 = vrot.lane.b32.xlu0 %v994, 112
        %v1030 = vpop.permute.xlu0 %1029
        %1031 = vrot.lane.b32.xlu0 %v993, 96
        %v1032 = vpop.permute.xlu0 %1031
        %1033 = vrot.lane.b32.xlu0 %v994, 96
        %v1034 = vpop.permute.xlu0 %1033
        %1035 = vrot.lane.b32.xlu0 %v993, 80
        %v1036 = vpop.permute.xlu0 %1035
        %1037 = vrot.lane.b32.xlu0 %v994, 80
        %v1038 = vpop.permute.xlu0 %1037
        %1039 = vrot.lane.b32.xlu0 %v993, 64
        %v1040 = vpop.permute.xlu0 %1039
        %1041 = vrot.lane.b32.xlu0 %v994, 64
        %v1042 = vpop.permute.xlu0 %1041
        %1043 = vrot.lane.b32.xlu0 %v993, 48
        %v1044 = vpop.permute.xlu0 %1043
        %1045 = vrot.lane.b32.xlu0 %v994, 48
        %v1046 = vpop.permute.xlu0 %1045
        %1047 = vrot.lane.b32.xlu0 %v993, 32
        %v1048 = vpop.permute.xlu0 %1047
        %1049 = vrot.lane.b32.xlu0 %v994, 32
        %v1050 = vpop.permute.xlu0 %1049
        %1051 = vrot.lane.b32.xlu0 %v993, 16
        %v1052 = vpop.permute.xlu0 %1051
        %1053 = vrot.lane.b32.xlu0 %v994, 16
        %v1054 = vpop.permute.xlu0 %1053
        %v1055 = vld [vmem:[#allocation2 + $0x10] sm:$0xff]
        %v1056 = vld [vmem:[#allocation2 + $0x40] sm:$0xff]
        %v1057 = vld [vmem:[#allocation2 + $0x18] sm:$0xff]
        %v1058 = vld [vmem:[#allocation2 + $0x48] sm:$0xff]
        %1061 = vrot.lane.b32.xlu0 %v1055, 112
        %v1062 = vpop.permute.xlu0 %1061
        %1063 = vrot.lane.b32.xlu0 %v1056, 112
        %v1064 = vpop.permute.xlu0 %1063
        %1065 = vrot.lane.b32.xlu0 %v1055, 96
        %v1066 = vpop.permute.xlu0 %1065
        %1067 = vrot.lane.b32.xlu0 %v1056, 96
        %v1068 = vpop.permute.xlu0 %1067
        %1069 = vrot.lane.b32.xlu0 %v1055, 80
        %v1070 = vpop.permute.xlu0 %1069
        %1071 = vrot.lane.b32.xlu0 %v1056, 80
        %v1072 = vpop.permute.xlu0 %1071
        %1073 = vrot.lane.b32.xlu0 %v1055, 64
        %v1074 = vpop.permute.xlu0 %1073
        %1075 = vrot.lane.b32.xlu0 %v1056, 64
        %v1076 = vpop.permute.xlu0 %1075
        %1077 = vrot.lane.b32.xlu0 %v1055, 48
        %v1078 = vpop.permute.xlu0 %1077
        %1079 = vrot.lane.b32.xlu0 %v1056, 48
        %v1080 = vpop.permute.xlu0 %1079
        %1081 = vrot.lane.b32.xlu0 %v1055, 32
        %v1082 = vpop.permute.xlu0 %1081
        %1083 = vrot.lane.b32.xlu0 %v1056, 32
        %v1084 = vpop.permute.xlu0 %1083
        %1085 = vrot.lane.b32.xlu0 %v1055, 16
        %v1086 = vpop.permute.xlu0 %1085
        %1087 = vrot.lane.b32.xlu0 %v1056, 16
        %v1088 = vpop.permute.xlu0 %1087
        %1091 = vrot.lane.b32.xlu0 %v1057, 112
        %v1092 = vpop.permute.xlu0 %1091
        %1093 = vrot.lane.b32.xlu0 %v1058, 112
        %v1094 = vpop.permute.xlu0 %1093
        %1095 = vrot.lane.b32.xlu0 %v1057, 96
        %v1096 = vpop.permute.xlu0 %1095
        %1097 = vrot.lane.b32.xlu0 %v1058, 96
        %v1098 = vpop.permute.xlu0 %1097
        %1099 = vrot.lane.b32.xlu0 %v1057, 80
        %v1100 = vpop.permute.xlu0 %1099
        %1101 = vrot.lane.b32.xlu0 %v1058, 80
        %v1102 = vpop.permute.xlu0 %1101
        %1103 = vrot.lane.b32.xlu0 %v1057, 64
        %v1104 = vpop.permute.xlu0 %1103
        %1105 = vrot.lane.b32.xlu0 %v1058, 64
        %v1106 = vpop.permute.xlu0 %1105
        %1107 = vrot.lane.b32.xlu0 %v1057, 48
        %v1108 = vpop.permute.xlu0 %1107
        %1109 = vrot.lane.b32.xlu0 %v1058, 48
        %v1110 = vpop.permute.xlu0 %1109
        %1111 = vrot.lane.b32.xlu0 %v1057, 32
        %v1112 = vpop.permute.xlu0 %1111
        %1113 = vrot.lane.b32.xlu0 %v1058, 32
        %v1114 = vpop.permute.xlu0 %1113
        %1115 = vrot.lane.b32.xlu0 %v1057, 16
        %v1116 = vpop.permute.xlu0 %1115
        %1117 = vrot.lane.b32.xlu0 %v1058, 16
        %v1118 = vpop.permute.xlu0 %1117
        %v1119 = vld [vmem:[#allocation2 + $0x20] sm:$0xff]
        %v1120 = vld [vmem:[#allocation2 + $0x50] sm:$0xff]
        %v1121 = vld [vmem:[#allocation2 + $0x28] sm:$0xff]
        %v1122 = vld [vmem:[#allocation2 + $0x58] sm:$0xff]
        %1125 = vrot.lane.b32.xlu0 %v1119, 112
        %v1126 = vpop.permute.xlu0 %1125
        %1127 = vrot.lane.b32.xlu0 %v1120, 112
        %v1128 = vpop.permute.xlu0 %1127
        %1131 = vrot.lane.b32.xlu0 %v1119, 96
        %v1132 = vpop.permute.xlu0 %1131
        %1133 = vrot.lane.b32.xlu0 %v1120, 96
        %v1134 = vpop.permute.xlu0 %1133
        %1137 = vrot.lane.b32.xlu0 %v1119, 80
        %v1138 = vpop.permute.xlu0 %1137
        %1139 = vrot.lane.b32.xlu0 %v1120, 80
        %v1140 = vpop.permute.xlu0 %1139
        %1143 = vrot.lane.b32.xlu0 %v1119, 64
        %v1144 = vpop.permute.xlu0 %1143
        %1145 = vrot.lane.b32.xlu0 %v1120, 64
        %v1146 = vpop.permute.xlu0 %1145
        %1149 = vrot.lane.b32.xlu0 %v1119, 48
        %v1150 = vpop.permute.xlu0 %1149
        %1151 = vrot.lane.b32.xlu0 %v1120, 48
        %v1152 = vpop.permute.xlu0 %1151
        %1155 = vrot.lane.b32.xlu0 %v1119, 32
        %v1156 = vpop.permute.xlu0 %1155
        %1157 = vrot.lane.b32.xlu0 %v1120, 32
        %v1158 = vpop.permute.xlu0 %1157
        %1161 = vrot.lane.b32.xlu0 %v1119, 16
        %v1162 = vpop.permute.xlu0 %1161
        %1163 = vrot.lane.b32.xlu0 %v1120, 16
        %v1164 = vpop.permute.xlu0 %1163
        %1169 = vrot.lane.b32.xlu0 %v1121, 112
        %v1170 = vpop.permute.xlu0 %1169
        %1171 = vrot.lane.b32.xlu0 %v1122, 112
        %v1172 = vpop.permute.xlu0 %1171
        %1175 = vrot.lane.b32.xlu0 %v1121, 96
        %v1176 = vpop.permute.xlu0 %1175
        %1177 = vrot.lane.b32.xlu0 %v1122, 96
        %v1178 = vpop.permute.xlu0 %1177
        %1181 = vrot.lane.b32.xlu0 %v1121, 80
        %v1182 = vpop.permute.xlu0 %1181
        %1183 = vrot.lane.b32.xlu0 %v1122, 80
        %v1184 = vpop.permute.xlu0 %1183
        %1187 = vrot.lane.b32.xlu0 %v1121, 64
        %v1188 = vpop.permute.xlu0 %1187
        %1189 = vrot.lane.b32.xlu0 %v1122, 64
        %v1190 = vpop.permute.xlu0 %1189
        %1193 = vrot.lane.b32.xlu0 %v1121, 48
        %v1194 = vpop.permute.xlu0 %1193
        %1195 = vrot.lane.b32.xlu0 %v1122, 48
        %v1196 = vpop.permute.xlu0 %1195
        %1199 = vrot.lane.b32.xlu0 %v1121, 32
        %v1200 = vpop.permute.xlu0 %1199
        %1201 = vrot.lane.b32.xlu0 %v1122, 32
        %v1202 = vpop.permute.xlu0 %1201
        %1205 = vrot.lane.b32.xlu0 %v1121, 16
        %v1206 = vpop.permute.xlu0 %1205
        %1207 = vrot.lane.b32.xlu0 %v1122, 16
        %v1208 = vpop.permute.xlu0 %1207
        %vm1211 = vcmask 130048
        %v1212 = vsel %vm1211, %v991, 0
        %v1214 = vsel %vm1211, %v992, 0
        %v1216 = vsel %vm1211, %v1055, 0
        %v1218 = vsel %vm1211, %v1056, 0
        %1220 = vmatprep.subr.mxu0 0.0
        %1221 = vmatpush1.xpose.msra.mxu0 %v1216
        %1222 = vmatprep.subr.mxu0 0.0
        %1223 = vmatpush1.xpose.msra.mxu0 %v1218
        %1224 = vmatprep.subr.mxu0 0.0
        %1225 = vmatpush1.xpose.msra.mxu0 0.0
        %1226 = vmatprep.subr.mxu0 0.0
        %1227 = vmatpush1.xpose.msra.mxu0 0.0
        %1228 = vmatprep.subr.mxu0 0.0
        %1229 = vmatpush1.xpose.msra.mxu0 0.0
        %1230 = vmatprep.subr.mxu0 0.0
        %1231 = vmatpush1.xpose.msra.mxu0 0.0
        %1232 = vmatprep.subr.mxu0 0.0
        %1233 = vmatpush1.xpose.msra.mxu0 0.0
        %1234 = vmatprep.subr.mxu0 0.0
        %1235 = vmatpush1.xpose.msra.mxu0 0.0
        %1236 = vmatprep.subr.mxu0 0.0
        %1237 = vmatpush1.xpose.msra.mxu0 0.0
        %1238 = vmatprep.subr.mxu0 0.0
        %1239 = vmatpush1.xpose.msra.mxu0 0.0
        %1240 = vmatprep.subr.mxu0 0.0
        %1241 = vmatpush1.xpose.msra.mxu0 0.0
        %1242 = vmatprep.subr.mxu0 0.0
        %1243 = vmatpush1.xpose.msra.mxu0 0.0
        %1244 = vmatprep.subr.mxu0 0.0
        %1245 = vmatpush1.xpose.msra.mxu0 0.0
        %1246 = vmatprep.subr.mxu0 0.0
        %1247 = vmatpush1.xpose.msra.mxu0 0.0
        %1248 = vmatprep.subr.mxu0 0.0
        %1249 = vmatpush1.xpose.msra.mxu0 0.0
        %1250 = vmatprep.subr.mxu0 0.0
        %1251 = vmatpush1.xpose.msra.mxu0 0.0
        %1252 = vmatprep.subr.mxu0 0.0
        %1253 = vmatpush1.xpose.msra.mxu0 0.0
        %1254 = vmatprep.subr.mxu0 0.0
        %1255 = vmatpush1.xpose.msra.mxu0 0.0
        %1256 = vmatprep.subr.mxu0 0.0
        %1257 = vmatpush1.xpose.msra.mxu0 0.0
        %1258 = vmatprep.subr.mxu0 0.0
        %1259 = vmatpush1.xpose.msra.mxu0 0.0
        %1260 = vmatprep.subr.mxu0 0.0
        %1261 = vmatpush1.xpose.msra.mxu0 0.0
        %1262 = vmatprep.subr.mxu0 0.0
        %1263 = vmatpush1.xpose.msra.mxu0 0.0
        %1264 = vmatprep.subr.mxu0 0.0
        %1265 = vmatpush1.xpose.msra.mxu0 0.0
        %1266 = vmatprep.subr.mxu0 0.0
        %1267 = vmatpush1.xpose.msra.mxu0 0.0
        %1268 = vmatprep.subr.mxu0 0.0
        %1269 = vmatpush1.xpose.msra.mxu0 0.0
        %1270 = vmatprep.subr.mxu0 0.0
        %1271 = vmatpush1.xpose.msra.mxu0 0.0
        %1272 = vmatprep.subr.mxu0 0.0
        %1273 = vmatpush1.xpose.msra.mxu0 0.0
        %1274 = vmatprep.subr.mxu0 0.0
        %1275 = vmatpush1.xpose.msra.mxu0 0.0
        %1276 = vmatprep.subr.mxu0 0.0
        %1277 = vmatpush1.xpose.msra.mxu0 0.0
        %1278 = vmatprep.subr.mxu0 0.0
        %1279 = vmatpush1.xpose.msra.mxu0 0.0
        %1280 = vmatprep.subr.mxu0 0.0
        %1281 = vmatpush1.xpose.msra.mxu0 0.0
        %1282 = vmatprep.subr.mxu0 0.0
        %1283 = vmatpush1.xpose.msra.mxu0 0.0
        %1284 = vmatprep.mubr.f32.mxu0 0.0
        %1285 = vmatmul.mubr.f32.gmra.mrb[0].mxu0 %v1212
        %v1286 = vpop.f32.mrb[0].mxu0
        %v1287 = vadd.f32 0.0, %v1286
        %v1288 = vpop.f32.mrb[0].mxu0
        %1289 = vmatprep.mubr.f32.mxu0 0.0
        %1290 = vmatmul.mubr.f32.gmra.mrb[0].mxu0 %v1214
        %v1291 = vpop.f32.mrb[0].mxu0
        %v1292 = vadd.f32 0.0, %v1291
        %v1293 = vpop.f32.mrb[0].mxu0
        %1294 = vdwg.mxu0
        %v1295 = vsel %vm1211, %v998, 0
        %v1297 = vsel %vm1211, %v1000, 0
        %v1299 = vsel %vm1211, %v1062, 0
        %v1301 = vsel %vm1211, %v1064, 0
        %1303 = vmatprep.subr.mxu0 0.0
        %1304 = vmatpush1.xpose.msra.mxu0 %v1299
        %1305 = vmatprep.subr.mxu0 0.0
        %1306 = vmatpush1.xpose.msra.mxu0 %v1301
        %1307 = vmatprep.subr.mxu0 0.0
        %1308 = vmatpush1.xpose.msra.mxu0 0.0
        %1309 = vmatprep.subr.mxu0 0.0
        %1310 = vmatpush1.xpose.msra.mxu0 0.0
        %1311 = vmatprep.subr.mxu0 0.0
        %1312 = vmatpush1.xpose.msra.mxu0 0.0
        %1313 = vmatprep.subr.mxu0 0.0
        %1314 = vmatpush1.xpose.msra.mxu0 0.0
        %1315 = vmatprep.subr.mxu0 0.0
        %1316 = vmatpush1.xpose.msra.mxu0 0.0
        %1317 = vmatprep.subr.mxu0 0.0
        %1318 = vmatpush1.xpose.msra.mxu0 0.0
        %1319 = vmatprep.subr.mxu0 0.0
        %1320 = vmatpush1.xpose.msra.mxu0 0.0
        %1321 = vmatprep.subr.mxu0 0.0
        %1322 = vmatpush1.xpose.msra.mxu0 0.0
        %1323 = vmatprep.subr.mxu0 0.0
        %1324 = vmatpush1.xpose.msra.mxu0 0.0
        %1325 = vmatprep.subr.mxu0 0.0
        %1326 = vmatpush1.xpose.msra.mxu0 0.0
        %1327 = vmatprep.subr.mxu0 0.0
        %1328 = vmatpush1.xpose.msra.mxu0 0.0
        %1329 = vmatprep.subr.mxu0 0.0
        %1330 = vmatpush1.xpose.msra.mxu0 0.0
        %1331 = vmatprep.subr.mxu0 0.0
        %1332 = vmatpush1.xpose.msra.mxu0 0.0
        %1333 = vmatprep.subr.mxu0 0.0
        %1334 = vmatpush1.xpose.msra.mxu0 0.0
        %1335 = vmatprep.subr.mxu0 0.0
        %1336 = vmatpush1.xpose.msra.mxu0 0.0
        %1337 = vmatprep.subr.mxu0 0.0
        %1338 = vmatpush1.xpose.msra.mxu0 0.0
        %1339 = vmatprep.subr.mxu0 0.0
        %1340 = vmatpush1.xpose.msra.mxu0 0.0
        %1341 = vmatprep.subr.mxu0 0.0
        %1342 = vmatpush1.xpose.msra.mxu0 0.0
        %1343 = vmatprep.subr.mxu0 0.0
        %1344 = vmatpush1.xpose.msra.mxu0 0.0
        %1345 = vmatprep.subr.mxu0 0.0
        %1346 = vmatpush1.xpose.msra.mxu0 0.0
        %1347 = vmatprep.subr.mxu0 0.0
        %1348 = vmatpush1.xpose.msra.mxu0 0.0
        %1349 = vmatprep.subr.mxu0 0.0
        %1350 = vmatpush1.xpose.msra.mxu0 0.0
        %1351 = vmatprep.subr.mxu0 0.0
        %1352 = vmatpush1.xpose.msra.mxu0 0.0
        %1353 = vmatprep.subr.mxu0 0.0
        %1354 = vmatpush1.xpose.msra.mxu0 0.0
        %1355 = vmatprep.subr.mxu0 0.0
        %1356 = vmatpush1.xpose.msra.mxu0 0.0
        %1357 = vmatprep.subr.mxu0 0.0
        %1358 = vmatpush1.xpose.msra.mxu0 0.0
        %1359 = vmatprep.subr.mxu0 0.0
        %1360 = vmatpush1.xpose.msra.mxu0 0.0
        %1361 = vmatprep.subr.mxu0 0.0
        %1362 = vmatpush1.xpose.msra.mxu0 0.0
        %1363 = vmatprep.subr.mxu0 0.0
        %1364 = vmatpush1.xpose.msra.mxu0 0.0
        %1365 = vmatprep.subr.mxu0 0.0
        %1366 = vmatpush1.xpose.msra.mxu0 0.0
        %1367 = vmatprep.mubr.f32.mxu0 0.0
        %1368 = vmatmul.mubr.f32.gmra.mrb[0].mxu0 %v1295
        %v1369 = vpop.f32.mrb[0].mxu0
        %v1370 = vadd.f32 0.0, %v1369
        %v1371 = vpop.f32.mrb[0].mxu0
        %1372 = vmatprep.mubr.f32.mxu0 0.0
        %1373 = vmatmul.mubr.f32.gmra.mrb[0].mxu0 %v1297
        %v1374 = vpop.f32.mrb[0].mxu0
        %v1375 = vadd.f32 0.0, %v1374
        %v1376 = vpop.f32.mrb[0].mxu0
        %1377 = vdwg.mxu0
        %v1378 = vsel %vm1211, %v1002, 0
        %v1380 = vsel %vm1211, %v1004, 0
        %v1382 = vsel %vm1211, %v1066, 0
        %v1384 = vsel %vm1211, %v1068, 0
        %1386 = vmatprep.subr.mxu0 0.0
        %1387 = vmatpush1.xpose.msra.mxu0 %v1382
        %1388 = vmatprep.subr.mxu0 0.0
        %1389 = vmatpush1.xpose.msra.mxu0 %v1384
        %1390 = vmatprep.subr.mxu0 0.0
        %1391 = vmatpush1.xpose.msra.mxu0 0.0
        %1392 = vmatprep.subr.mxu0 0.0
        %1393 = vmatpush1.xpose.msra.mxu0 0.0
        %1394 = vmatprep.subr.mxu0 0.0
        %1395 = vmatpush1.xpose.msra.mxu0 0.0
        %1396 = vmatprep.subr.mxu0 0.0
        %1397 = vmatpush1.xpose.msra.mxu0 0.0
        %1398 = vmatprep.subr.mxu0 0.0
        %1399 = vmatpush1.xpose.msra.mxu0 0.0
        %1400 = vmatprep.subr.mxu0 0.0
        %1401 = vmatpush1.xpose.msra.mxu0 0.0
        %1402 = vmatprep.subr.mxu0 0.0
        %1403 = vmatpush1.xpose.msra.mxu0 0.0
        %1404 = vmatprep.subr.mxu0 0.0
        %1405 = vmatpush1.xpose.msra.mxu0 0.0
        %1406 = vmatprep.subr.mxu0 0.0
        %1407 = vmatpush1.xpose.msra.mxu0 0.0
        %1408 = vmatprep.subr.mxu0 0.0
        %1409 = vmatpush1.xpose.msra.mxu0 0.0
        %1410 = vmatprep.subr.mxu0 0.0
        %1411 = vmatpush1.xpose.msra.mxu0 0.0
        %1412 = vmatprep.subr.mxu0 0.0
        %1413 = vmatpush1.xpose.msra.mxu0 0.0
        %1414 = vmatprep.subr.mxu0 0.0
        %1415 = vmatpush1.xpose.msra.mxu0 0.0
        %1416 = vmatprep.subr.mxu0 0.0
        %1417 = vmatpush1.xpose.msra.mxu0 0.0
        %1418 = vmatprep.subr.mxu0 0.0
        %1419 = vmatpush1.xpose.msra.mxu0 0.0
        %1420 = vmatprep.subr.mxu0 0.0
        %1421 = vmatpush1.xpose.msra.mxu0 0.0
        %1422 = vmatprep.subr.mxu0 0.0
        %1423 = vmatpush1.xpose.msra.mxu0 0.0
        %1424 = vmatprep.subr.mxu0 0.0
        %1425 = vmatpush1.xpose.msra.mxu0 0.0
        %1426 = vmatprep.subr.mxu0 0.0
        %1427 = vmatpush1.xpose.msra.mxu0 0.0
        %1428 = vmatprep.subr.mxu0 0.0
        %1429 = vmatpush1.xpose.msra.mxu0 0.0
        %1430 = vmatprep.subr.mxu0 0.0
        %1431 = vmatpush1.xpose.msra.mxu0 0.0
        %1432 = vmatprep.subr.mxu0 0.0
        %1433 = vmatpush1.xpose.msra.mxu0 0.0
        %1434 = vmatprep.subr.mxu0 0.0
        %1435 = vmatpush1.xpose.msra.mxu0 0.0
        %1436 = vmatprep.subr.mxu0 0.0
        %1437 = vmatpush1.xpose.msra.mxu0 0.0
        %1438 = vmatprep.subr.mxu0 0.0
        %1439 = vmatpush1.xpose.msra.mxu0 0.0
        %1440 = vmatprep.subr.mxu0 0.0
        %1441 = vmatpush1.xpose.msra.mxu0 0.0
        %1442 = vmatprep.subr.mxu0 0.0
        %1443 = vmatpush1.xpose.msra.mxu0 0.0
        %1444 = vmatprep.subr.mxu0 0.0
        %1445 = vmatpush1.xpose.msra.mxu0 0.0
        %1446 = vmatprep.subr.mxu0 0.0
        %1447 = vmatpush1.xpose.msra.mxu0 0.0
        %1448 = vmatprep.subr.mxu0 0.0
        %1449 = vmatpush1.xpose.msra.mxu0 0.0
        %1450 = vmatprep.mubr.f32.mxu0 0.0
        %1451 = vmatmul.mubr.f32.gmra.mrb[0].mxu0 %v1378
        %v1452 = vpop.f32.mrb[0].mxu0
        %v1453 = vadd.f32 0.0, %v1452
        %v1454 = vpop.f32.mrb[0].mxu0
        %1455 = vmatprep.mubr.f32.mxu0 0.0
        %1456 = vmatmul.mubr.f32.gmra.mrb[0].mxu0 %v1380
        %v1457 = vpop.f32.mrb[0].mxu0
        %v1458 = vadd.f32 0.0, %v1457
        %v1459 = vpop.f32.mrb[0].mxu0
        %1460 = vdwg.mxu0
        %v1461 = vsel %vm1211, %v1006, 0
        %v1463 = vsel %vm1211, %v1008, 0
        %v1465 = vsel %vm1211, %v1070, 0
        %v1467 = vsel %vm1211, %v1072, 0
        %1469 = vmatprep.subr.mxu0 0.0
        %1470 = vmatpush1.xpose.msra.mxu0 %v1465
        %1471 = vmatprep.subr.mxu0 0.0
        %1472 = vmatpush1.xpose.msra.mxu0 %v1467
        %1473 = vmatprep.subr.mxu0 0.0
        %1474 = vmatpush1.xpose.msra.mxu0 0.0
        %1475 = vmatprep.subr.mxu0 0.0
        %1476 = vmatpush1.xpose.msra.mxu0 0.0
        %1477 = vmatprep.subr.mxu0 0.0
        %1478 = vmatpush1.xpose.msra.mxu0 0.0
        %1479 = vmatprep.subr.mxu0 0.0
        %1480 = vmatpush1.xpose.msra.mxu0 0.0
        %1481 = vmatprep.subr.mxu0 0.0
        %1482 = vmatpush1.xpose.msra.mxu0 0.0
        %1483 = vmatprep.subr.mxu0 0.0
        %1484 = vmatpush1.xpose.msra.mxu0 0.0
        %1485 = vmatprep.subr.mxu0 0.0
        %1486 = vmatpush1.xpose.msra.mxu0 0.0
        %1487 = vmatprep.subr.mxu0 0.0
        %1488 = vmatpush1.xpose.msra.mxu0 0.0
        %1489 = vmatprep.subr.mxu0 0.0
        %1490 = vmatpush1.xpose.msra.mxu0 0.0
        %1491 = vmatprep.subr.mxu0 0.0
        %1492 = vmatpush1.xpose.msra.mxu0 0.0
        %1493 = vmatprep.subr.mxu0 0.0
        %1494 = vmatpush1.xpose.msra.mxu0 0.0
        %1495 = vmatprep.subr.mxu0 0.0
        %1496 = vmatpush1.xpose.msra.mxu0 0.0
        %1497 = vmatprep.subr.mxu0 0.0
        %1498 = vmatpush1.xpose.msra.mxu0 0.0
        %1499 = vmatprep.subr.mxu0 0.0
        %1500 = vmatpush1.xpose.msra.mxu0 0.0
        %1501 = vmatprep.subr.mxu0 0.0
        %1502 = vmatpush1.xpose.msra.mxu0 0.0
        %1503 = vmatprep.subr.mxu0 0.0
        %1504 = vmatpush1.xpose.msra.mxu0 0.0
        %1505 = vmatprep.subr.mxu0 0.0
        %1506 = vmatpush1.xpose.msra.mxu0 0.0
        %1507 = vmatprep.subr.mxu0 0.0
        %1508 = vmatpush1.xpose.msra.mxu0 0.0
        %1509 = vmatprep.subr.mxu0 0.0
        %1510 = vmatpush1.xpose.msra.mxu0 0.0
        %1511 = vmatprep.subr.mxu0 0.0
        %1512 = vmatpush1.xpose.msra.mxu0 0.0
        %1513 = vmatprep.subr.mxu0 0.0
        %1514 = vmatpush1.xpose.msra.mxu0 0.0
        %1515 = vmatprep.subr.mxu0 0.0
        %1516 = vmatpush1.xpose.msra.mxu0 0.0
        %1517 = vmatprep.subr.mxu0 0.0
        %1518 = vmatpush1.xpose.msra.mxu0 0.0
        %1519 = vmatprep.subr.mxu0 0.0
        %1520 = vmatpush1.xpose.msra.mxu0 0.0
        %1521 = vmatprep.subr.mxu0 0.0
        %1522 = vmatpush1.xpose.msra.mxu0 0.0
        %1523 = vmatprep.subr.mxu0 0.0
        %1524 = vmatpush1.xpose.msra.mxu0 0.0
        %1525 = vmatprep.subr.mxu0 0.0
        %1526 = vmatpush1.xpose.msra.mxu0 0.0
        %1527 = vmatprep.subr.mxu0 0.0
        %1528 = vmatpush1.xpose.msra.mxu0 0.0
        %1529 = vmatprep.subr.mxu0 0.0
        %1530 = vmatpush1.xpose.msra.mxu0 0.0
        %1531 = vmatprep.subr.mxu0 0.0
        %1532 = vmatpush1.xpose.msra.mxu0 0.0
        %1533 = vmatprep.mubr.f32.mxu0 0.0
        %1534 = vmatmul.mubr.f32.gmra.mrb[0].mxu0 %v1461
        %v1535 = vpop.f32.mrb[0].mxu0
        %v1536 = vadd.f32 0.0, %v1535
        %v1537 = vpop.f32.mrb[0].mxu0
        %1538 = vmatprep.mubr.f32.mxu0 0.0
        %1539 = vmatmul.mubr.f32.gmra.mrb[0].mxu0 %v1463
        %v1540 = vpop.f32.mrb[0].mxu0
        %v1541 = vadd.f32 0.0, %v1540
        %v1542 = vpop.f32.mrb[0].mxu0
        %1543 = vdwg.mxu0
        %v1544 = vsel %vm1211, %v1010, 0
        %v1546 = vsel %vm1211, %v1012, 0
        %v1548 = vsel %vm1211, %v1074, 0
        %v1550 = vsel %vm1211, %v1076, 0
        %1552 = vmatprep.subr.mxu0 0.0
        %1553 = vmatpush1.xpose.msra.mxu0 %v1548
        %1554 = vmatprep.subr.mxu0 0.0
        %1555 = vmatpush1.xpose.msra.mxu0 %v1550
        %1556 = vmatprep.subr.mxu0 0.0
        %1557 = vmatpush1.xpose.msra.mxu0 0.0
        %1558 = vmatprep.subr.mxu0 0.0
        %1559 = vmatpush1.xpose.msra.mxu0 0.0
        %1560 = vmatprep.subr.mxu0 0.0
        %1561 = vmatpush1.xpose.msra.mxu0 0.0
        %1562 = vmatprep.subr.mxu0 0.0
        %1563 = vmatpush1.xpose.msra.mxu0 0.0
        %1564 = vmatprep.subr.mxu0 0.0
        %1565 = vmatpush1.xpose.msra.mxu0 0.0
        %1566 = vmatprep.subr.mxu0 0.0
        %1567 = vmatpush1.xpose.msra.mxu0 0.0
        %1568 = vmatprep.subr.mxu0 0.0
        %1569 = vmatpush1.xpose.msra.mxu0 0.0
        %1570 = vmatprep.subr.mxu0 0.0
        %1571 = vmatpush1.xpose.msra.mxu0 0.0
        %1572 = vmatprep.subr.mxu0 0.0
        %1573 = vmatpush1.xpose.msra.mxu0 0.0
        %1574 = vmatprep.subr.mxu0 0.0
        %1575 = vmatpush1.xpose.msra.mxu0 0.0
        %1576 = vmatprep.subr.mxu0 0.0
        %1577 = vmatpush1.xpose.msra.mxu0 0.0
        %1578 = vmatprep.subr.mxu0 0.0
        %1579 = vmatpush1.xpose.msra.mxu0 0.0
        %1580 = vmatprep.subr.mxu0 0.0
        %1581 = vmatpush1.xpose.msra.mxu0 0.0
        %1582 = vmatprep.subr.mxu0 0.0
        %1583 = vmatpush1.xpose.msra.mxu0 0.0
        %1584 = vmatprep.subr.mxu0 0.0
        %1585 = vmatpush1.xpose.msra.mxu0 0.0
        %1586 = vmatprep.subr.mxu0 0.0
        %1587 = vmatpush1.xpose.msra.mxu0 0.0
        %1588 = vmatprep.subr.mxu0 0.0
        %1589 = vmatpush1.xpose.msra.mxu0 0.0
        %1590 = vmatprep.subr.mxu0 0.0
        %1591 = vmatpush1.xpose.msra.mxu0 0.0
        %1592 = vmatprep.subr.mxu0 0.0
        %1593 = vmatpush1.xpose.msra.mxu0 0.0
        %1594 = vmatprep.subr.mxu0 0.0
        %1595 = vmatpush1.xpose.msra.mxu0 0.0
        %1596 = vmatprep.subr.mxu0 0.0
        %1597 = vmatpush1.xpose.msra.mxu0 0.0
        %1598 = vmatprep.subr.mxu0 0.0
        %1599 = vmatpush1.xpose.msra.mxu0 0.0
        %1600 = vmatprep.subr.mxu0 0.0
        %1601 = vmatpush1.xpose.msra.mxu0 0.0
        %1602 = vmatprep.subr.mxu0 0.0
        %1603 = vmatpush1.xpose.msra.mxu0 0.0
        %1604 = vmatprep.subr.mxu0 0.0
        %1605 = vmatpush1.xpose.msra.mxu0 0.0
        %1606 = vmatprep.subr.mxu0 0.0
        %1607 = vmatpush1.xpose.msra.mxu0 0.0
        %1608 = vmatprep.subr.mxu0 0.0
        %1609 = vmatpush1.xpose.msra.mxu0 0.0
        %1610 = vmatprep.subr.mxu0 0.0
        %1611 = vmatpush1.xpose.msra.mxu0 0.0
        %1612 = vmatprep.subr.mxu0 0.0
        %1613 = vmatpush1.xpose.msra.mxu0 0.0
        %1614 = vmatprep.subr.mxu0 0.0
        %1615 = vmatpush1.xpose.msra.mxu0 0.0
        %1616 = vmatprep.mubr.f32.mxu0 0.0
        %1617 = vmatmul.mubr.f32.gmra.mrb[0].mxu0 %v1544
        %v1618 = vpop.f32.mrb[0].mxu0
        %v1619 = vadd.f32 0.0, %v1618
        %v1620 = vpop.f32.mrb[0].mxu0
        %1621 = vmatprep.mubr.f32.mxu0 0.0
        %1622 = vmatmul.mubr.f32.gmra.mrb[0].mxu0 %v1546
        %v1623 = vpop.f32.mrb[0].mxu0
        %v1624 = vadd.f32 0.0, %v1623
        %v1625 = vpop.f32.mrb[0].mxu0
        %1626 = vdwg.mxu0
        %v1627 = vsel %vm1211, %v1014, 0
        %v1629 = vsel %vm1211, %v1016, 0
        %v1631 = vsel %vm1211, %v1078, 0
        %v1633 = vsel %vm1211, %v1080, 0
        %1635 = vmatprep.subr.mxu0 0.0
        %1636 = vmatpush1.xpose.msra.mxu0 %v1631
        %1637 = vmatprep.subr.mxu0 0.0
        %1638 = vmatpush1.xpose.msra.mxu0 %v1633
        %1639 = vmatprep.subr.mxu0 0.0
        %1640 = vmatpush1.xpose.msra.mxu0 0.0
        %1641 = vmatprep.subr.mxu0 0.0
        %1642 = vmatpush1.xpose.msra.mxu0 0.0
        %1643 = vmatprep.subr.mxu0 0.0
        %1644 = vmatpush1.xpose.msra.mxu0 0.0
        %1645 = vmatprep.subr.mxu0 0.0
        %1646 = vmatpush1.xpose.msra.mxu0 0.0
        %1647 = vmatprep.subr.mxu0 0.0
        %1648 = vmatpush1.xpose.msra.mxu0 0.0
        %1649 = vmatprep.subr.mxu0 0.0
        %1650 = vmatpush1.xpose.msra.mxu0 0.0
        %1651 = vmatprep.subr.mxu0 0.0
        %1652 = vmatpush1.xpose.msra.mxu0 0.0
        %1653 = vmatprep.subr.mxu0 0.0
        %1654 = vmatpush1.xpose.msra.mxu0 0.0
        %1655 = vmatprep.subr.mxu0 0.0
        %1656 = vmatpush1.xpose.msra.mxu0 0.0
        %1657 = vmatprep.subr.mxu0 0.0
        %1658 = vmatpush1.xpose.msra.mxu0 0.0
        %1659 = vmatprep.subr.mxu0 0.0
        %1660 = vmatpush1.xpose.msra.mxu0 0.0
        %1661 = vmatprep.subr.mxu0 0.0
        %1662 = vmatpush1.xpose.msra.mxu0 0.0
        %1663 = vmatprep.subr.mxu0 0.0
        %1664 = vmatpush1.xpose.msra.mxu0 0.0
        %1665 = vmatprep.subr.mxu0 0.0
        %1666 = vmatpush1.xpose.msra.mxu0 0.0
        %1667 = vmatprep.subr.mxu0 0.0
        %1668 = vmatpush1.xpose.msra.mxu0 0.0
        %1669 = vmatprep.subr.mxu0 0.0
        %1670 = vmatpush1.xpose.msra.mxu0 0.0
        %1671 = vmatprep.subr.mxu0 0.0
        %1672 = vmatpush1.xpose.msra.mxu0 0.0
        %1673 = vmatprep.subr.mxu0 0.0
        %1674 = vmatpush1.xpose.msra.mxu0 0.0
        %1675 = vmatprep.subr.mxu0 0.0
        %1676 = vmatpush1.xpose.msra.mxu0 0.0
        %1677 = vmatprep.subr.mxu0 0.0
        %1678 = vmatpush1.xpose.msra.mxu0 0.0
        %1679 = vmatprep.subr.mxu0 0.0
        %1680 = vmatpush1.xpose.msra.mxu0 0.0
        %1681 = vmatprep.subr.mxu0 0.0
        %1682 = vmatpush1.xpose.msra.mxu0 0.0
        %1683 = vmatprep.subr.mxu0 0.0
        %1684 = vmatpush1.xpose.msra.mxu0 0.0
        %1685 = vmatprep.subr.mxu0 0.0
        %1686 = vmatpush1.xpose.msra.mxu0 0.0
        %1687 = vmatprep.subr.mxu0 0.0
        %1688 = vmatpush1.xpose.msra.mxu0 0.0
        %1689 = vmatprep.subr.mxu0 0.0
        %1690 = vmatpush1.xpose.msra.mxu0 0.0
        %1691 = vmatprep.subr.mxu0 0.0
        %1692 = vmatpush1.xpose.msra.mxu0 0.0
        %1693 = vmatprep.subr.mxu0 0.0
        %1694 = vmatpush1.xpose.msra.mxu0 0.0
        %1695 = vmatprep.subr.mxu0 0.0
        %1696 = vmatpush1.xpose.msra.mxu0 0.0
        %1697 = vmatprep.subr.mxu0 0.0
        %1698 = vmatpush1.xpose.msra.mxu0 0.0
        %1699 = vmatprep.mubr.f32.mxu0 0.0
        %1700 = vmatmul.mubr.f32.gmra.mrb[0].mxu0 %v1627
        %v1701 = vpop.f32.mrb[0].mxu0
        %v1702 = vadd.f32 0.0, %v1701
        %v1703 = vpop.f32.mrb[0].mxu0
        %1704 = vmatprep.mubr.f32.mxu0 0.0
        %1705 = vmatmul.mubr.f32.gmra.mrb[0].mxu0 %v1629
        %v1706 = vpop.f32.mrb[0].mxu0
        %v1707 = vadd.f32 0.0, %v1706
        %v1708 = vpop.f32.mrb[0].mxu0
        %1709 = vdwg.mxu0
        %v1710 = vsel %vm1211, %v1018, 0
        %v1712 = vsel %vm1211, %v1020, 0
        %v1714 = vsel %vm1211, %v1082, 0
        %v1716 = vsel %vm1211, %v1084, 0
        %1718 = vmatprep.subr.mxu0 0.0
        %1719 = vmatpush1.xpose.msra.mxu0 %v1714
        %1720 = vmatprep.subr.mxu0 0.0
        %1721 = vmatpush1.xpose.msra.mxu0 %v1716
        %1722 = vmatprep.subr.mxu0 0.0
        %1723 = vmatpush1.xpose.msra.mxu0 0.0
        %1724 = vmatprep.subr.mxu0 0.0
        %1725 = vmatpush1.xpose.msra.mxu0 0.0
        %1726 = vmatprep.subr.mxu0 0.0
        %1727 = vmatpush1.xpose.msra.mxu0 0.0
        %1728 = vmatprep.subr.mxu0 0.0
        %1729 = vmatpush1.xpose.msra.mxu0 0.0
        %1730 = vmatprep.subr.mxu0 0.0
        %1731 = vmatpush1.xpose.msra.mxu0 0.0
        %1732 = vmatprep.subr.mxu0 0.0
        %1733 = vmatpush1.xpose.msra.mxu0 0.0
        %1734 = vmatprep.subr.mxu0 0.0
        %1735 = vmatpush1.xpose.msra.mxu0 0.0
        %1736 = vmatprep.subr.mxu0 0.0
        %1737 = vmatpush1.xpose.msra.mxu0 0.0
        %1738 = vmatprep.subr.mxu0 0.0
        %1739 = vmatpush1.xpose.msra.mxu0 0.0
        %1740 = vmatprep.subr.mxu0 0.0
        %1741 = vmatpush1.xpose.msra.mxu0 0.0
        %1742 = vmatprep.subr.mxu0 0.0
        %1743 = vmatpush1.xpose.msra.mxu0 0.0
        %1744 = vmatprep.subr.mxu0 0.0
        %1745 = vmatpush1.xpose.msra.mxu0 0.0
        %1746 = vmatprep.subr.mxu0 0.0
        %1747 = vmatpush1.xpose.msra.mxu0 0.0
        %1748 = vmatprep.subr.mxu0 0.0
        %1749 = vmatpush1.xpose.msra.mxu0 0.0
        %1750 = vmatprep.subr.mxu0 0.0
        %1751 = vmatpush1.xpose.msra.mxu0 0.0
        %1752 = vmatprep.subr.mxu0 0.0
        %1753 = vmatpush1.xpose.msra.mxu0 0.0
        %1754 = vmatprep.subr.mxu0 0.0
        %1755 = vmatpush1.xpose.msra.mxu0 0.0
        %1756 = vmatprep.subr.mxu0 0.0
        %1757 = vmatpush1.xpose.msra.mxu0 0.0
        %1758 = vmatprep.subr.mxu0 0.0
        %1759 = vmatpush1.xpose.msra.mxu0 0.0
        %1760 = vmatprep.subr.mxu0 0.0
        %1761 = vmatpush1.xpose.msra.mxu0 0.0
        %1762 = vmatprep.subr.mxu0 0.0
        %1763 = vmatpush1.xpose.msra.mxu0 0.0
        %1764 = vmatprep.subr.mxu0 0.0
        %1765 = vmatpush1.xpose.msra.mxu0 0.0
        %1766 = vmatprep.subr.mxu0 0.0
        %1767 = vmatpush1.xpose.msra.mxu0 0.0
        %1768 = vmatprep.subr.mxu0 0.0
        %1769 = vmatpush1.xpose.msra.mxu0 0.0
        %1770 = vmatprep.subr.mxu0 0.0
        %1771 = vmatpush1.xpose.msra.mxu0 0.0
        %1772 = vmatprep.subr.mxu0 0.0
        %1773 = vmatpush1.xpose.msra.mxu0 0.0
        %1774 = vmatprep.subr.mxu0 0.0
        %1775 = vmatpush1.xpose.msra.mxu0 0.0
        %1776 = vmatprep.subr.mxu0 0.0
        %1777 = vmatpush1.xpose.msra.mxu0 0.0
        %1778 = vmatprep.subr.mxu0 0.0
        %1779 = vmatpush1.xpose.msra.mxu0 0.0
        %1780 = vmatprep.subr.mxu0 0.0
        %1781 = vmatpush1.xpose.msra.mxu0 0.0
        %1782 = vmatprep.mubr.f32.mxu0 0.0
        %1783 = vmatmul.mubr.f32.gmra.mrb[0].mxu0 %v1710
        %v1784 = vpop.f32.mrb[0].mxu0
        %v1785 = vadd.f32 0.0, %v1784
        %v1786 = vpop.f32.mrb[0].mxu0
        %1787 = vmatprep.mubr.f32.mxu0 0.0
        %1788 = vmatmul.mubr.f32.gmra.mrb[0].mxu0 %v1712
        %v1789 = vpop.f32.mrb[0].mxu0
        %v1790 = vadd.f32 0.0, %v1789
        %v1791 = vpop.f32.mrb[0].mxu0
        %1792 = vdwg.mxu0
        %v1793 = vsel %vm1211, %v1022, 0
        %v1795 = vsel %vm1211, %v1024, 0
        %v1797 = vsel %vm1211, %v1086, 0
        %v1799 = vsel %vm1211, %v1088, 0
        %1801 = vmatprep.subr.mxu0 0.0
        %1802 = vmatpush1.xpose.msra.mxu0 %v1797
        %1803 = vmatprep.subr.mxu0 0.0
        %1804 = vmatpush1.xpose.msra.mxu0 %v1799
        %1805 = vmatprep.subr.mxu0 0.0
        %1806 = vmatpush1.xpose.msra.mxu0 0.0
        %1807 = vmatprep.subr.mxu0 0.0
        %1808 = vmatpush1.xpose.msra.mxu0 0.0
        %1809 = vmatprep.subr.mxu0 0.0
        %1810 = vmatpush1.xpose.msra.mxu0 0.0
        %1811 = vmatprep.subr.mxu0 0.0
        %1812 = vmatpush1.xpose.msra.mxu0 0.0
        %1813 = vmatprep.subr.mxu0 0.0
        %1814 = vmatpush1.xpose.msra.mxu0 0.0
        %1815 = vmatprep.subr.mxu0 0.0
        %1816 = vmatpush1.xpose.msra.mxu0 0.0
        %1817 = vmatprep.subr.mxu0 0.0
        %1818 = vmatpush1.xpose.msra.mxu0 0.0
        %1819 = vmatprep.subr.mxu0 0.0
        %1820 = vmatpush1.xpose.msra.mxu0 0.0
        %1821 = vmatprep.subr.mxu0 0.0
        %1822 = vmatpush1.xpose.msra.mxu0 0.0
        %1823 = vmatprep.subr.mxu0 0.0
        %1824 = vmatpush1.xpose.msra.mxu0 0.0
        %1825 = vmatprep.subr.mxu0 0.0
        %1826 = vmatpush1.xpose.msra.mxu0 0.0
        %1827 = vmatprep.subr.mxu0 0.0
        %1828 = vmatpush1.xpose.msra.mxu0 0.0
        %1829 = vmatprep.subr.mxu0 0.0
        %1830 = vmatpush1.xpose.msra.mxu0 0.0
        %1831 = vmatprep.subr.mxu0 0.0
        %1832 = vmatpush1.xpose.msra.mxu0 0.0
        %1833 = vmatprep.subr.mxu0 0.0
        %1834 = vmatpush1.xpose.msra.mxu0 0.0
        %1835 = vmatprep.subr.mxu0 0.0
        %1836 = vmatpush1.xpose.msra.mxu0 0.0
        %1837 = vmatprep.subr.mxu0 0.0
        %1838 = vmatpush1.xpose.msra.mxu0 0.0
        %1839 = vmatprep.subr.mxu0 0.0
        %1840 = vmatpush1.xpose.msra.mxu0 0.0
        %1841 = vmatprep.subr.mxu0 0.0
        %1842 = vmatpush1.xpose.msra.mxu0 0.0
        %1843 = vmatprep.subr.mxu0 0.0
        %1844 = vmatpush1.xpose.msra.mxu0 0.0
        %1845 = vmatprep.subr.mxu0 0.0
        %1846 = vmatpush1.xpose.msra.mxu0 0.0
        %1847 = vmatprep.subr.mxu0 0.0
        %1848 = vmatpush1.xpose.msra.mxu0 0.0
        %1849 = vmatprep.subr.mxu0 0.0
        %1850 = vmatpush1.xpose.msra.mxu0 0.0
        %1851 = vmatprep.subr.mxu0 0.0
        %1852 = vmatpush1.xpose.msra.mxu0 0.0
        %1853 = vmatprep.subr.mxu0 0.0
        %1854 = vmatpush1.xpose.msra.mxu0 0.0
        %1855 = vmatprep.subr.mxu0 0.0
        %1856 = vmatpush1.xpose.msra.mxu0 0.0
        %1857 = vmatprep.subr.mxu0 0.0
        %1858 = vmatpush1.xpose.msra.mxu0 0.0
        %1859 = vmatprep.subr.mxu0 0.0
        %1860 = vmatpush1.xpose.msra.mxu0 0.0
        %1861 = vmatprep.subr.mxu0 0.0
        %1862 = vmatpush1.xpose.msra.mxu0 0.0
        %1863 = vmatprep.subr.mxu0 0.0
        %1864 = vmatpush1.xpose.msra.mxu0 0.0
        %1865 = vmatprep.mubr.f32.mxu0 0.0
        %1866 = vmatmul.mubr.f32.gmra.mrb[0].mxu0 %v1793
        %v1867 = vpop.f32.mrb[0].mxu0
        %v1868 = vadd.f32 0.0, %v1867
        %v1869 = vpop.f32.mrb[0].mxu0
        %1870 = vmatprep.mubr.f32.mxu0 0.0
        %1871 = vmatmul.mubr.f32.gmra.mrb[0].mxu0 %v1795
        %v1872 = vpop.f32.mrb[0].mxu0
        %v1873 = vadd.f32 0.0, %v1872
        %v1874 = vpop.f32.mrb[0].mxu0
        %1875 = vdwg.mxu0
        %v1876 = vsel %vm1211, %v993, 0
        %v1878 = vsel %vm1211, %v994, 0
        %v1880 = vsel %vm1211, %v1057, 0
        %v1882 = vsel %vm1211, %v1058, 0
        %1884 = vmatprep.subr.mxu0 0.0
        %1885 = vmatpush1.xpose.msra.mxu0 %v1880
        %1886 = vmatprep.subr.mxu0 0.0
        %1887 = vmatpush1.xpose.msra.mxu0 %v1882
        %1888 = vmatprep.subr.mxu0 0.0
        %1889 = vmatpush1.xpose.msra.mxu0 0.0
        %1890 = vmatprep.subr.mxu0 0.0
        %1891 = vmatpush1.xpose.msra.mxu0 0.0
        %1892 = vmatprep.subr.mxu0 0.0
        %1893 = vmatpush1.xpose.msra.mxu0 0.0
        %1894 = vmatprep.subr.mxu0 0.0
        %1895 = vmatpush1.xpose.msra.mxu0 0.0
        %1896 = vmatprep.subr.mxu0 0.0
        %1897 = vmatpush1.xpose.msra.mxu0 0.0
        %1898 = vmatprep.subr.mxu0 0.0
        %1899 = vmatpush1.xpose.msra.mxu0 0.0
        %1900 = vmatprep.subr.mxu0 0.0
        %1901 = vmatpush1.xpose.msra.mxu0 0.0
        %1902 = vmatprep.subr.mxu0 0.0
        %1903 = vmatpush1.xpose.msra.mxu0 0.0
        %1904 = vmatprep.subr.mxu0 0.0
        %1905 = vmatpush1.xpose.msra.mxu0 0.0
        %1906 = vmatprep.subr.mxu0 0.0
        %1907 = vmatpush1.xpose.msra.mxu0 0.0
        %1908 = vmatprep.subr.mxu0 0.0
        %1909 = vmatpush1.xpose.msra.mxu0 0.0
        %1910 = vmatprep.subr.mxu0 0.0
        %1911 = vmatpush1.xpose.msra.mxu0 0.0
        %1912 = vmatprep.subr.mxu0 0.0
        %1913 = vmatpush1.xpose.msra.mxu0 0.0
        %1914 = vmatprep.subr.mxu0 0.0
        %1915 = vmatpush1.xpose.msra.mxu0 0.0
        %1916 = vmatprep.subr.mxu0 0.0
        %1917 = vmatpush1.xpose.msra.mxu0 0.0
        %1918 = vmatprep.subr.mxu0 0.0
        %1919 = vmatpush1.xpose.msra.mxu0 0.0
        %1920 = vmatprep.subr.mxu0 0.0
        %1921 = vmatpush1.xpose.msra.mxu0 0.0
        %1922 = vmatprep.subr.mxu0 0.0
        %1923 = vmatpush1.xpose.msra.mxu0 0.0
        %1924 = vmatprep.subr.mxu0 0.0
        %1925 = vmatpush1.xpose.msra.mxu0 0.0
        %1926 = vmatprep.subr.mxu0 0.0
        %1927 = vmatpush1.xpose.msra.mxu0 0.0
        %1928 = vmatprep.subr.mxu0 0.0
        %1929 = vmatpush1.xpose.msra.mxu0 0.0
        %1930 = vmatprep.subr.mxu0 0.0
        %1931 = vmatpush1.xpose.msra.mxu0 0.0
        %1932 = vmatprep.subr.mxu0 0.0
        %1933 = vmatpush1.xpose.msra.mxu0 0.0
        %1934 = vmatprep.subr.mxu0 0.0
        %1935 = vmatpush1.xpose.msra.mxu0 0.0
        %1936 = vmatprep.subr.mxu0 0.0
        %1937 = vmatpush1.xpose.msra.mxu0 0.0
        %1938 = vmatprep.subr.mxu0 0.0
        %1939 = vmatpush1.xpose.msra.mxu0 0.0
        %1940 = vmatprep.subr.mxu0 0.0
        %1941 = vmatpush1.xpose.msra.mxu0 0.0
        %1942 = vmatprep.subr.mxu0 0.0
        %1943 = vmatpush1.xpose.msra.mxu0 0.0
        %1944 = vmatprep.subr.mxu0 0.0
        %1945 = vmatpush1.xpose.msra.mxu0 0.0
        %1946 = vmatprep.subr.mxu0 0.0
        %1947 = vmatpush1.xpose.msra.mxu0 0.0
        %1948 = vmatprep.mubr.f32.mxu0 0.0
        %1949 = vmatmul.mubr.f32.gmra.mrb[0].mxu0 %v1876
        %v1950 = vpop.f32.mrb[0].mxu0
        %v1951 = vadd.f32 0.0, %v1950
        %v1952 = vpop.f32.mrb[0].mxu0
        %1953 = vmatprep.mubr.f32.mxu0 0.0
        %1954 = vmatmul.mubr.f32.gmra.mrb[0].mxu0 %v1878
        %v1955 = vpop.f32.mrb[0].mxu0
        %v1956 = vadd.f32 0.0, %v1955
        %v1957 = vpop.f32.mrb[0].mxu0
        %1958 = vdwg.mxu0
        %v1959 = vsel %vm1211, %v1028, 0
        %v1961 = vsel %vm1211, %v1030, 0
        %v1963 = vsel %vm1211, %v1092, 0
        %v1965 = vsel %vm1211, %v1094, 0
        %1967 = vmatprep.subr.mxu0 0.0
        %1968 = vmatpush1.xpose.msra.mxu0 %v1963
        %1969 = vmatprep.subr.mxu0 0.0
        %1970 = vmatpush1.xpose.msra.mxu0 %v1965
        %1971 = vmatprep.subr.mxu0 0.0
        %1972 = vmatpush1.xpose.msra.mxu0 0.0
        %1973 = vmatprep.subr.mxu0 0.0
        %1974 = vmatpush1.xpose.msra.mxu0 0.0
        %1975 = vmatprep.subr.mxu0 0.0
        %1976 = vmatpush1.xpose.msra.mxu0 0.0
        %1977 = vmatprep.subr.mxu0 0.0
        %1978 = vmatpush1.xpose.msra.mxu0 0.0
        %1979 = vmatprep.subr.mxu0 0.0
        %1980 = vmatpush1.xpose.msra.mxu0 0.0
        %1981 = vmatprep.subr.mxu0 0.0
        %1982 = vmatpush1.xpose.msra.mxu0 0.0
        %1983 = vmatprep.subr.mxu0 0.0
        %1984 = vmatpush1.xpose.msra.mxu0 0.0
        %1985 = vmatprep.subr.mxu0 0.0
        %1986 = vmatpush1.xpose.msra.mxu0 0.0
        %1987 = vmatprep.subr.mxu0 0.0
        %1988 = vmatpush1.xpose.msra.mxu0 0.0
        %1989 = vmatprep.subr.mxu0 0.0
        %1990 = vmatpush1.xpose.msra.mxu0 0.0
        %1991 = vmatprep.subr.mxu0 0.0
        %1992 = vmatpush1.xpose.msra.mxu0 0.0
        %1993 = vmatprep.subr.mxu0 0.0
        %1994 = vmatpush1.xpose.msra.mxu0 0.0
        %1995 = vmatprep.subr.mxu0 0.0
        %1996 = vmatpush1.xpose.msra.mxu0 0.0
        %1997 = vmatprep.subr.mxu0 0.0
        %1998 = vmatpush1.xpose.msra.mxu0 0.0
        %1999 = vmatprep.subr.mxu0 0.0
        %2000 = vmatpush1.xpose.msra.mxu0 0.0
        %2001 = vmatprep.subr.mxu0 0.0
        %2002 = vmatpush1.xpose.msra.mxu0 0.0
        %2003 = vmatprep.subr.mxu0 0.0
        %2004 = vmatpush1.xpose.msra.mxu0 0.0
        %2005 = vmatprep.subr.mxu0 0.0
        %2006 = vmatpush1.xpose.msra.mxu0 0.0
        %2007 = vmatprep.subr.mxu0 0.0
        %2008 = vmatpush1.xpose.msra.mxu0 0.0
        %2009 = vmatprep.subr.mxu0 0.0
        %2010 = vmatpush1.xpose.msra.mxu0 0.0
        %2011 = vmatprep.subr.mxu0 0.0
        %2012 = vmatpush1.xpose.msra.mxu0 0.0
        %2013 = vmatprep.subr.mxu0 0.0
        %2014 = vmatpush1.xpose.msra.mxu0 0.0
        %2015 = vmatprep.subr.mxu0 0.0
        %2016 = vmatpush1.xpose.msra.mxu0 0.0
        %2017 = vmatprep.subr.mxu0 0.0
        %2018 = vmatpush1.xpose.msra.mxu0 0.0
        %2019 = vmatprep.subr.mxu0 0.0
        %2020 = vmatpush1.xpose.msra.mxu0 0.0
        %2021 = vmatprep.subr.mxu0 0.0
        %2022 = vmatpush1.xpose.msra.mxu0 0.0
        %2023 = vmatprep.subr.mxu0 0.0
        %2024 = vmatpush1.xpose.msra.mxu0 0.0
        %2025 = vmatprep.subr.mxu0 0.0
        %2026 = vmatpush1.xpose.msra.mxu0 0.0
        %2027 = vmatprep.subr.mxu0 0.0
        %2028 = vmatpush1.xpose.msra.mxu0 0.0
        %2029 = vmatprep.subr.mxu0 0.0
        %2030 = vmatpush1.xpose.msra.mxu0 0.0
        %2031 = vmatprep.mubr.f32.mxu0 0.0
        %2032 = vmatmul.mubr.f32.gmra.mrb[0].mxu0 %v1959
        %v2033 = vpop.f32.mrb[0].mxu0
        %v2034 = vadd.f32 0.0, %v2033
        %v2035 = vpop.f32.mrb[0].mxu0
        %2036 = vmatprep.mubr.f32.mxu0 0.0
        %2037 = vmatmul.mubr.f32.gmra.mrb[0].mxu0 %v1961
        %v2038 = vpop.f32.mrb[0].mxu0
        %v2039 = vadd.f32 0.0, %v2038
        %v2040 = vpop.f32.mrb[0].mxu0
        %2041 = vdwg.mxu0
        %v2042 = vsel %vm1211, %v1032, 0
        %v2044 = vsel %vm1211, %v1034, 0
        %v2046 = vsel %vm1211, %v1096, 0
        %v2048 = vsel %vm1211, %v1098, 0
        %2050 = vmatprep.subr.mxu0 0.0
        %2051 = vmatpush1.xpose.msra.mxu0 %v2046
        %2052 = vmatprep.subr.mxu0 0.0
        %2053 = vmatpush1.xpose.msra.mxu0 %v2048
        %2054 = vmatprep.subr.mxu0 0.0
        %2055 = vmatpush1.xpose.msra.mxu0 0.0
        %2056 = vmatprep.subr.mxu0 0.0
        %2057 = vmatpush1.xpose.msra.mxu0 0.0
        %2058 = vmatprep.subr.mxu0 0.0
        %2059 = vmatpush1.xpose.msra.mxu0 0.0
        %2060 = vmatprep.subr.mxu0 0.0
        %2061 = vmatpush1.xpose.msra.mxu0 0.0
        %2062 = vmatprep.subr.mxu0 0.0
        %2063 = vmatpush1.xpose.msra.mxu0 0.0
        %2064 = vmatprep.subr.mxu0 0.0
        %2065 = vmatpush1.xpose.msra.mxu0 0.0
        %2066 = vmatprep.subr.mxu0 0.0
        %2067 = vmatpush1.xpose.msra.mxu0 0.0
        %2068 = vmatprep.subr.mxu0 0.0
        %2069 = vmatpush1.xpose.msra.mxu0 0.0
        %2070 = vmatprep.subr.mxu0 0.0
        %2071 = vmatpush1.xpose.msra.mxu0 0.0
        %2072 = vmatprep.subr.mxu0 0.0
        %2073 = vmatpush1.xpose.msra.mxu0 0.0
        %2074 = vmatprep.subr.mxu0 0.0
        %2075 = vmatpush1.xpose.msra.mxu0 0.0
        %2076 = vmatprep.subr.mxu0 0.0
        %2077 = vmatpush1.xpose.msra.mxu0 0.0
        %2078 = vmatprep.subr.mxu0 0.0
        %2079 = vmatpush1.xpose.msra.mxu0 0.0
        %2080 = vmatprep.subr.mxu0 0.0
        %2081 = vmatpush1.xpose.msra.mxu0 0.0
        %2082 = vmatprep.subr.mxu0 0.0
        %2083 = vmatpush1.xpose.msra.mxu0 0.0
        %2084 = vmatprep.subr.mxu0 0.0
        %2085 = vmatpush1.xpose.msra.mxu0 0.0
        %2086 = vmatprep.subr.mxu0 0.0
        %2087 = vmatpush1.xpose.msra.mxu0 0.0
        %2088 = vmatprep.subr.mxu0 0.0
        %2089 = vmatpush1.xpose.msra.mxu0 0.0
        %2090 = vmatprep.subr.mxu0 0.0
        %2091 = vmatpush1.xpose.msra.mxu0 0.0
        %2092 = vmatprep.subr.mxu0 0.0
        %2093 = vmatpush1.xpose.msra.mxu0 0.0
        %2094 = vmatprep.subr.mxu0 0.0
        %2095 = vmatpush1.xpose.msra.mxu0 0.0
        %2096 = vmatprep.subr.mxu0 0.0
        %2097 = vmatpush1.xpose.msra.mxu0 0.0
        %2098 = vmatprep.subr.mxu0 0.0
        %2099 = vmatpush1.xpose.msra.mxu0 0.0
        %2100 = vmatprep.subr.mxu0 0.0
        %2101 = vmatpush1.xpose.msra.mxu0 0.0
        %2102 = vmatprep.subr.mxu0 0.0
        %2103 = vmatpush1.xpose.msra.mxu0 0.0
        %2104 = vmatprep.subr.mxu0 0.0
        %2105 = vmatpush1.xpose.msra.mxu0 0.0
        %2106 = vmatprep.subr.mxu0 0.0
        %2107 = vmatpush1.xpose.msra.mxu0 0.0
        %2108 = vmatprep.subr.mxu0 0.0
        %2109 = vmatpush1.xpose.msra.mxu0 0.0
        %2110 = vmatprep.subr.mxu0 0.0
        %2111 = vmatpush1.xpose.msra.mxu0 0.0
        %2112 = vmatprep.subr.mxu0 0.0
        %2113 = vmatpush1.xpose.msra.mxu0 0.0
        %2114 = vmatprep.mubr.f32.mxu0 0.0
        %2115 = vmatmul.mubr.f32.gmra.mrb[0].mxu0 %v2042
        %v2116 = vpop.f32.mrb[0].mxu0
        %v2117 = vadd.f32 0.0, %v2116
        %v2118 = vpop.f32.mrb[0].mxu0
        %2119 = vmatprep.mubr.f32.mxu0 0.0
        %2120 = vmatmul.mubr.f32.gmra.mrb[0].mxu0 %v2044
        %v2121 = vpop.f32.mrb[0].mxu0
        %v2122 = vadd.f32 0.0, %v2121
        %v2123 = vpop.f32.mrb[0].mxu0
        %2124 = vdwg.mxu0
        %v2125 = vsel %vm1211, %v1036, 0
        %v2127 = vsel %vm1211, %v1038, 0
        %v2129 = vsel %vm1211, %v1100, 0
        %v2131 = vsel %vm1211, %v1102, 0
        %2133 = vmatprep.subr.mxu0 0.0
        %2134 = vmatpush1.xpose.msra.mxu0 %v2129
        %2135 = vmatprep.subr.mxu0 0.0
        %2136 = vmatpush1.xpose.msra.mxu0 %v2131
        %2137 = vmatprep.subr.mxu0 0.0
        %2138 = vmatpush1.xpose.msra.mxu0 0.0
        %2139 = vmatprep.subr.mxu0 0.0
        %2140 = vmatpush1.xpose.msra.mxu0 0.0
        %2141 = vmatprep.subr.mxu0 0.0
        %2142 = vmatpush1.xpose.msra.mxu0 0.0
        %2143 = vmatprep.subr.mxu0 0.0
        %2144 = vmatpush1.xpose.msra.mxu0 0.0
        %2145 = vmatprep.subr.mxu0 0.0
        %2146 = vmatpush1.xpose.msra.mxu0 0.0
        %2147 = vmatprep.subr.mxu0 0.0
        %2148 = vmatpush1.xpose.msra.mxu0 0.0
        %2149 = vmatprep.subr.mxu0 0.0
        %2150 = vmatpush1.xpose.msra.mxu0 0.0
        %2151 = vmatprep.subr.mxu0 0.0
        %2152 = vmatpush1.xpose.msra.mxu0 0.0
        %2153 = vmatprep.subr.mxu0 0.0
        %2154 = vmatpush1.xpose.msra.mxu0 0.0
        %2155 = vmatprep.subr.mxu0 0.0
        %2156 = vmatpush1.xpose.msra.mxu0 0.0
        %2157 = vmatprep.subr.mxu0 0.0
        %2158 = vmatpush1.xpose.msra.mxu0 0.0
        %2159 = vmatprep.subr.mxu0 0.0
        %2160 = vmatpush1.xpose.msra.mxu0 0.0
        %2161 = vmatprep.subr.mxu0 0.0
        %2162 = vmatpush1.xpose.msra.mxu0 0.0
        %2163 = vmatprep.subr.mxu0 0.0
        %2164 = vmatpush1.xpose.msra.mxu0 0.0
        %2165 = vmatprep.subr.mxu0 0.0
        %2166 = vmatpush1.xpose.msra.mxu0 0.0
        %2167 = vmatprep.subr.mxu0 0.0
        %2168 = vmatpush1.xpose.msra.mxu0 0.0
        %2169 = vmatprep.subr.mxu0 0.0
        %2170 = vmatpush1.xpose.msra.mxu0 0.0
        %2171 = vmatprep.subr.mxu0 0.0
        %2172 = vmatpush1.xpose.msra.mxu0 0.0
        %2173 = vmatprep.subr.mxu0 0.0
        %2174 = vmatpush1.xpose.msra.mxu0 0.0
        %2175 = vmatprep.subr.mxu0 0.0
        %2176 = vmatpush1.xpose.msra.mxu0 0.0
        %2177 = vmatprep.subr.mxu0 0.0
        %2178 = vmatpush1.xpose.msra.mxu0 0.0
        %2179 = vmatprep.subr.mxu0 0.0
        %2180 = vmatpush1.xpose.msra.mxu0 0.0
        %2181 = vmatprep.subr.mxu0 0.0
        %2182 = vmatpush1.xpose.msra.mxu0 0.0
        %2183 = vmatprep.subr.mxu0 0.0
        %2184 = vmatpush1.xpose.msra.mxu0 0.0
        %2185 = vmatprep.subr.mxu0 0.0
        %2186 = vmatpush1.xpose.msra.mxu0 0.0
        %2187 = vmatprep.subr.mxu0 0.0
        %2188 = vmatpush1.xpose.msra.mxu0 0.0
        %2189 = vmatprep.subr.mxu0 0.0
        %2190 = vmatpush1.xpose.msra.mxu0 0.0
        %2191 = vmatprep.subr.mxu0 0.0
        %2192 = vmatpush1.xpose.msra.mxu0 0.0
        %2193 = vmatprep.subr.mxu0 0.0
        %2194 = vmatpush1.xpose.msra.mxu0 0.0
        %2195 = vmatprep.subr.mxu0 0.0
        %2196 = vmatpush1.xpose.msra.mxu0 0.0
        %2197 = vmatprep.mubr.f32.mxu0 0.0
        %2198 = vmatmul.mubr.f32.gmra.mrb[0].mxu0 %v2125
        %v2199 = vpop.f32.mrb[0].mxu0
        %v2200 = vadd.f32 0.0, %v2199
        %v2201 = vpop.f32.mrb[0].mxu0
        %2202 = vmatprep.mubr.f32.mxu0 0.0
        %2203 = vmatmul.mubr.f32.gmra.mrb[0].mxu0 %v2127
        %v2204 = vpop.f32.mrb[0].mxu0
        %v2205 = vadd.f32 0.0, %v2204
        %v2206 = vpop.f32.mrb[0].mxu0
        %2207 = vdwg.mxu0
        %v2208 = vsel %vm1211, %v1040, 0
        %v2210 = vsel %vm1211, %v1042, 0
        %v2212 = vsel %vm1211, %v1104, 0
        %v2214 = vsel %vm1211, %v1106, 0
        %2216 = vmatprep.subr.mxu0 0.0
        %2217 = vmatpush1.xpose.msra.mxu0 %v2212
        %2218 = vmatprep.subr.mxu0 0.0
        %2219 = vmatpush1.xpose.msra.mxu0 %v2214
        %2220 = vmatprep.subr.mxu0 0.0
        %2221 = vmatpush1.xpose.msra.mxu0 0.0
        %2222 = vmatprep.subr.mxu0 0.0
        %2223 = vmatpush1.xpose.msra.mxu0 0.0
        %2224 = vmatprep.subr.mxu0 0.0
        %2225 = vmatpush1.xpose.msra.mxu0 0.0
        %2226 = vmatprep.subr.mxu0 0.0
        %2227 = vmatpush1.xpose.msra.mxu0 0.0
        %2228 = vmatprep.subr.mxu0 0.0
        %2229 = vmatpush1.xpose.msra.mxu0 0.0
        %2230 = vmatprep.subr.mxu0 0.0
        %2231 = vmatpush1.xpose.msra.mxu0 0.0
        %2232 = vmatprep.subr.mxu0 0.0
        %2233 = vmatpush1.xpose.msra.mxu0 0.0
        %2234 = vmatprep.subr.mxu0 0.0
        %2235 = vmatpush1.xpose.msra.mxu0 0.0
        %2236 = vmatprep.subr.mxu0 0.0
        %2237 = vmatpush1.xpose.msra.mxu0 0.0
        %2238 = vmatprep.subr.mxu0 0.0
        %2239 = vmatpush1.xpose.msra.mxu0 0.0
        %2240 = vmatprep.subr.mxu0 0.0
        %2241 = vmatpush1.xpose.msra.mxu0 0.0
        %2242 = vmatprep.subr.mxu0 0.0
        %2243 = vmatpush1.xpose.msra.mxu0 0.0
        %2244 = vmatprep.subr.mxu0 0.0
        %2245 = vmatpush1.xpose.msra.mxu0 0.0
        %2246 = vmatprep.subr.mxu0 0.0
        %2247 = vmatpush1.xpose.msra.mxu0 0.0
        %2248 = vmatprep.subr.mxu0 0.0
        %2249 = vmatpush1.xpose.msra.mxu0 0.0
        %2250 = vmatprep.subr.mxu0 0.0
        %2251 = vmatpush1.xpose.msra.mxu0 0.0
        %2252 = vmatprep.subr.mxu0 0.0
        %2253 = vmatpush1.xpose.msra.mxu0 0.0
        %2254 = vmatprep.subr.mxu0 0.0
        %2255 = vmatpush1.xpose.msra.mxu0 0.0
        %2256 = vmatprep.subr.mxu0 0.0
        %2257 = vmatpush1.xpose.msra.mxu0 0.0
        %2258 = vmatprep.subr.mxu0 0.0
        %2259 = vmatpush1.xpose.msra.mxu0 0.0
        %2260 = vmatprep.subr.mxu0 0.0
        %2261 = vmatpush1.xpose.msra.mxu0 0.0
        %2262 = vmatprep.subr.mxu0 0.0
        %2263 = vmatpush1.xpose.msra.mxu0 0.0
        %2264 = vmatprep.subr.mxu0 0.0
        %2265 = vmatpush1.xpose.msra.mxu0 0.0
        %2266 = vmatprep.subr.mxu0 0.0
        %2267 = vmatpush1.xpose.msra.mxu0 0.0
        %2268 = vmatprep.subr.mxu0 0.0
        %2269 = vmatpush1.xpose.msra.mxu0 0.0
        %2270 = vmatprep.subr.mxu0 0.0
        %2271 = vmatpush1.xpose.msra.mxu0 0.0
        %2272 = vmatprep.subr.mxu0 0.0
        %2273 = vmatpush1.xpose.msra.mxu0 0.0
        %2274 = vmatprep.subr.mxu0 0.0
        %2275 = vmatpush1.xpose.msra.mxu0 0.0
        %2276 = vmatprep.subr.mxu0 0.0
        %2277 = vmatpush1.xpose.msra.mxu0 0.0
        %2278 = vmatprep.subr.mxu0 0.0
        %2279 = vmatpush1.xpose.msra.mxu0 0.0
        %2280 = vmatprep.mubr.f32.mxu0 0.0
        %2281 = vmatmul.mubr.f32.gmra.mrb[0].mxu0 %v2208
        %v2282 = vpop.f32.mrb[0].mxu0
        %v2283 = vadd.f32 0.0, %v2282
        %v2284 = vpop.f32.mrb[0].mxu0
        %2285 = vmatprep.mubr.f32.mxu0 0.0
        %2286 = vmatmul.mubr.f32.gmra.mrb[0].mxu0 %v2210
        %v2287 = vpop.f32.mrb[0].mxu0
        %v2288 = vadd.f32 0.0, %v2287
        %v2289 = vpop.f32.mrb[0].mxu0
        %2290 = vdwg.mxu0
        %v2291 = vsel %vm1211, %v1044, 0
        %v2293 = vsel %vm1211, %v1046, 0
        %v2295 = vsel %vm1211, %v1108, 0
        %v2297 = vsel %vm1211, %v1110, 0
        %2299 = vmatprep.subr.mxu0 0.0
        %2300 = vmatpush1.xpose.msra.mxu0 %v2295
        %2301 = vmatprep.subr.mxu0 0.0
        %2302 = vmatpush1.xpose.msra.mxu0 %v2297
        %2303 = vmatprep.subr.mxu0 0.0
        %2304 = vmatpush1.xpose.msra.mxu0 0.0
        %2305 = vmatprep.subr.mxu0 0.0
        %2306 = vmatpush1.xpose.msra.mxu0 0.0
        %2307 = vmatprep.subr.mxu0 0.0
        %2308 = vmatpush1.xpose.msra.mxu0 0.0
        %2309 = vmatprep.subr.mxu0 0.0
        %2310 = vmatpush1.xpose.msra.mxu0 0.0
        %2311 = vmatprep.subr.mxu0 0.0
        %2312 = vmatpush1.xpose.msra.mxu0 0.0
        %2313 = vmatprep.subr.mxu0 0.0
        %2314 = vmatpush1.xpose.msra.mxu0 0.0
        %2315 = vmatprep.subr.mxu0 0.0
        %2316 = vmatpush1.xpose.msra.mxu0 0.0
        %2317 = vmatprep.subr.mxu0 0.0
        %2318 = vmatpush1.xpose.msra.mxu0 0.0
        %2319 = vmatprep.subr.mxu0 0.0
        %2320 = vmatpush1.xpose.msra.mxu0 0.0
        %2321 = vmatprep.subr.mxu0 0.0
        %2322 = vmatpush1.xpose.msra.mxu0 0.0
        %2323 = vmatprep.subr.mxu0 0.0
        %2324 = vmatpush1.xpose.msra.mxu0 0.0
        %2325 = vmatprep.subr.mxu0 0.0
        %2326 = vmatpush1.xpose.msra.mxu0 0.0
        %2327 = vmatprep.subr.mxu0 0.0
        %2328 = vmatpush1.xpose.msra.mxu0 0.0
        %2329 = vmatprep.subr.mxu0 0.0
        %2330 = vmatpush1.xpose.msra.mxu0 0.0
        %2331 = vmatprep.subr.mxu0 0.0
        %2332 = vmatpush1.xpose.msra.mxu0 0.0
        %2333 = vmatprep.subr.mxu0 0.0
        %2334 = vmatpush1.xpose.msra.mxu0 0.0
        %2335 = vmatprep.subr.mxu0 0.0
        %2336 = vmatpush1.xpose.msra.mxu0 0.0
        %2337 = vmatprep.subr.mxu0 0.0
        %2338 = vmatpush1.xpose.msra.mxu0 0.0
        %2339 = vmatprep.subr.mxu0 0.0
        %2340 = vmatpush1.xpose.msra.mxu0 0.0
        %2341 = vmatprep.subr.mxu0 0.0
        %2342 = vmatpush1.xpose.msra.mxu0 0.0
        %2343 = vmatprep.subr.mxu0 0.0
        %2344 = vmatpush1.xpose.msra.mxu0 0.0
        %2345 = vmatprep.subr.mxu0 0.0
        %2346 = vmatpush1.xpose.msra.mxu0 0.0
        %2347 = vmatprep.subr.mxu0 0.0
        %2348 = vmatpush1.xpose.msra.mxu0 0.0
        %2349 = vmatprep.subr.mxu0 0.0
        %2350 = vmatpush1.xpose.msra.mxu0 0.0
        %2351 = vmatprep.subr.mxu0 0.0
        %2352 = vmatpush1.xpose.msra.mxu0 0.0
        %2353 = vmatprep.subr.mxu0 0.0
        %2354 = vmatpush1.xpose.msra.mxu0 0.0
        %2355 = vmatprep.subr.mxu0 0.0
        %2356 = vmatpush1.xpose.msra.mxu0 0.0
        %2357 = vmatprep.subr.mxu0 0.0
        %2358 = vmatpush1.xpose.msra.mxu0 0.0
        %2359 = vmatprep.subr.mxu0 0.0
        %2360 = vmatpush1.xpose.msra.mxu0 0.0
        %2361 = vmatprep.subr.mxu0 0.0
        %2362 = vmatpush1.xpose.msra.mxu0 0.0
        %2363 = vmatprep.mubr.f32.mxu0 0.0
        %2364 = vmatmul.mubr.f32.gmra.mrb[0].mxu0 %v2291
        %v2365 = vpop.f32.mrb[0].mxu0
        %v2366 = vadd.f32 0.0, %v2365
        %v2367 = vpop.f32.mrb[0].mxu0
        %2368 = vmatprep.mubr.f32.mxu0 0.0
        %2369 = vmatmul.mubr.f32.gmra.mrb[0].mxu0 %v2293
        %v2370 = vpop.f32.mrb[0].mxu0
        %v2371 = vadd.f32 0.0, %v2370
        %v2372 = vpop.f32.mrb[0].mxu0
        %2373 = vdwg.mxu0
        %v2374 = vsel %vm1211, %v1048, 0
        %v2376 = vsel %vm1211, %v1050, 0
        %v2378 = vsel %vm1211, %v1112, 0
        %v2380 = vsel %vm1211, %v1114, 0
        %2382 = vmatprep.subr.mxu0 0.0
        %2383 = vmatpush1.xpose.msra.mxu0 %v2378
        %2384 = vmatprep.subr.mxu0 0.0
        %2385 = vmatpush1.xpose.msra.mxu0 %v2380
        %2386 = vmatprep.subr.mxu0 0.0
        %2387 = vmatpush1.xpose.msra.mxu0 0.0
        %2388 = vmatprep.subr.mxu0 0.0
        %2389 = vmatpush1.xpose.msra.mxu0 0.0
        %2390 = vmatprep.subr.mxu0 0.0
        %2391 = vmatpush1.xpose.msra.mxu0 0.0
        %2392 = vmatprep.subr.mxu0 0.0
        %2393 = vmatpush1.xpose.msra.mxu0 0.0
        %2394 = vmatprep.subr.mxu0 0.0
        %2395 = vmatpush1.xpose.msra.mxu0 0.0
        %2396 = vmatprep.subr.mxu0 0.0
        %2397 = vmatpush1.xpose.msra.mxu0 0.0
        %2398 = vmatprep.subr.mxu0 0.0
        %2399 = vmatpush1.xpose.msra.mxu0 0.0
        %2400 = vmatprep.subr.mxu0 0.0
        %2401 = vmatpush1.xpose.msra.mxu0 0.0
        %2402 = vmatprep.subr.mxu0 0.0
        %2403 = vmatpush1.xpose.msra.mxu0 0.0
        %2404 = vmatprep.subr.mxu0 0.0
        %2405 = vmatpush1.xpose.msra.mxu0 0.0
        %2406 = vmatprep.subr.mxu0 0.0
        %2407 = vmatpush1.xpose.msra.mxu0 0.0
        %2408 = vmatprep.subr.mxu0 0.0
        %2409 = vmatpush1.xpose.msra.mxu0 0.0
        %2410 = vmatprep.subr.mxu0 0.0
        %2411 = vmatpush1.xpose.msra.mxu0 0.0
        %2412 = vmatprep.subr.mxu0 0.0
        %2413 = vmatpush1.xpose.msra.mxu0 0.0
        %2414 = vmatprep.subr.mxu0 0.0
        %2415 = vmatpush1.xpose.msra.mxu0 0.0
        %2416 = vmatprep.subr.mxu0 0.0
        %2417 = vmatpush1.xpose.msra.mxu0 0.0
        %2418 = vmatprep.subr.mxu0 0.0
        %2419 = vmatpush1.xpose.msra.mxu0 0.0
        %2420 = vmatprep.subr.mxu0 0.0
        %2421 = vmatpush1.xpose.msra.mxu0 0.0
        %2422 = vmatprep.subr.mxu0 0.0
        %2423 = vmatpush1.xpose.msra.mxu0 0.0
        %2424 = vmatprep.subr.mxu0 0.0
        %2425 = vmatpush1.xpose.msra.mxu0 0.0
        %2426 = vmatprep.subr.mxu0 0.0
        %2427 = vmatpush1.xpose.msra.mxu0 0.0
        %2428 = vmatprep.subr.mxu0 0.0
        %2429 = vmatpush1.xpose.msra.mxu0 0.0
        %2430 = vmatprep.subr.mxu0 0.0
        %2431 = vmatpush1.xpose.msra.mxu0 0.0
        %2432 = vmatprep.subr.mxu0 0.0
        %2433 = vmatpush1.xpose.msra.mxu0 0.0
        %2434 = vmatprep.subr.mxu0 0.0
        %2435 = vmatpush1.xpose.msra.mxu0 0.0
        %2436 = vmatprep.subr.mxu0 0.0
        %2437 = vmatpush1.xpose.msra.mxu0 0.0
        %2438 = vmatprep.subr.mxu0 0.0
        %2439 = vmatpush1.xpose.msra.mxu0 0.0
        %2440 = vmatprep.subr.mxu0 0.0
        %2441 = vmatpush1.xpose.msra.mxu0 0.0
        %2442 = vmatprep.subr.mxu0 0.0
        %2443 = vmatpush1.xpose.msra.mxu0 0.0
        %2444 = vmatprep.subr.mxu0 0.0
        %2445 = vmatpush1.xpose.msra.mxu0 0.0
        %2446 = vmatprep.mubr.f32.mxu0 0.0
        %2447 = vmatmul.mubr.f32.gmra.mrb[0].mxu0 %v2374
        %v2448 = vpop.f32.mrb[0].mxu0
        %v2449 = vadd.f32 0.0, %v2448
        %v2450 = vpop.f32.mrb[0].mxu0
        %2451 = vmatprep.mubr.f32.mxu0 0.0
        %2452 = vmatmul.mubr.f32.gmra.mrb[0].mxu0 %v2376
        %v2453 = vpop.f32.mrb[0].mxu0
        %v2454 = vadd.f32 0.0, %v2453
        %v2455 = vpop.f32.mrb[0].mxu0
        %2456 = vdwg.mxu0
        %v2457 = vsel %vm1211, %v1052, 0
        %v2459 = vsel %vm1211, %v1054, 0
        %v2461 = vsel %vm1211, %v1116, 0
        %v2463 = vsel %vm1211, %v1118, 0
        %2465 = vmatprep.subr.mxu0 0.0
        %2466 = vmatpush1.xpose.msra.mxu0 %v2461
        %2467 = vmatprep.subr.mxu0 0.0
        %2468 = vmatpush1.xpose.msra.mxu0 %v2463
        %2469 = vmatprep.subr.mxu0 0.0
        %2470 = vmatpush1.xpose.msra.mxu0 0.0
        %2471 = vmatprep.subr.mxu0 0.0
        %2472 = vmatpush1.xpose.msra.mxu0 0.0
        %2473 = vmatprep.subr.mxu0 0.0
        %2474 = vmatpush1.xpose.msra.mxu0 0.0
        %2475 = vmatprep.subr.mxu0 0.0
        %2476 = vmatpush1.xpose.msra.mxu0 0.0
        %2477 = vmatprep.subr.mxu0 0.0
        %2478 = vmatpush1.xpose.msra.mxu0 0.0
        %2479 = vmatprep.subr.mxu0 0.0
        %2480 = vmatpush1.xpose.msra.mxu0 0.0
        %2481 = vmatprep.subr.mxu0 0.0
        %2482 = vmatpush1.xpose.msra.mxu0 0.0
        %2483 = vmatprep.subr.mxu0 0.0
        %2484 = vmatpush1.xpose.msra.mxu0 0.0
        %2485 = vmatprep.subr.mxu0 0.0
        %2486 = vmatpush1.xpose.msra.mxu0 0.0
        %2487 = vmatprep.subr.mxu0 0.0
        %2488 = vmatpush1.xpose.msra.mxu0 0.0
        %2489 = vmatprep.subr.mxu0 0.0
        %2490 = vmatpush1.xpose.msra.mxu0 0.0
        %2491 = vmatprep.subr.mxu0 0.0
        %2492 = vmatpush1.xpose.msra.mxu0 0.0
        %2493 = vmatprep.subr.mxu0 0.0
        %2494 = vmatpush1.xpose.msra.mxu0 0.0
        %2495 = vmatprep.subr.mxu0 0.0
        %2496 = vmatpush1.xpose.msra.mxu0 0.0
        %2497 = vmatprep.subr.mxu0 0.0
        %2498 = vmatpush1.xpose.msra.mxu0 0.0
        %2499 = vmatprep.subr.mxu0 0.0
        %2500 = vmatpush1.xpose.msra.mxu0 0.0
        %2501 = vmatprep.subr.mxu0 0.0
        %2502 = vmatpush1.xpose.msra.mxu0 0.0
        %2503 = vmatprep.subr.mxu0 0.0
        %2504 = vmatpush1.xpose.msra.mxu0 0.0
        %2505 = vmatprep.subr.mxu0 0.0
        %2506 = vmatpush1.xpose.msra.mxu0 0.0
        %2507 = vmatprep.subr.mxu0 0.0
        %2508 = vmatpush1.xpose.msra.mxu0 0.0
        %2509 = vmatprep.subr.mxu0 0.0
        %2510 = vmatpush1.xpose.msra.mxu0 0.0
        %2511 = vmatprep.subr.mxu0 0.0
        %2512 = vmatpush1.xpose.msra.mxu0 0.0
        %2513 = vmatprep.subr.mxu0 0.0
        %2514 = vmatpush1.xpose.msra.mxu0 0.0
        %2515 = vmatprep.subr.mxu0 0.0
        %2516 = vmatpush1.xpose.msra.mxu0 0.0
        %2517 = vmatprep.subr.mxu0 0.0
        %2518 = vmatpush1.xpose.msra.mxu0 0.0
        %2519 = vmatprep.subr.mxu0 0.0
        %2520 = vmatpush1.xpose.msra.mxu0 0.0
        %2521 = vmatprep.subr.mxu0 0.0
        %2522 = vmatpush1.xpose.msra.mxu0 0.0
        %2523 = vmatprep.subr.mxu0 0.0
        %2524 = vmatpush1.xpose.msra.mxu0 0.0
        %2525 = vmatprep.subr.mxu0 0.0
        %2526 = vmatpush1.xpose.msra.mxu0 0.0
        %2527 = vmatprep.subr.mxu0 0.0
        %2528 = vmatpush1.xpose.msra.mxu0 0.0
        %2529 = vmatprep.mubr.f32.mxu0 0.0
        %2530 = vmatmul.mubr.f32.gmra.mrb[0].mxu0 %v2457
        %v2531 = vpop.f32.mrb[0].mxu0
        %v2532 = vadd.f32 0.0, %v2531
        %v2533 = vpop.f32.mrb[0].mxu0
        %2534 = vmatprep.mubr.f32.mxu0 0.0
        %2535 = vmatmul.mubr.f32.gmra.mrb[0].mxu0 %v2459
        %v2536 = vpop.f32.mrb[0].mxu0
        %v2537 = vadd.f32 0.0, %v2536
        %v2538 = vpop.f32.mrb[0].mxu0
        %2539 = vdwg.mxu0
        %v2540 = vmul.f32 %v1287, 0.25
        %v2541 = vmul.f32 %v1292, 0.25
        %v2542 = vmul.f32 %v1370, 0.25
        %v2543 = vmul.f32 %v1375, 0.25
        %v2544 = vmul.f32 %v1453, 0.25
        %v2545 = vmul.f32 %v1458, 0.25
        %v2546 = vmul.f32 %v1536, 0.25
        %v2547 = vmul.f32 %v1541, 0.25
        %v2548 = vmul.f32 %v1619, 0.25
        %v2549 = vmul.f32 %v1624, 0.25
        %v2550 = vmul.f32 %v1702, 0.25
        %v2551 = vmul.f32 %v1707, 0.25
        %v2552 = vmul.f32 %v1785, 0.25
        %v2553 = vmul.f32 %v1790, 0.25
        %v2554 = vmul.f32 %v1868, 0.25
        %v2555 = vmul.f32 %v1873, 0.25
        %v2556 = vmul.f32 %v1951, 0.25
        %v2557 = vmul.f32 %v1956, 0.25
        %v2558 = vmul.f32 %v2034, 0.25
        %v2559 = vmul.f32 %v2039, 0.25
        %v2560 = vmul.f32 %v2117, 0.25
        %v2561 = vmul.f32 %v2122, 0.25
        %v2562 = vmul.f32 %v2200, 0.25
        %v2563 = vmul.f32 %v2205, 0.25
        %v2564 = vmul.f32 %v2283, 0.25
        %v2565 = vmul.f32 %v2288, 0.25
        %v2566 = vmul.f32 %v2366, 0.25
        %v2567 = vmul.f32 %v2371, 0.25
        %v2568 = vmul.f32 %v2449, 0.25
        %v2569 = vmul.f32 %v2454, 0.25
        %v2570 = vmul.f32 %v2532, 0.25
        %v2571 = vmul.f32 %v2537, 0.25
        %v2572 = vsel %vm1211, %v2540, -inf
        %2573 = vmax.xlane.f32.xlu0 %v2572
        %v2574 = vpop.xlane.xlu0 %2573
        %v2575 = vsel %vm1211, %v2541, -inf
        %2576 = vmax.xlane.f32.xlu0 %v2575
        %v2577 = vpop.xlane.xlu0 %2576
        %v2578 = vsel %vm1211, %v2542, -inf
        %2579 = vmax.xlane.f32.xlu0 %v2578
        %v2580 = vpop.xlane.xlu0 %2579
        %v2581 = vsel %vm1211, %v2543, -inf
        %2582 = vmax.xlane.f32.xlu0 %v2581
        %v2583 = vpop.xlane.xlu0 %2582
        %v2584 = vsel %vm1211, %v2544, -inf
        %2585 = vmax.xlane.f32.xlu0 %v2584
        %v2586 = vpop.xlane.xlu0 %2585
        %v2587 = vsel %vm1211, %v2545, -inf
        %2588 = vmax.xlane.f32.xlu0 %v2587
        %v2589 = vpop.xlane.xlu0 %2588
        %v2590 = vsel %vm1211, %v2546, -inf
        %2591 = vmax.xlane.f32.xlu0 %v2590
        %v2592 = vpop.xlane.xlu0 %2591
        %v2593 = vsel %vm1211, %v2547, -inf
        %2594 = vmax.xlane.f32.xlu0 %v2593
        %v2595 = vpop.xlane.xlu0 %2594
        %v2596 = vsel %vm1211, %v2548, -inf
        %2597 = vmax.xlane.f32.xlu0 %v2596
        %v2598 = vpop.xlane.xlu0 %2597
        %v2599 = vsel %vm1211, %v2549, -inf
        %2600 = vmax.xlane.f32.xlu0 %v2599
        %v2601 = vpop.xlane.xlu0 %2600
        %v2602 = vsel %vm1211, %v2550, -inf
        %2603 = vmax.xlane.f32.xlu0 %v2602
        %v2604 = vpop.xlane.xlu0 %2603
        %v2605 = vsel %vm1211, %v2551, -inf
        %2606 = vmax.xlane.f32.xlu0 %v2605
        %v2607 = vpop.xlane.xlu0 %2606
        %v2608 = vsel %vm1211, %v2552, -inf
        %2609 = vmax.xlane.f32.xlu0 %v2608
        %v2610 = vpop.xlane.xlu0 %2609
        %v2611 = vsel %vm1211, %v2553, -inf
        %2612 = vmax.xlane.f32.xlu0 %v2611
        %v2613 = vpop.xlane.xlu0 %2612
        %v2614 = vsel %vm1211, %v2554, -inf
        %2615 = vmax.xlane.f32.xlu0 %v2614
        %v2616 = vpop.xlane.xlu0 %2615
        %v2617 = vsel %vm1211, %v2555, -inf
        %2618 = vmax.xlane.f32.xlu0 %v2617
        %v2619 = vpop.xlane.xlu0 %2618
        %v2620 = vsel %vm1211, %v2556, -inf
        %2621 = vmax.xlane.f32.xlu0 %v2620
        %v2622 = vpop.xlane.xlu0 %2621
        %v2623 = vsel %vm1211, %v2557, -inf
        %2624 = vmax.xlane.f32.xlu0 %v2623
        %v2625 = vpop.xlane.xlu0 %2624
        %v2626 = vsel %vm1211, %v2558, -inf
        %2627 = vmax.xlane.f32.xlu0 %v2626
        %v2628 = vpop.xlane.xlu0 %2627
        %v2629 = vsel %vm1211, %v2559, -inf
        %2630 = vmax.xlane.f32.xlu0 %v2629
        %v2631 = vpop.xlane.xlu0 %2630
        %v2632 = vsel %vm1211, %v2560, -inf
        %2633 = vmax.xlane.f32.xlu0 %v2632
        %v2634 = vpop.xlane.xlu0 %2633
        %v2635 = vsel %vm1211, %v2561, -inf
        %2636 = vmax.xlane.f32.xlu0 %v2635
        %v2637 = vpop.xlane.xlu0 %2636
        %v2638 = vsel %vm1211, %v2562, -inf
        %2639 = vmax.xlane.f32.xlu0 %v2638
        %v2640 = vpop.xlane.xlu0 %2639
        %v2641 = vsel %vm1211, %v2563, -inf
        %2642 = vmax.xlane.f32.xlu0 %v2641
        %v2643 = vpop.xlane.xlu0 %2642
        %v2644 = vsel %vm1211, %v2564, -inf
        %2645 = vmax.xlane.f32.xlu0 %v2644
        %v2646 = vpop.xlane.xlu0 %2645
        %v2647 = vsel %vm1211, %v2565, -inf
        %2648 = vmax.xlane.f32.xlu0 %v2647
        %v2649 = vpop.xlane.xlu0 %2648
        %v2650 = vsel %vm1211, %v2566, -inf
        %2651 = vmax.xlane.f32.xlu0 %v2650
        %v2652 = vpop.xlane.xlu0 %2651
        %v2653 = vsel %vm1211, %v2567, -inf
        %2654 = vmax.xlane.f32.xlu0 %v2653
        %v2655 = vpop.xlane.xlu0 %2654
        %v2656 = vsel %vm1211, %v2568, -inf
        %2657 = vmax.xlane.f32.xlu0 %v2656
        %v2658 = vpop.xlane.xlu0 %2657
        %v2659 = vsel %vm1211, %v2569, -inf
        %2660 = vmax.xlane.f32.xlu0 %v2659
        %v2661 = vpop.xlane.xlu0 %2660
        %v2662 = vsel %vm1211, %v2570, -inf
        %2663 = vmax.xlane.f32.xlu0 %v2662
        %v2664 = vpop.xlane.xlu0 %2663
        %v2665 = vsel %vm1211, %v2571, -inf
        %2666 = vmax.xlane.f32.xlu0 %v2665
        %v2667 = vpop.xlane.xlu0 %2666
        %v2668 = vsub.f32 %v2540, %v2574
        %v2669 = vsub.f32 %v2541, %v2577
        %v2670 = vsub.f32 %v2542, %v2580
        %v2671 = vsub.f32 %v2543, %v2583
        %v2672 = vsub.f32 %v2544, %v2586
        %v2673 = vsub.f32 %v2545, %v2589
        %v2674 = vsub.f32 %v2546, %v2592
        %v2675 = vsub.f32 %v2547, %v2595
        %v2676 = vsub.f32 %v2548, %v2598
        %v2677 = vsub.f32 %v2549, %v2601
        %v2678 = vsub.f32 %v2550, %v2604
        %v2679 = vsub.f32 %v2551, %v2607
        %v2680 = vsub.f32 %v2552, %v2610
        %v2681 = vsub.f32 %v2553, %v2613
        %v2682 = vsub.f32 %v2554, %v2616
        %v2683 = vsub.f32 %v2555, %v2619
        %v2684 = vsub.f32 %v2556, %v2622
        %v2685 = vsub.f32 %v2557, %v2625
        %v2686 = vsub.f32 %v2558, %v2628
        %v2687 = vsub.f32 %v2559, %v2631
        %v2688 = vsub.f32 %v2560, %v2634
        %v2689 = vsub.f32 %v2561, %v2637
        %v2690 = vsub.f32 %v2562, %v2640
        %v2691 = vsub.f32 %v2563, %v2643
        %v2692 = vsub.f32 %v2564, %v2646
        %v2693 = vsub.f32 %v2565, %v2649
        %v2694 = vsub.f32 %v2566, %v2652
        %v2695 = vsub.f32 %v2567, %v2655
        %v2696 = vsub.f32 %v2568, %v2658
        %v2697 = vsub.f32 %v2569, %v2661
        %v2698 = vsub.f32 %v2570, %v2664
        %v2699 = vsub.f32 %v2571, %v2667
        %v2700 = vmul.f32 %v2668, 1.442695
        %v2701 = vpow.pop %v2700
        %v2702 = vmul.f32 %v2669, 1.442695
        %v2703 = vpow.pop %v2702
        %v2704 = vmul.f32 %v2670, 1.442695
        %v2705 = vpow.pop %v2704
        %v2706 = vmul.f32 %v2671, 1.442695
        %v2707 = vpow.pop %v2706
        %v2708 = vmul.f32 %v2672, 1.442695
        %v2709 = vpow.pop %v2708
        %v2710 = vmul.f32 %v2673, 1.442695
        %v2711 = vpow.pop %v2710
        %v2712 = vmul.f32 %v2674, 1.442695
        %v2713 = vpow.pop %v2712
        %v2714 = vmul.f32 %v2675, 1.442695
        %v2715 = vpow.pop %v2714
        %v2716 = vmul.f32 %v2676, 1.442695
        %v2717 = vpow.pop %v2716
        %v2718 = vmul.f32 %v2677, 1.442695
        %v2719 = vpow.pop %v2718
        %v2720 = vmul.f32 %v2678, 1.442695
        %v2721 = vpow.pop %v2720
        %v2722 = vmul.f32 %v2679, 1.442695
        %v2723 = vpow.pop %v2722
        %v2724 = vmul.f32 %v2680, 1.442695
        %v2725 = vpow.pop %v2724
        %v2726 = vmul.f32 %v2681, 1.442695
        %v2727 = vpow.pop %v2726
        %v2728 = vmul.f32 %v2682, 1.442695
        %v2729 = vpow.pop %v2728
        %v2730 = vmul.f32 %v2683, 1.442695
        %v2731 = vpow.pop %v2730
        %v2732 = vmul.f32 %v2684, 1.442695
        %v2733 = vpow.pop %v2732
        %v2734 = vmul.f32 %v2685, 1.442695
        %v2735 = vpow.pop %v2734
        %v2736 = vmul.f32 %v2686, 1.442695
        %v2737 = vpow.pop %v2736
        %v2738 = vmul.f32 %v2687, 1.442695
        %v2739 = vpow.pop %v2738
        %v2740 = vmul.f32 %v2688, 1.442695
        %v2741 = vpow.pop %v2740
        %v2742 = vmul.f32 %v2689, 1.442695
        %v2743 = vpow.pop %v2742
        %v2744 = vmul.f32 %v2690, 1.442695
        %v2745 = vpow.pop %v2744
        %v2746 = vmul.f32 %v2691, 1.442695
        %v2747 = vpow.pop %v2746
        %v2748 = vmul.f32 %v2692, 1.442695
        %v2749 = vpow.pop %v2748
        %v2750 = vmul.f32 %v2693, 1.442695
        %v2751 = vpow.pop %v2750
        %v2752 = vmul.f32 %v2694, 1.442695
        %v2753 = vpow.pop %v2752
        %v2754 = vmul.f32 %v2695, 1.442695
        %v2755 = vpow.pop %v2754
        %v2756 = vmul.f32 %v2696, 1.442695
        %v2757 = vpow.pop %v2756
        %v2758 = vmul.f32 %v2697, 1.442695
        %v2759 = vpow.pop %v2758
        %v2760 = vmul.f32 %v2698, 1.442695
        %v2761 = vpow.pop %v2760
        %v2762 = vmul.f32 %v2699, 1.442695
        %v2763 = vpow.pop %v2762
        %v2764 = vsel %vm1211, %v2701, 0.0
        %2765 = vadd.xlane.f32.xlu0 %v2764
        %v2766 = vpop.xlane.xlu0 %2765
        %v2767 = vsel %vm1211, %v2703, 0.0
        %2768 = vadd.xlane.f32.xlu0 %v2767
        %v2769 = vpop.xlane.xlu0 %2768
        %v2770 = vsel %vm1211, %v2705, 0.0
        %2771 = vadd.xlane.f32.xlu0 %v2770
        %v2772 = vpop.xlane.xlu0 %2771
        %v2773 = vsel %vm1211, %v2707, 0.0
        %2774 = vadd.xlane.f32.xlu0 %v2773
        %v2775 = vpop.xlane.xlu0 %2774
        %v2776 = vsel %vm1211, %v2709, 0.0
        %2777 = vadd.xlane.f32.xlu0 %v2776
        %v2778 = vpop.xlane.xlu0 %2777
        %v2779 = vsel %vm1211, %v2711, 0.0
        %2780 = vadd.xlane.f32.xlu0 %v2779
        %v2781 = vpop.xlane.xlu0 %2780
        %v2782 = vsel %vm1211, %v2713, 0.0
        %2783 = vadd.xlane.f32.xlu0 %v2782
        %v2784 = vpop.xlane.xlu0 %2783
        %v2785 = vsel %vm1211, %v2715, 0.0
        %2786 = vadd.xlane.f32.xlu0 %v2785
        %v2787 = vpop.xlane.xlu0 %2786
        %v2788 = vsel %vm1211, %v2717, 0.0
        %2789 = vadd.xlane.f32.xlu0 %v2788
        %v2790 = vpop.xlane.xlu0 %2789
        %v2791 = vsel %vm1211, %v2719, 0.0
        %2792 = vadd.xlane.f32.xlu0 %v2791
        %v2793 = vpop.xlane.xlu0 %2792
        %v2794 = vsel %vm1211, %v2721, 0.0
        %2795 = vadd.xlane.f32.xlu0 %v2794
        %v2796 = vpop.xlane.xlu0 %2795
        %v2797 = vsel %vm1211, %v2723, 0.0
        %2798 = vadd.xlane.f32.xlu0 %v2797
        %v2799 = vpop.xlane.xlu0 %2798
        %v2800 = vsel %vm1211, %v2725, 0.0
        %2801 = vadd.xlane.f32.xlu0 %v2800
        %v2802 = vpop.xlane.xlu0 %2801
        %v2803 = vsel %vm1211, %v2727, 0.0
        %2804 = vadd.xlane.f32.xlu0 %v2803
        %v2805 = vpop.xlane.xlu0 %2804
        %v2806 = vsel %vm1211, %v2729, 0.0
        %2807 = vadd.xlane.f32.xlu0 %v2806
        %v2808 = vpop.xlane.xlu0 %2807
        %v2809 = vsel %vm1211, %v2731, 0.0
        %2810 = vadd.xlane.f32.xlu0 %v2809
        %v2811 = vpop.xlane.xlu0 %2810
        %v2812 = vsel %vm1211, %v2733, 0.0
        %2813 = vadd.xlane.f32.xlu0 %v2812
        %v2814 = vpop.xlane.xlu0 %2813
        %v2815 = vsel %vm1211, %v2735, 0.0
        %2816 = vadd.xlane.f32.xlu0 %v2815
        %v2817 = vpop.xlane.xlu0 %2816
        %v2818 = vsel %vm1211, %v2737, 0.0
        %2819 = vadd.xlane.f32.xlu0 %v2818
        %v2820 = vpop.xlane.xlu0 %2819
        %v2821 = vsel %vm1211, %v2739, 0.0
        %2822 = vadd.xlane.f32.xlu0 %v2821
        %v2823 = vpop.xlane.xlu0 %2822
        %v2824 = vsel %vm1211, %v2741, 0.0
        %2825 = vadd.xlane.f32.xlu0 %v2824
        %v2826 = vpop.xlane.xlu0 %2825
        %v2827 = vsel %vm1211, %v2743, 0.0
        %2828 = vadd.xlane.f32.xlu0 %v2827
        %v2829 = vpop.xlane.xlu0 %2828
        %v2830 = vsel %vm1211, %v2745, 0.0
        %2831 = vadd.xlane.f32.xlu0 %v2830
        %v2832 = vpop.xlane.xlu0 %2831
        %v2833 = vsel %vm1211, %v2747, 0.0
        %2834 = vadd.xlane.f32.xlu0 %v2833
        %v2835 = vpop.xlane.xlu0 %2834
        %v2836 = vsel %vm1211, %v2749, 0.0
        %2837 = vadd.xlane.f32.xlu0 %v2836
        %v2838 = vpop.xlane.xlu0 %2837
        %v2839 = vsel %vm1211, %v2751, 0.0
        %2840 = vadd.xlane.f32.xlu0 %v2839
        %v2841 = vpop.xlane.xlu0 %2840
        %v2842 = vsel %vm1211, %v2753, 0.0
        %2843 = vadd.xlane.f32.xlu0 %v2842
        %v2844 = vpop.xlane.xlu0 %2843
        %v2845 = vsel %vm1211, %v2755, 0.0
        %2846 = vadd.xlane.f32.xlu0 %v2845
        %v2847 = vpop.xlane.xlu0 %2846
        %v2848 = vsel %vm1211, %v2757, 0.0
        %2849 = vadd.xlane.f32.xlu0 %v2848
        %v2850 = vpop.xlane.xlu0 %2849
        %v2851 = vsel %vm1211, %v2759, 0.0
        %2852 = vadd.xlane.f32.xlu0 %v2851
        %v2853 = vpop.xlane.xlu0 %2852
        %v2854 = vsel %vm1211, %v2761, 0.0
        %2855 = vadd.xlane.f32.xlu0 %v2854
        %v2856 = vpop.xlane.xlu0 %2855
        %v2857 = vsel %vm1211, %v2763, 0.0
        %2858 = vadd.xlane.f32.xlu0 %v2857
        %v2859 = vpop.xlane.xlu0 %2858
        %v2860 = vrcp.pop %v2766
        %v2861 = vmul.f32 %v2701, %v2860
        %v2862 = vrcp.pop %v2769
        %v2863 = vmul.f32 %v2703, %v2862
        %v2864 = vrcp.pop %v2772
        %v2865 = vmul.f32 %v2705, %v2864
        %v2866 = vrcp.pop %v2775
        %v2867 = vmul.f32 %v2707, %v2866
        %v2868 = vrcp.pop %v2778
        %v2869 = vmul.f32 %v2709, %v2868
        %v2870 = vrcp.pop %v2781
        %v2871 = vmul.f32 %v2711, %v2870
        %v2872 = vrcp.pop %v2784
        %v2873 = vmul.f32 %v2713, %v2872
        %v2874 = vrcp.pop %v2787
        %v2875 = vmul.f32 %v2715, %v2874
        %v2876 = vrcp.pop %v2790
        %v2877 = vmul.f32 %v2717, %v2876
        %v2878 = vrcp.pop %v2793
        %v2879 = vmul.f32 %v2719, %v2878
        %v2880 = vrcp.pop %v2796
        %v2881 = vmul.f32 %v2721, %v2880
        %v2882 = vrcp.pop %v2799
        %v2883 = vmul.f32 %v2723, %v2882
        %v2884 = vrcp.pop %v2802
        %v2885 = vmul.f32 %v2725, %v2884
        %v2886 = vrcp.pop %v2805
        %v2887 = vmul.f32 %v2727, %v2886
        %v2888 = vrcp.pop %v2808
        %v2889 = vmul.f32 %v2729, %v2888
        %v2890 = vrcp.pop %v2811
        %v2891 = vmul.f32 %v2731, %v2890
        %v2892 = vrcp.pop %v2814
        %v2893 = vmul.f32 %v2733, %v2892
        %v2894 = vrcp.pop %v2817
        %v2895 = vmul.f32 %v2735, %v2894
        %v2896 = vrcp.pop %v2820
        %v2897 = vmul.f32 %v2737, %v2896
        %v2898 = vrcp.pop %v2823
        %v2899 = vmul.f32 %v2739, %v2898
        %v2900 = vrcp.pop %v2826
        %v2901 = vmul.f32 %v2741, %v2900
        %v2902 = vrcp.pop %v2829
        %v2903 = vmul.f32 %v2743, %v2902
        %v2904 = vrcp.pop %v2832
        %v2905 = vmul.f32 %v2745, %v2904
        %v2906 = vrcp.pop %v2835
        %v2907 = vmul.f32 %v2747, %v2906
        %v2908 = vrcp.pop %v2838
        %v2909 = vmul.f32 %v2749, %v2908
        %v2910 = vrcp.pop %v2841
        %v2911 = vmul.f32 %v2751, %v2910
        %v2912 = vrcp.pop %v2844
        %v2913 = vmul.f32 %v2753, %v2912
        %v2914 = vrcp.pop %v2847
        %v2915 = vmul.f32 %v2755, %v2914
        %v2916 = vrcp.pop %v2850
        %v2917 = vmul.f32 %v2757, %v2916
        %v2918 = vrcp.pop %v2853
        %v2919 = vmul.f32 %v2759, %v2918
        %v2920 = vrcp.pop %v2856
        %v2921 = vmul.f32 %v2761, %v2920
        %v2922 = vrcp.pop %v2859
        %v2923 = vmul.f32 %v2763, %v2922
        %v2925 = vsel %vm1211, %v2861, 0
        %v2928 = vsel %vm1211, %v2863, 0
        %2930 = vmatprep.subr.mxu0 0.0
        %2931 = vmatpush1.msra.mxu0 %v1119
        %2932 = vmatprep.subr.mxu0 0.0
        %2933 = vmatpush1.msra.mxu0 %v1120
        %2934 = vmatprep.subr.mxu0 0.0
        %2935 = vmatpush1.msra.mxu0 0.0
        %2936 = vmatprep.subr.mxu0 0.0
        %2937 = vmatpush1.msra.mxu0 0.0
        %2938 = vmatprep.subr.mxu0 0.0
        %2939 = vmatpush1.msra.mxu0 0.0
        %2940 = vmatprep.subr.mxu0 0.0
        %2941 = vmatpush1.msra.mxu0 0.0
        %2942 = vmatprep.subr.mxu0 0.0
        %2943 = vmatpush1.msra.mxu0 0.0
        %2944 = vmatprep.subr.mxu0 0.0
        %2945 = vmatpush1.msra.mxu0 0.0
        %2946 = vmatprep.subr.mxu0 0.0
        %2947 = vmatpush1.msra.mxu0 0.0
        %2948 = vmatprep.subr.mxu0 0.0
        %2949 = vmatpush1.msra.mxu0 0.0
        %2950 = vmatprep.subr.mxu0 0.0
        %2951 = vmatpush1.msra.mxu0 0.0
        %2952 = vmatprep.subr.mxu0 0.0
        %2953 = vmatpush1.msra.mxu0 0.0
        %2954 = vmatprep.subr.mxu0 0.0
        %2955 = vmatpush1.msra.mxu0 0.0
        %2956 = vmatprep.subr.mxu0 0.0
        %2957 = vmatpush1.msra.mxu0 0.0
        %2958 = vmatprep.subr.mxu0 0.0
        %2959 = vmatpush1.msra.mxu0 0.0
        %2960 = vmatprep.subr.mxu0 0.0
        %2961 = vmatpush1.msra.mxu0 0.0
        %2962 = vmatprep.subr.mxu0 0.0
        %2963 = vmatpush1.msra.mxu0 0.0
        %2964 = vmatprep.subr.mxu0 0.0
        %2965 = vmatpush1.msra.mxu0 0.0
        %2966 = vmatprep.subr.mxu0 0.0
        %2967 = vmatpush1.msra.mxu0 0.0
        %2968 = vmatprep.subr.mxu0 0.0
        %2969 = vmatpush1.msra.mxu0 0.0
        %2970 = vmatprep.subr.mxu0 0.0
        %2971 = vmatpush1.msra.mxu0 0.0
        %2972 = vmatprep.subr.mxu0 0.0
        %2973 = vmatpush1.msra.mxu0 0.0
        %2974 = vmatprep.subr.mxu0 0.0
        %2975 = vmatpush1.msra.mxu0 0.0
        %2976 = vmatprep.subr.mxu0 0.0
        %2977 = vmatpush1.msra.mxu0 0.0
        %2978 = vmatprep.subr.mxu0 0.0
        %2979 = vmatpush1.msra.mxu0 0.0
        %2980 = vmatprep.subr.mxu0 0.0
        %2981 = vmatpush1.msra.mxu0 0.0
        %2982 = vmatprep.subr.mxu0 0.0
        %2983 = vmatpush1.msra.mxu0 0.0
        %2984 = vmatprep.subr.mxu0 0.0
        %2985 = vmatpush1.msra.mxu0 0.0
        %2986 = vmatprep.subr.mxu0 0.0
        %2987 = vmatpush1.msra.mxu0 0.0
        %2988 = vmatprep.subr.mxu0 0.0
        %2989 = vmatpush1.msra.mxu0 0.0
        %2990 = vmatprep.subr.mxu0 0.0
        %2991 = vmatpush1.msra.mxu0 0.0
        %2992 = vmatprep.subr.mxu0 0.0
        %2993 = vmatpush1.msra.mxu0 0.0
        %2994 = vmatprep.mubr.f32.mxu0 0.0
        %2995 = vmatmul.mubr.f32.gmra.mrb[0].mxu0 %v2925
        %v2996 = vpop.f32.mrb[0].mxu0
        %v2997 = vadd.f32 0.0, %v2996
        %v2998 = vpop.f32.mrb[0].mxu0
        %2999 = vmatprep.mubr.f32.mxu0 0.0
        %3000 = vmatmul.mubr.f32.gmra.mrb[0].mxu0 %v2928
        %v3001 = vpop.f32.mrb[0].mxu0
        %v3002 = vadd.f32 0.0, %v3001
        %v3003 = vpop.f32.mrb[0].mxu0
        %3004 = vdwg.mxu0
        %v3006 = vsel %vm1211, %v2865, 0
        %v3009 = vsel %vm1211, %v2867, 0
        %3011 = vmatprep.subr.mxu0 0.0
        %3012 = vmatpush1.msra.mxu0 %v1126
        %3013 = vmatprep.subr.mxu0 0.0
        %3014 = vmatpush1.msra.mxu0 %v1128
        %3015 = vmatprep.subr.mxu0 0.0
        %3016 = vmatpush1.msra.mxu0 0.0
        %3017 = vmatprep.subr.mxu0 0.0
        %3018 = vmatpush1.msra.mxu0 0.0
        %3019 = vmatprep.subr.mxu0 0.0
        %3020 = vmatpush1.msra.mxu0 0.0
        %3021 = vmatprep.subr.mxu0 0.0
        %3022 = vmatpush1.msra.mxu0 0.0
        %3023 = vmatprep.subr.mxu0 0.0
        %3024 = vmatpush1.msra.mxu0 0.0
        %3025 = vmatprep.subr.mxu0 0.0
        %3026 = vmatpush1.msra.mxu0 0.0
        %3027 = vmatprep.subr.mxu0 0.0
        %3028 = vmatpush1.msra.mxu0 0.0
        %3029 = vmatprep.subr.mxu0 0.0
        %3030 = vmatpush1.msra.mxu0 0.0
        %3031 = vmatprep.subr.mxu0 0.0
        %3032 = vmatpush1.msra.mxu0 0.0
        %3033 = vmatprep.subr.mxu0 0.0
        %3034 = vmatpush1.msra.mxu0 0.0
        %3035 = vmatprep.subr.mxu0 0.0
        %3036 = vmatpush1.msra.mxu0 0.0
        %3037 = vmatprep.subr.mxu0 0.0
        %3038 = vmatpush1.msra.mxu0 0.0
        %3039 = vmatprep.subr.mxu0 0.0
        %3040 = vmatpush1.msra.mxu0 0.0
        %3041 = vmatprep.subr.mxu0 0.0
        %3042 = vmatpush1.msra.mxu0 0.0
        %3043 = vmatprep.subr.mxu0 0.0
        %3044 = vmatpush1.msra.mxu0 0.0
        %3045 = vmatprep.subr.mxu0 0.0
        %3046 = vmatpush1.msra.mxu0 0.0
        %3047 = vmatprep.subr.mxu0 0.0
        %3048 = vmatpush1.msra.mxu0 0.0
        %3049 = vmatprep.subr.mxu0 0.0
        %3050 = vmatpush1.msra.mxu0 0.0
        %3051 = vmatprep.subr.mxu0 0.0
        %3052 = vmatpush1.msra.mxu0 0.0
        %3053 = vmatprep.subr.mxu0 0.0
        %3054 = vmatpush1.msra.mxu0 0.0
        %3055 = vmatprep.subr.mxu0 0.0
        %3056 = vmatpush1.msra.mxu0 0.0
        %3057 = vmatprep.subr.mxu0 0.0
        %3058 = vmatpush1.msra.mxu0 0.0
        %3059 = vmatprep.subr.mxu0 0.0
        %3060 = vmatpush1.msra.mxu0 0.0
        %3061 = vmatprep.subr.mxu0 0.0
        %3062 = vmatpush1.msra.mxu0 0.0
        %3063 = vmatprep.subr.mxu0 0.0
        %3064 = vmatpush1.msra.mxu0 0.0
        %3065 = vmatprep.subr.mxu0 0.0
        %3066 = vmatpush1.msra.mxu0 0.0
        %3067 = vmatprep.subr.mxu0 0.0
        %3068 = vmatpush1.msra.mxu0 0.0
        %3069 = vmatprep.subr.mxu0 0.0
        %3070 = vmatpush1.msra.mxu0 0.0
        %3071 = vmatprep.subr.mxu0 0.0
        %3072 = vmatpush1.msra.mxu0 0.0
        %3073 = vmatprep.subr.mxu0 0.0
        %3074 = vmatpush1.msra.mxu0 0.0
        %3075 = vmatprep.mubr.f32.mxu0 0.0
        %3076 = vmatmul.mubr.f32.gmra.mrb[0].mxu0 %v3006
        %v3077 = vpop.f32.mrb[0].mxu0
        %v3078 = vadd.f32 0.0, %v3077
        %v3079 = vpop.f32.mrb[0].mxu0
        %3080 = vmatprep.mubr.f32.mxu0 0.0
        %3081 = vmatmul.mubr.f32.gmra.mrb[0].mxu0 %v3009
        %v3082 = vpop.f32.mrb[0].mxu0
        %v3083 = vadd.f32 0.0, %v3082
        %v3084 = vpop.f32.mrb[0].mxu0
        %3085 = vdwg.mxu0
        %v3087 = vsel %vm1211, %v2869, 0
        %v3090 = vsel %vm1211, %v2871, 0
        %3092 = vmatprep.subr.mxu0 0.0
        %3093 = vmatpush1.msra.mxu0 %v1132
        %3094 = vmatprep.subr.mxu0 0.0
        %3095 = vmatpush1.msra.mxu0 %v1134
        %3096 = vmatprep.subr.mxu0 0.0
        %3097 = vmatpush1.msra.mxu0 0.0
        %3098 = vmatprep.subr.mxu0 0.0
        %3099 = vmatpush1.msra.mxu0 0.0
        %3100 = vmatprep.subr.mxu0 0.0
        %3101 = vmatpush1.msra.mxu0 0.0
        %3102 = vmatprep.subr.mxu0 0.0
        %3103 = vmatpush1.msra.mxu0 0.0
        %3104 = vmatprep.subr.mxu0 0.0
        %3105 = vmatpush1.msra.mxu0 0.0
        %3106 = vmatprep.subr.mxu0 0.0
        %3107 = vmatpush1.msra.mxu0 0.0
        %3108 = vmatprep.subr.mxu0 0.0
        %3109 = vmatpush1.msra.mxu0 0.0
        %3110 = vmatprep.subr.mxu0 0.0
        %3111 = vmatpush1.msra.mxu0 0.0
        %3112 = vmatprep.subr.mxu0 0.0
        %3113 = vmatpush1.msra.mxu0 0.0
        %3114 = vmatprep.subr.mxu0 0.0
        %3115 = vmatpush1.msra.mxu0 0.0
        %3116 = vmatprep.subr.mxu0 0.0
        %3117 = vmatpush1.msra.mxu0 0.0
        %3118 = vmatprep.subr.mxu0 0.0
        %3119 = vmatpush1.msra.mxu0 0.0
        %3120 = vmatprep.subr.mxu0 0.0
        %3121 = vmatpush1.msra.mxu0 0.0
        %3122 = vmatprep.subr.mxu0 0.0
        %3123 = vmatpush1.msra.mxu0 0.0
        %3124 = vmatprep.subr.mxu0 0.0
        %3125 = vmatpush1.msra.mxu0 0.0
        %3126 = vmatprep.subr.mxu0 0.0
        %3127 = vmatpush1.msra.mxu0 0.0
        %3128 = vmatprep.subr.mxu0 0.0
        %3129 = vmatpush1.msra.mxu0 0.0
        %3130 = vmatprep.subr.mxu0 0.0
        %3131 = vmatpush1.msra.mxu0 0.0
        %3132 = vmatprep.subr.mxu0 0.0
        %3133 = vmatpush1.msra.mxu0 0.0
        %3134 = vmatprep.subr.mxu0 0.0
        %3135 = vmatpush1.msra.mxu0 0.0
        %3136 = vmatprep.subr.mxu0 0.0
        %3137 = vmatpush1.msra.mxu0 0.0
        %3138 = vmatprep.subr.mxu0 0.0
        %3139 = vmatpush1.msra.mxu0 0.0
        %3140 = vmatprep.subr.mxu0 0.0
        %3141 = vmatpush1.msra.mxu0 0.0
        %3142 = vmatprep.subr.mxu0 0.0
        %3143 = vmatpush1.msra.mxu0 0.0
        %3144 = vmatprep.subr.mxu0 0.0
        %3145 = vmatpush1.msra.mxu0 0.0
        %3146 = vmatprep.subr.mxu0 0.0
        %3147 = vmatpush1.msra.mxu0 0.0
        %3148 = vmatprep.subr.mxu0 0.0
        %3149 = vmatpush1.msra.mxu0 0.0
        %3150 = vmatprep.subr.mxu0 0.0
        %3151 = vmatpush1.msra.mxu0 0.0
        %3152 = vmatprep.subr.mxu0 0.0
        %3153 = vmatpush1.msra.mxu0 0.0
        %3154 = vmatprep.subr.mxu0 0.0
        %3155 = vmatpush1.msra.mxu0 0.0
        %3156 = vmatprep.mubr.f32.mxu0 0.0
        %3157 = vmatmul.mubr.f32.gmra.mrb[0].mxu0 %v3087
        %v3158 = vpop.f32.mrb[0].mxu0
        %v3159 = vadd.f32 0.0, %v3158
        %v3160 = vpop.f32.mrb[0].mxu0
        %3161 = vmatprep.mubr.f32.mxu0 0.0
        %3162 = vmatmul.mubr.f32.gmra.mrb[0].mxu0 %v3090
        %v3163 = vpop.f32.mrb[0].mxu0
        %v3164 = vadd.f32 0.0, %v3163
        %v3165 = vpop.f32.mrb[0].mxu0
        %3166 = vdwg.mxu0
        %v3168 = vsel %vm1211, %v2873, 0
        %v3171 = vsel %vm1211, %v2875, 0
        %3173 = vmatprep.subr.mxu0 0.0
        %3174 = vmatpush1.msra.mxu0 %v1138
        %3175 = vmatprep.subr.mxu0 0.0
        %3176 = vmatpush1.msra.mxu0 %v1140
        %3177 = vmatprep.subr.mxu0 0.0
        %3178 = vmatpush1.msra.mxu0 0.0
        %3179 = vmatprep.subr.mxu0 0.0
        %3180 = vmatpush1.msra.mxu0 0.0
        %3181 = vmatprep.subr.mxu0 0.0
        %3182 = vmatpush1.msra.mxu0 0.0
        %3183 = vmatprep.subr.mxu0 0.0
        %3184 = vmatpush1.msra.mxu0 0.0
        %3185 = vmatprep.subr.mxu0 0.0
        %3186 = vmatpush1.msra.mxu0 0.0
        %3187 = vmatprep.subr.mxu0 0.0
        %3188 = vmatpush1.msra.mxu0 0.0
        %3189 = vmatprep.subr.mxu0 0.0
        %3190 = vmatpush1.msra.mxu0 0.0
        %3191 = vmatprep.subr.mxu0 0.0
        %3192 = vmatpush1.msra.mxu0 0.0
        %3193 = vmatprep.subr.mxu0 0.0
        %3194 = vmatpush1.msra.mxu0 0.0
        %3195 = vmatprep.subr.mxu0 0.0
        %3196 = vmatpush1.msra.mxu0 0.0
        %3197 = vmatprep.subr.mxu0 0.0
        %3198 = vmatpush1.msra.mxu0 0.0
        %3199 = vmatprep.subr.mxu0 0.0
        %3200 = vmatpush1.msra.mxu0 0.0
        %3201 = vmatprep.subr.mxu0 0.0
        %3202 = vmatpush1.msra.mxu0 0.0
        %3203 = vmatprep.subr.mxu0 0.0
        %3204 = vmatpush1.msra.mxu0 0.0
        %3205 = vmatprep.subr.mxu0 0.0
        %3206 = vmatpush1.msra.mxu0 0.0
        %3207 = vmatprep.subr.mxu0 0.0
        %3208 = vmatpush1.msra.mxu0 0.0
        %3209 = vmatprep.subr.mxu0 0.0
        %3210 = vmatpush1.msra.mxu0 0.0
        %3211 = vmatprep.subr.mxu0 0.0
        %3212 = vmatpush1.msra.mxu0 0.0
        %3213 = vmatprep.subr.mxu0 0.0
        %3214 = vmatpush1.msra.mxu0 0.0
        %3215 = vmatprep.subr.mxu0 0.0
        %3216 = vmatpush1.msra.mxu0 0.0
        %3217 = vmatprep.subr.mxu0 0.0
        %3218 = vmatpush1.msra.mxu0 0.0
        %3219 = vmatprep.subr.mxu0 0.0
        %3220 = vmatpush1.msra.mxu0 0.0
        %3221 = vmatprep.subr.mxu0 0.0
        %3222 = vmatpush1.msra.mxu0 0.0
        %3223 = vmatprep.subr.mxu0 0.0
        %3224 = vmatpush1.msra.mxu0 0.0
        %3225 = vmatprep.subr.mxu0 0.0
        %3226 = vmatpush1.msra.mxu0 0.0
        %3227 = vmatprep.subr.mxu0 0.0
        %3228 = vmatpush1.msra.mxu0 0.0
        %3229 = vmatprep.subr.mxu0 0.0
        %3230 = vmatpush1.msra.mxu0 0.0
        %3231 = vmatprep.subr.mxu0 0.0
        %3232 = vmatpush1.msra.mxu0 0.0
        %3233 = vmatprep.subr.mxu0 0.0
        %3234 = vmatpush1.msra.mxu0 0.0
        %3235 = vmatprep.subr.mxu0 0.0
        %3236 = vmatpush1.msra.mxu0 0.0
        %3237 = vmatprep.mubr.f32.mxu0 0.0
        %3238 = vmatmul.mubr.f32.gmra.mrb[0].mxu0 %v3168
        %v3239 = vpop.f32.mrb[0].mxu0
        %v3240 = vadd.f32 0.0, %v3239
        %v3241 = vpop.f32.mrb[0].mxu0
        %3242 = vmatprep.mubr.f32.mxu0 0.0
        %3243 = vmatmul.mubr.f32.gmra.mrb[0].mxu0 %v3171
        %v3244 = vpop.f32.mrb[0].mxu0
        %v3245 = vadd.f32 0.0, %v3244
        %v3246 = vpop.f32.mrb[0].mxu0
        %3247 = vdwg.mxu0
        %v3249 = vsel %vm1211, %v2877, 0
        %v3252 = vsel %vm1211, %v2879, 0
        %3254 = vmatprep.subr.mxu0 0.0
        %3255 = vmatpush1.msra.mxu0 %v1144
        %3256 = vmatprep.subr.mxu0 0.0
        %3257 = vmatpush1.msra.mxu0 %v1146
        %3258 = vmatprep.subr.mxu0 0.0
        %3259 = vmatpush1.msra.mxu0 0.0
        %3260 = vmatprep.subr.mxu0 0.0
        %3261 = vmatpush1.msra.mxu0 0.0
        %3262 = vmatprep.subr.mxu0 0.0
        %3263 = vmatpush1.msra.mxu0 0.0
        %3264 = vmatprep.subr.mxu0 0.0
        %3265 = vmatpush1.msra.mxu0 0.0
        %3266 = vmatprep.subr.mxu0 0.0
        %3267 = vmatpush1.msra.mxu0 0.0
        %3268 = vmatprep.subr.mxu0 0.0
        %3269 = vmatpush1.msra.mxu0 0.0
        %3270 = vmatprep.subr.mxu0 0.0
        %3271 = vmatpush1.msra.mxu0 0.0
        %3272 = vmatprep.subr.mxu0 0.0
        %3273 = vmatpush1.msra.mxu0 0.0
        %3274 = vmatprep.subr.mxu0 0.0
        %3275 = vmatpush1.msra.mxu0 0.0
        %3276 = vmatprep.subr.mxu0 0.0
        %3277 = vmatpush1.msra.mxu0 0.0
        %3278 = vmatprep.subr.mxu0 0.0
        %3279 = vmatpush1.msra.mxu0 0.0
        %3280 = vmatprep.subr.mxu0 0.0
        %3281 = vmatpush1.msra.mxu0 0.0
        %3282 = vmatprep.subr.mxu0 0.0
        %3283 = vmatpush1.msra.mxu0 0.0
        %3284 = vmatprep.subr.mxu0 0.0
        %3285 = vmatpush1.msra.mxu0 0.0
        %3286 = vmatprep.subr.mxu0 0.0
        %3287 = vmatpush1.msra.mxu0 0.0
        %3288 = vmatprep.subr.mxu0 0.0
        %3289 = vmatpush1.msra.mxu0 0.0
        %3290 = vmatprep.subr.mxu0 0.0
        %3291 = vmatpush1.msra.mxu0 0.0
        %3292 = vmatprep.subr.mxu0 0.0
        %3293 = vmatpush1.msra.mxu0 0.0
        %3294 = vmatprep.subr.mxu0 0.0
        %3295 = vmatpush1.msra.mxu0 0.0
        %3296 = vmatprep.subr.mxu0 0.0
        %3297 = vmatpush1.msra.mxu0 0.0
        %3298 = vmatprep.subr.mxu0 0.0
        %3299 = vmatpush1.msra.mxu0 0.0
        %3300 = vmatprep.subr.mxu0 0.0
        %3301 = vmatpush1.msra.mxu0 0.0
        %3302 = vmatprep.subr.mxu0 0.0
        %3303 = vmatpush1.msra.mxu0 0.0
        %3304 = vmatprep.subr.mxu0 0.0
        %3305 = vmatpush1.msra.mxu0 0.0
        %3306 = vmatprep.subr.mxu0 0.0
        %3307 = vmatpush1.msra.mxu0 0.0
        %3308 = vmatprep.subr.mxu0 0.0
        %3309 = vmatpush1.msra.mxu0 0.0
        %3310 = vmatprep.subr.mxu0 0.0
        %3311 = vmatpush1.msra.mxu0 0.0
        %3312 = vmatprep.subr.mxu0 0.0
        %3313 = vmatpush1.msra.mxu0 0.0
        %3314 = vmatprep.subr.mxu0 0.0
        %3315 = vmatpush1.msra.mxu0 0.0
        %3316 = vmatprep.subr.mxu0 0.0
        %3317 = vmatpush1.msra.mxu0 0.0
        %3318 = vmatprep.mubr.f32.mxu0 0.0
        %3319 = vmatmul.mubr.f32.gmra.mrb[0].mxu0 %v3249
        %v3320 = vpop.f32.mrb[0].mxu0
        %v3321 = vadd.f32 0.0, %v3320
        %v3322 = vpop.f32.mrb[0].mxu0
        %3323 = vmatprep.mubr.f32.mxu0 0.0
        %3324 = vmatmul.mubr.f32.gmra.mrb[0].mxu0 %v3252
        %v3325 = vpop.f32.mrb[0].mxu0
        %v3326 = vadd.f32 0.0, %v3325
        %v3327 = vpop.f32.mrb[0].mxu0
        %3328 = vdwg.mxu0
        %v3330 = vsel %vm1211, %v2881, 0
        %v3333 = vsel %vm1211, %v2883, 0
        %3335 = vmatprep.subr.mxu0 0.0
        %3336 = vmatpush1.msra.mxu0 %v1150
        %3337 = vmatprep.subr.mxu0 0.0
        %3338 = vmatpush1.msra.mxu0 %v1152
        %3339 = vmatprep.subr.mxu0 0.0
        %3340 = vmatpush1.msra.mxu0 0.0
        %3341 = vmatprep.subr.mxu0 0.0
        %3342 = vmatpush1.msra.mxu0 0.0
        %3343 = vmatprep.subr.mxu0 0.0
        %3344 = vmatpush1.msra.mxu0 0.0
        %3345 = vmatprep.subr.mxu0 0.0
        %3346 = vmatpush1.msra.mxu0 0.0
        %3347 = vmatprep.subr.mxu0 0.0
        %3348 = vmatpush1.msra.mxu0 0.0
        %3349 = vmatprep.subr.mxu0 0.0
        %3350 = vmatpush1.msra.mxu0 0.0
        %3351 = vmatprep.subr.mxu0 0.0
        %3352 = vmatpush1.msra.mxu0 0.0
        %3353 = vmatprep.subr.mxu0 0.0
        %3354 = vmatpush1.msra.mxu0 0.0
        %3355 = vmatprep.subr.mxu0 0.0
        %3356 = vmatpush1.msra.mxu0 0.0
        %3357 = vmatprep.subr.mxu0 0.0
        %3358 = vmatpush1.msra.mxu0 0.0
        %3359 = vmatprep.subr.mxu0 0.0
        %3360 = vmatpush1.msra.mxu0 0.0
        %3361 = vmatprep.subr.mxu0 0.0
        %3362 = vmatpush1.msra.mxu0 0.0
        %3363 = vmatprep.subr.mxu0 0.0
        %3364 = vmatpush1.msra.mxu0 0.0
        %3365 = vmatprep.subr.mxu0 0.0
        %3366 = vmatpush1.msra.mxu0 0.0
        %3367 = vmatprep.subr.mxu0 0.0
        %3368 = vmatpush1.msra.mxu0 0.0
        %3369 = vmatprep.subr.mxu0 0.0
        %3370 = vmatpush1.msra.mxu0 0.0
        %3371 = vmatprep.subr.mxu0 0.0
        %3372 = vmatpush1.msra.mxu0 0.0
        %3373 = vmatprep.subr.mxu0 0.0
        %3374 = vmatpush1.msra.mxu0 0.0
        %3375 = vmatprep.subr.mxu0 0.0
        %3376 = vmatpush1.msra.mxu0 0.0
        %3377 = vmatprep.subr.mxu0 0.0
        %3378 = vmatpush1.msra.mxu0 0.0
        %3379 = vmatprep.subr.mxu0 0.0
        %3380 = vmatpush1.msra.mxu0 0.0
        %3381 = vmatprep.subr.mxu0 0.0
        %3382 = vmatpush1.msra.mxu0 0.0
        %3383 = vmatprep.subr.mxu0 0.0
        %3384 = vmatpush1.msra.mxu0 0.0
        %3385 = vmatprep.subr.mxu0 0.0
        %3386 = vmatpush1.msra.mxu0 0.0
        %3387 = vmatprep.subr.mxu0 0.0
        %3388 = vmatpush1.msra.mxu0 0.0
        %3389 = vmatprep.subr.mxu0 0.0
        %3390 = vmatpush1.msra.mxu0 0.0
        %3391 = vmatprep.subr.mxu0 0.0
        %3392 = vmatpush1.msra.mxu0 0.0
        %3393 = vmatprep.subr.mxu0 0.0
        %3394 = vmatpush1.msra.mxu0 0.0
        %3395 = vmatprep.subr.mxu0 0.0
        %3396 = vmatpush1.msra.mxu0 0.0
        %3397 = vmatprep.subr.mxu0 0.0
        %3398 = vmatpush1.msra.mxu0 0.0
        %3399 = vmatprep.mubr.f32.mxu0 0.0
        %3400 = vmatmul.mubr.f32.gmra.mrb[0].mxu0 %v3330
        %v3401 = vpop.f32.mrb[0].mxu0
        %v3402 = vadd.f32 0.0, %v3401
        %v3403 = vpop.f32.mrb[0].mxu0
        %3404 = vmatprep.mubr.f32.mxu0 0.0
        %3405 = vmatmul.mubr.f32.gmra.mrb[0].mxu0 %v3333
        %v3406 = vpop.f32.mrb[0].mxu0
        %v3407 = vadd.f32 0.0, %v3406
        %v3408 = vpop.f32.mrb[0].mxu0
        %3409 = vdwg.mxu0
        %v3411 = vsel %vm1211, %v2885, 0
        %v3414 = vsel %vm1211, %v2887, 0
        %3416 = vmatprep.subr.mxu0 0.0
        %3417 = vmatpush1.msra.mxu0 %v1156
        %3418 = vmatprep.subr.mxu0 0.0
        %3419 = vmatpush1.msra.mxu0 %v1158
        %3420 = vmatprep.subr.mxu0 0.0
        %3421 = vmatpush1.msra.mxu0 0.0
        %3422 = vmatprep.subr.mxu0 0.0
        %3423 = vmatpush1.msra.mxu0 0.0
        %3424 = vmatprep.subr.mxu0 0.0
        %3425 = vmatpush1.msra.mxu0 0.0
        %3426 = vmatprep.subr.mxu0 0.0
        %3427 = vmatpush1.msra.mxu0 0.0
        %3428 = vmatprep.subr.mxu0 0.0
        %3429 = vmatpush1.msra.mxu0 0.0
        %3430 = vmatprep.subr.mxu0 0.0
        %3431 = vmatpush1.msra.mxu0 0.0
        %3432 = vmatprep.subr.mxu0 0.0
        %3433 = vmatpush1.msra.mxu0 0.0
        %3434 = vmatprep.subr.mxu0 0.0
        %3435 = vmatpush1.msra.mxu0 0.0
        %3436 = vmatprep.subr.mxu0 0.0
        %3437 = vmatpush1.msra.mxu0 0.0
        %3438 = vmatprep.subr.mxu0 0.0
        %3439 = vmatpush1.msra.mxu0 0.0
        %3440 = vmatprep.subr.mxu0 0.0
        %3441 = vmatpush1.msra.mxu0 0.0
        %3442 = vmatprep.subr.mxu0 0.0
        %3443 = vmatpush1.msra.mxu0 0.0
        %3444 = vmatprep.subr.mxu0 0.0
        %3445 = vmatpush1.msra.mxu0 0.0
        %3446 = vmatprep.subr.mxu0 0.0
        %3447 = vmatpush1.msra.mxu0 0.0
        %3448 = vmatprep.subr.mxu0 0.0
        %3449 = vmatpush1.msra.mxu0 0.0
        %3450 = vmatprep.subr.mxu0 0.0
        %3451 = vmatpush1.msra.mxu0 0.0
        %3452 = vmatprep.subr.mxu0 0.0
        %3453 = vmatpush1.msra.mxu0 0.0
        %3454 = vmatprep.subr.mxu0 0.0
        %3455 = vmatpush1.msra.mxu0 0.0
        %3456 = vmatprep.subr.mxu0 0.0
        %3457 = vmatpush1.msra.mxu0 0.0
        %3458 = vmatprep.subr.mxu0 0.0
        %3459 = vmatpush1.msra.mxu0 0.0
        %3460 = vmatprep.subr.mxu0 0.0
        %3461 = vmatpush1.msra.mxu0 0.0
        %3462 = vmatprep.subr.mxu0 0.0
        %3463 = vmatpush1.msra.mxu0 0.0
        %3464 = vmatprep.subr.mxu0 0.0
        %3465 = vmatpush1.msra.mxu0 0.0
        %3466 = vmatprep.subr.mxu0 0.0
        %3467 = vmatpush1.msra.mxu0 0.0
        %3468 = vmatprep.subr.mxu0 0.0
        %3469 = vmatpush1.msra.mxu0 0.0
        %3470 = vmatprep.subr.mxu0 0.0
        %3471 = vmatpush1.msra.mxu0 0.0
        %3472 = vmatprep.subr.mxu0 0.0
        %3473 = vmatpush1.msra.mxu0 0.0
        %3474 = vmatprep.subr.mxu0 0.0
        %3475 = vmatpush1.msra.mxu0 0.0
        %3476 = vmatprep.subr.mxu0 0.0
        %3477 = vmatpush1.msra.mxu0 0.0
        %3478 = vmatprep.subr.mxu0 0.0
        %3479 = vmatpush1.msra.mxu0 0.0
        %3480 = vmatprep.mubr.f32.mxu0 0.0
        %3481 = vmatmul.mubr.f32.gmra.mrb[0].mxu0 %v3411
        %v3482 = vpop.f32.mrb[0].mxu0
        %v3483 = vadd.f32 0.0, %v3482
        %v3484 = vpop.f32.mrb[0].mxu0
        %3485 = vmatprep.mubr.f32.mxu0 0.0
        %3486 = vmatmul.mubr.f32.gmra.mrb[0].mxu0 %v3414
        %v3487 = vpop.f32.mrb[0].mxu0
        %v3488 = vadd.f32 0.0, %v3487
        %v3489 = vpop.f32.mrb[0].mxu0
        %3490 = vdwg.mxu0
        %v3492 = vsel %vm1211, %v2889, 0
        %v3495 = vsel %vm1211, %v2891, 0
        %3497 = vmatprep.subr.mxu0 0.0
        %3498 = vmatpush1.msra.mxu0 %v1162
        %3499 = vmatprep.subr.mxu0 0.0
        %3500 = vmatpush1.msra.mxu0 %v1164
        %3501 = vmatprep.subr.mxu0 0.0
        %3502 = vmatpush1.msra.mxu0 0.0
        %3503 = vmatprep.subr.mxu0 0.0
        %3504 = vmatpush1.msra.mxu0 0.0
        %3505 = vmatprep.subr.mxu0 0.0
        %3506 = vmatpush1.msra.mxu0 0.0
        %3507 = vmatprep.subr.mxu0 0.0
        %3508 = vmatpush1.msra.mxu0 0.0
        %3509 = vmatprep.subr.mxu0 0.0
        %3510 = vmatpush1.msra.mxu0 0.0
        %3511 = vmatprep.subr.mxu0 0.0
        %3512 = vmatpush1.msra.mxu0 0.0
        %3513 = vmatprep.subr.mxu0 0.0
        %3514 = vmatpush1.msra.mxu0 0.0
        %3515 = vmatprep.subr.mxu0 0.0
        %3516 = vmatpush1.msra.mxu0 0.0
        %3517 = vmatprep.subr.mxu0 0.0
        %3518 = vmatpush1.msra.mxu0 0.0
        %3519 = vmatprep.subr.mxu0 0.0
        %3520 = vmatpush1.msra.mxu0 0.0
        %3521 = vmatprep.subr.mxu0 0.0
        %3522 = vmatpush1.msra.mxu0 0.0
        %3523 = vmatprep.subr.mxu0 0.0
        %3524 = vmatpush1.msra.mxu0 0.0
        %3525 = vmatprep.subr.mxu0 0.0
        %3526 = vmatpush1.msra.mxu0 0.0
        %3527 = vmatprep.subr.mxu0 0.0
        %3528 = vmatpush1.msra.mxu0 0.0
        %3529 = vmatprep.subr.mxu0 0.0
        %3530 = vmatpush1.msra.mxu0 0.0
        %3531 = vmatprep.subr.mxu0 0.0
        %3532 = vmatpush1.msra.mxu0 0.0
        %3533 = vmatprep.subr.mxu0 0.0
        %3534 = vmatpush1.msra.mxu0 0.0
        %3535 = vmatprep.subr.mxu0 0.0
        %3536 = vmatpush1.msra.mxu0 0.0
        %3537 = vmatprep.subr.mxu0 0.0
        %3538 = vmatpush1.msra.mxu0 0.0
        %3539 = vmatprep.subr.mxu0 0.0
        %3540 = vmatpush1.msra.mxu0 0.0
        %3541 = vmatprep.subr.mxu0 0.0
        %3542 = vmatpush1.msra.mxu0 0.0
        %3543 = vmatprep.subr.mxu0 0.0
        %3544 = vmatpush1.msra.mxu0 0.0
        %3545 = vmatprep.subr.mxu0 0.0
        %3546 = vmatpush1.msra.mxu0 0.0
        %3547 = vmatprep.subr.mxu0 0.0
        %3548 = vmatpush1.msra.mxu0 0.0
        %3549 = vmatprep.subr.mxu0 0.0
        %3550 = vmatpush1.msra.mxu0 0.0
        %3551 = vmatprep.subr.mxu0 0.0
        %3552 = vmatpush1.msra.mxu0 0.0
        %3553 = vmatprep.subr.mxu0 0.0
        %3554 = vmatpush1.msra.mxu0 0.0
        %3555 = vmatprep.subr.mxu0 0.0
        %3556 = vmatpush1.msra.mxu0 0.0
        %3557 = vmatprep.subr.mxu0 0.0
        %3558 = vmatpush1.msra.mxu0 0.0
        %3559 = vmatprep.subr.mxu0 0.0
        %3560 = vmatpush1.msra.mxu0 0.0
        %3561 = vmatprep.mubr.f32.mxu0 0.0
        %3562 = vmatmul.mubr.f32.gmra.mrb[0].mxu0 %v3492
        %v3563 = vpop.f32.mrb[0].mxu0
        %v3564 = vadd.f32 0.0, %v3563
        %v3565 = vpop.f32.mrb[0].mxu0
        %3566 = vmatprep.mubr.f32.mxu0 0.0
        %3567 = vmatmul.mubr.f32.gmra.mrb[0].mxu0 %v3495
        %v3568 = vpop.f32.mrb[0].mxu0
        %v3569 = vadd.f32 0.0, %v3568
        %v3570 = vpop.f32.mrb[0].mxu0
        %3571 = vdwg.mxu0
        %v3573 = vsel %vm1211, %v2893, 0
        %v3576 = vsel %vm1211, %v2895, 0
        %3578 = vmatprep.subr.mxu0 0.0
        %3579 = vmatpush1.msra.mxu0 %v1121
        %3580 = vmatprep.subr.mxu0 0.0
        %3581 = vmatpush1.msra.mxu0 %v1122
        %3582 = vmatprep.subr.mxu0 0.0
        %3583 = vmatpush1.msra.mxu0 0.0
        %3584 = vmatprep.subr.mxu0 0.0
        %3585 = vmatpush1.msra.mxu0 0.0
        %3586 = vmatprep.subr.mxu0 0.0
        %3587 = vmatpush1.msra.mxu0 0.0
        %3588 = vmatprep.subr.mxu0 0.0
        %3589 = vmatpush1.msra.mxu0 0.0
        %3590 = vmatprep.subr.mxu0 0.0
        %3591 = vmatpush1.msra.mxu0 0.0
        %3592 = vmatprep.subr.mxu0 0.0
        %3593 = vmatpush1.msra.mxu0 0.0
        %3594 = vmatprep.subr.mxu0 0.0
        %3595 = vmatpush1.msra.mxu0 0.0
        %3596 = vmatprep.subr.mxu0 0.0
        %3597 = vmatpush1.msra.mxu0 0.0
        %3598 = vmatprep.subr.mxu0 0.0
        %3599 = vmatpush1.msra.mxu0 0.0
        %3600 = vmatprep.subr.mxu0 0.0
        %3601 = vmatpush1.msra.mxu0 0.0
        %3602 = vmatprep.subr.mxu0 0.0
        %3603 = vmatpush1.msra.mxu0 0.0
        %3604 = vmatprep.subr.mxu0 0.0
        %3605 = vmatpush1.msra.mxu0 0.0
        %3606 = vmatprep.subr.mxu0 0.0
        %3607 = vmatpush1.msra.mxu0 0.0
        %3608 = vmatprep.subr.mxu0 0.0
        %3609 = vmatpush1.msra.mxu0 0.0
        %3610 = vmatprep.subr.mxu0 0.0
        %3611 = vmatpush1.msra.mxu0 0.0
        %3612 = vmatprep.subr.mxu0 0.0
        %3613 = vmatpush1.msra.mxu0 0.0
        %3614 = vmatprep.subr.mxu0 0.0
        %3615 = vmatpush1.msra.mxu0 0.0
        %3616 = vmatprep.subr.mxu0 0.0
        %3617 = vmatpush1.msra.mxu0 0.0
        %3618 = vmatprep.subr.mxu0 0.0
        %3619 = vmatpush1.msra.mxu0 0.0
        %3620 = vmatprep.subr.mxu0 0.0
        %3621 = vmatpush1.msra.mxu0 0.0
        %3622 = vmatprep.subr.mxu0 0.0
        %3623 = vmatpush1.msra.mxu0 0.0
        %3624 = vmatprep.subr.mxu0 0.0
        %3625 = vmatpush1.msra.mxu0 0.0
        %3626 = vmatprep.subr.mxu0 0.0
        %3627 = vmatpush1.msra.mxu0 0.0
        %3628 = vmatprep.subr.mxu0 0.0
        %3629 = vmatpush1.msra.mxu0 0.0
        %3630 = vmatprep.subr.mxu0 0.0
        %3631 = vmatpush1.msra.mxu0 0.0
        %3632 = vmatprep.subr.mxu0 0.0
        %3633 = vmatpush1.msra.mxu0 0.0
        %3634 = vmatprep.subr.mxu0 0.0
        %3635 = vmatpush1.msra.mxu0 0.0
        %3636 = vmatprep.subr.mxu0 0.0
        %3637 = vmatpush1.msra.mxu0 0.0
        %3638 = vmatprep.subr.mxu0 0.0
        %3639 = vmatpush1.msra.mxu0 0.0
        %3640 = vmatprep.subr.mxu0 0.0
        %3641 = vmatpush1.msra.mxu0 0.0
        %3642 = vmatprep.mubr.f32.mxu0 0.0
        %3643 = vmatmul.mubr.f32.gmra.mrb[0].mxu0 %v3573
        %v3644 = vpop.f32.mrb[0].mxu0
        %v3645 = vadd.f32 0.0, %v3644
        %v3646 = vpop.f32.mrb[0].mxu0
        %3647 = vmatprep.mubr.f32.mxu0 0.0
        %3648 = vmatmul.mubr.f32.gmra.mrb[0].mxu0 %v3576
        %v3649 = vpop.f32.mrb[0].mxu0
        %v3650 = vadd.f32 0.0, %v3649
        %v3651 = vpop.f32.mrb[0].mxu0
        %3652 = vdwg.mxu0
        %v3654 = vsel %vm1211, %v2897, 0
        %v3657 = vsel %vm1211, %v2899, 0
        %3659 = vmatprep.subr.mxu0 0.0
        %3660 = vmatpush1.msra.mxu0 %v1170
        %3661 = vmatprep.subr.mxu0 0.0
        %3662 = vmatpush1.msra.mxu0 %v1172
        %3663 = vmatprep.subr.mxu0 0.0
        %3664 = vmatpush1.msra.mxu0 0.0
        %3665 = vmatprep.subr.mxu0 0.0
        %3666 = vmatpush1.msra.mxu0 0.0
        %3667 = vmatprep.subr.mxu0 0.0
        %3668 = vmatpush1.msra.mxu0 0.0
        %3669 = vmatprep.subr.mxu0 0.0
        %3670 = vmatpush1.msra.mxu0 0.0
        %3671 = vmatprep.subr.mxu0 0.0
        %3672 = vmatpush1.msra.mxu0 0.0
        %3673 = vmatprep.subr.mxu0 0.0
        %3674 = vmatpush1.msra.mxu0 0.0
        %3675 = vmatprep.subr.mxu0 0.0
        %3676 = vmatpush1.msra.mxu0 0.0
        %3677 = vmatprep.subr.mxu0 0.0
        %3678 = vmatpush1.msra.mxu0 0.0
        %3679 = vmatprep.subr.mxu0 0.0
        %3680 = vmatpush1.msra.mxu0 0.0
        %3681 = vmatprep.subr.mxu0 0.0
        %3682 = vmatpush1.msra.mxu0 0.0
        %3683 = vmatprep.subr.mxu0 0.0
        %3684 = vmatpush1.msra.mxu0 0.0
        %3685 = vmatprep.subr.mxu0 0.0
        %3686 = vmatpush1.msra.mxu0 0.0
        %3687 = vmatprep.subr.mxu0 0.0
        %3688 = vmatpush1.msra.mxu0 0.0
        %3689 = vmatprep.subr.mxu0 0.0
        %3690 = vmatpush1.msra.mxu0 0.0
        %3691 = vmatprep.subr.mxu0 0.0
        %3692 = vmatpush1.msra.mxu0 0.0
        %3693 = vmatprep.subr.mxu0 0.0
        %3694 = vmatpush1.msra.mxu0 0.0
        %3695 = vmatprep.subr.mxu0 0.0
        %3696 = vmatpush1.msra.mxu0 0.0
        %3697 = vmatprep.subr.mxu0 0.0
        %3698 = vmatpush1.msra.mxu0 0.0
        %3699 = vmatprep.subr.mxu0 0.0
        %3700 = vmatpush1.msra.mxu0 0.0
        %3701 = vmatprep.subr.mxu0 0.0
        %3702 = vmatpush1.msra.mxu0 0.0
        %3703 = vmatprep.subr.mxu0 0.0
        %3704 = vmatpush1.msra.mxu0 0.0
        %3705 = vmatprep.subr.mxu0 0.0
        %3706 = vmatpush1.msra.mxu0 0.0
        %3707 = vmatprep.subr.mxu0 0.0
        %3708 = vmatpush1.msra.mxu0 0.0
        %3709 = vmatprep.subr.mxu0 0.0
        %3710 = vmatpush1.msra.mxu0 0.0
        %3711 = vmatprep.subr.mxu0 0.0
        %3712 = vmatpush1.msra.mxu0 0.0
        %3713 = vmatprep.subr.mxu0 0.0
        %3714 = vmatpush1.msra.mxu0 0.0
        %3715 = vmatprep.subr.mxu0 0.0
        %3716 = vmatpush1.msra.mxu0 0.0
        %3717 = vmatprep.subr.mxu0 0.0
        %3718 = vmatpush1.msra.mxu0 0.0
        %3719 = vmatprep.subr.mxu0 0.0
        %3720 = vmatpush1.msra.mxu0 0.0
        %3721 = vmatprep.subr.mxu0 0.0
        %3722 = vmatpush1.msra.mxu0 0.0
        %3723 = vmatprep.mubr.f32.mxu0 0.0
        %3724 = vmatmul.mubr.f32.gmra.mrb[0].mxu0 %v3654
        %v3725 = vpop.f32.mrb[0].mxu0
        %v3726 = vadd.f32 0.0, %v3725
        %v3727 = vpop.f32.mrb[0].mxu0
        %3728 = vmatprep.mubr.f32.mxu0 0.0
        %3729 = vmatmul.mubr.f32.gmra.mrb[0].mxu0 %v3657
        %v3730 = vpop.f32.mrb[0].mxu0
        %v3731 = vadd.f32 0.0, %v3730
        %v3732 = vpop.f32.mrb[0].mxu0
        %3733 = vdwg.mxu0
        %v3735 = vsel %vm1211, %v2901, 0
        %v3738 = vsel %vm1211, %v2903, 0
        %3740 = vmatprep.subr.mxu0 0.0
        %3741 = vmatpush1.msra.mxu0 %v1176
        %3742 = vmatprep.subr.mxu0 0.0
        %3743 = vmatpush1.msra.mxu0 %v1178
        %3744 = vmatprep.subr.mxu0 0.0
        %3745 = vmatpush1.msra.mxu0 0.0
        %3746 = vmatprep.subr.mxu0 0.0
        %3747 = vmatpush1.msra.mxu0 0.0
        %3748 = vmatprep.subr.mxu0 0.0
        %3749 = vmatpush1.msra.mxu0 0.0
        %3750 = vmatprep.subr.mxu0 0.0
        %3751 = vmatpush1.msra.mxu0 0.0
        %3752 = vmatprep.subr.mxu0 0.0
        %3753 = vmatpush1.msra.mxu0 0.0
        %3754 = vmatprep.subr.mxu0 0.0
        %3755 = vmatpush1.msra.mxu0 0.0
        %3756 = vmatprep.subr.mxu0 0.0
        %3757 = vmatpush1.msra.mxu0 0.0
        %3758 = vmatprep.subr.mxu0 0.0
        %3759 = vmatpush1.msra.mxu0 0.0
        %3760 = vmatprep.subr.mxu0 0.0
        %3761 = vmatpush1.msra.mxu0 0.0
        %3762 = vmatprep.subr.mxu0 0.0
        %3763 = vmatpush1.msra.mxu0 0.0
        %3764 = vmatprep.subr.mxu0 0.0
        %3765 = vmatpush1.msra.mxu0 0.0
        %3766 = vmatprep.subr.mxu0 0.0
        %3767 = vmatpush1.msra.mxu0 0.0
        %3768 = vmatprep.subr.mxu0 0.0
        %3769 = vmatpush1.msra.mxu0 0.0
        %3770 = vmatprep.subr.mxu0 0.0
        %3771 = vmatpush1.msra.mxu0 0.0
        %3772 = vmatprep.subr.mxu0 0.0
        %3773 = vmatpush1.msra.mxu0 0.0
        %3774 = vmatprep.subr.mxu0 0.0
        %3775 = vmatpush1.msra.mxu0 0.0
        %3776 = vmatprep.subr.mxu0 0.0
        %3777 = vmatpush1.msra.mxu0 0.0
        %3778 = vmatprep.subr.mxu0 0.0
        %3779 = vmatpush1.msra.mxu0 0.0
        %3780 = vmatprep.subr.mxu0 0.0
        %3781 = vmatpush1.msra.mxu0 0.0
        %3782 = vmatprep.subr.mxu0 0.0
        %3783 = vmatpush1.msra.mxu0 0.0
        %3784 = vmatprep.subr.mxu0 0.0
        %3785 = vmatpush1.msra.mxu0 0.0
        %3786 = vmatprep.subr.mxu0 0.0
        %3787 = vmatpush1.msra.mxu0 0.0
        %3788 = vmatprep.subr.mxu0 0.0
        %3789 = vmatpush1.msra.mxu0 0.0
        %3790 = vmatprep.subr.mxu0 0.0
        %3791 = vmatpush1.msra.mxu0 0.0
        %3792 = vmatprep.subr.mxu0 0.0
        %3793 = vmatpush1.msra.mxu0 0.0
        %3794 = vmatprep.subr.mxu0 0.0
        %3795 = vmatpush1.msra.mxu0 0.0
        %3796 = vmatprep.subr.mxu0 0.0
        %3797 = vmatpush1.msra.mxu0 0.0
        %3798 = vmatprep.subr.mxu0 0.0
        %3799 = vmatpush1.msra.mxu0 0.0
        %3800 = vmatprep.subr.mxu0 0.0
        %3801 = vmatpush1.msra.mxu0 0.0
        %3802 = vmatprep.subr.mxu0 0.0
        %3803 = vmatpush1.msra.mxu0 0.0
        %3804 = vmatprep.mubr.f32.mxu0 0.0
        %3805 = vmatmul.mubr.f32.gmra.mrb[0].mxu0 %v3735
        %v3806 = vpop.f32.mrb[0].mxu0
        %v3807 = vadd.f32 0.0, %v3806
        %v3808 = vpop.f32.mrb[0].mxu0
        %3809 = vmatprep.mubr.f32.mxu0 0.0
        %3810 = vmatmul.mubr.f32.gmra.mrb[0].mxu0 %v3738
        %v3811 = vpop.f32.mrb[0].mxu0
        %v3812 = vadd.f32 0.0, %v3811
        %v3813 = vpop.f32.mrb[0].mxu0
        %3814 = vdwg.mxu0
        %v3816 = vsel %vm1211, %v2905, 0
        %v3819 = vsel %vm1211, %v2907, 0
        %3821 = vmatprep.subr.mxu0 0.0
        %3822 = vmatpush1.msra.mxu0 %v1182
        %3823 = vmatprep.subr.mxu0 0.0
        %3824 = vmatpush1.msra.mxu0 %v1184
        %3825 = vmatprep.subr.mxu0 0.0
        %3826 = vmatpush1.msra.mxu0 0.0
        %3827 = vmatprep.subr.mxu0 0.0
        %3828 = vmatpush1.msra.mxu0 0.0
        %3829 = vmatprep.subr.mxu0 0.0
        %3830 = vmatpush1.msra.mxu0 0.0
        %3831 = vmatprep.subr.mxu0 0.0
        %3832 = vmatpush1.msra.mxu0 0.0
        %3833 = vmatprep.subr.mxu0 0.0
        %3834 = vmatpush1.msra.mxu0 0.0
        %3835 = vmatprep.subr.mxu0 0.0
        %3836 = vmatpush1.msra.mxu0 0.0
        %3837 = vmatprep.subr.mxu0 0.0
        %3838 = vmatpush1.msra.mxu0 0.0
        %3839 = vmatprep.subr.mxu0 0.0
        %3840 = vmatpush1.msra.mxu0 0.0
        %3841 = vmatprep.subr.mxu0 0.0
        %3842 = vmatpush1.msra.mxu0 0.0
        %3843 = vmatprep.subr.mxu0 0.0
        %3844 = vmatpush1.msra.mxu0 0.0
        %3845 = vmatprep.subr.mxu0 0.0
        %3846 = vmatpush1.msra.mxu0 0.0
        %3847 = vmatprep.subr.mxu0 0.0
        %3848 = vmatpush1.msra.mxu0 0.0
        %3849 = vmatprep.subr.mxu0 0.0
        %3850 = vmatpush1.msra.mxu0 0.0
        %3851 = vmatprep.subr.mxu0 0.0
        %3852 = vmatpush1.msra.mxu0 0.0
        %3853 = vmatprep.subr.mxu0 0.0
        %3854 = vmatpush1.msra.mxu0 0.0
        %3855 = vmatprep.subr.mxu0 0.0
        %3856 = vmatpush1.msra.mxu0 0.0
        %3857 = vmatprep.subr.mxu0 0.0
        %3858 = vmatpush1.msra.mxu0 0.0
        %3859 = vmatprep.subr.mxu0 0.0
        %3860 = vmatpush1.msra.mxu0 0.0
        %3861 = vmatprep.subr.mxu0 0.0
        %3862 = vmatpush1.msra.mxu0 0.0
        %3863 = vmatprep.subr.mxu0 0.0
        %3864 = vmatpush1.msra.mxu0 0.0
        %3865 = vmatprep.subr.mxu0 0.0
        %3866 = vmatpush1.msra.mxu0 0.0
        %3867 = vmatprep.subr.mxu0 0.0
        %3868 = vmatpush1.msra.mxu0 0.0
        %3869 = vmatprep.subr.mxu0 0.0
        %3870 = vmatpush1.msra.mxu0 0.0
        %3871 = vmatprep.subr.mxu0 0.0
        %3872 = vmatpush1.msra.mxu0 0.0
        %3873 = vmatprep.subr.mxu0 0.0
        %3874 = vmatpush1.msra.mxu0 0.0
        %3875 = vmatprep.subr.mxu0 0.0
        %3876 = vmatpush1.msra.mxu0 0.0
        %3877 = vmatprep.subr.mxu0 0.0
        %3878 = vmatpush1.msra.mxu0 0.0
        %3879 = vmatprep.subr.mxu0 0.0
        %3880 = vmatpush1.msra.mxu0 0.0
        %3881 = vmatprep.subr.mxu0 0.0
        %3882 = vmatpush1.msra.mxu0 0.0
        %3883 = vmatprep.subr.mxu0 0.0
        %3884 = vmatpush1.msra.mxu0 0.0
        %3885 = vmatprep.mubr.f32.mxu0 0.0
        %3886 = vmatmul.mubr.f32.gmra.mrb[0].mxu0 %v3816
        %v3887 = vpop.f32.mrb[0].mxu0
        %v3888 = vadd.f32 0.0, %v3887
        %v3889 = vpop.f32.mrb[0].mxu0
        %3890 = vmatprep.mubr.f32.mxu0 0.0
        %3891 = vmatmul.mubr.f32.gmra.mrb[0].mxu0 %v3819
        %v3892 = vpop.f32.mrb[0].mxu0
        %v3893 = vadd.f32 0.0, %v3892
        %v3894 = vpop.f32.mrb[0].mxu0
        %3895 = vdwg.mxu0
        %v3897 = vsel %vm1211, %v2909, 0
        %v3900 = vsel %vm1211, %v2911, 0
        %3902 = vmatprep.subr.mxu0 0.0
        %3903 = vmatpush1.msra.mxu0 %v1188
        %3904 = vmatprep.subr.mxu0 0.0
        %3905 = vmatpush1.msra.mxu0 %v1190
        %3906 = vmatprep.subr.mxu0 0.0
        %3907 = vmatpush1.msra.mxu0 0.0
        %3908 = vmatprep.subr.mxu0 0.0
        %3909 = vmatpush1.msra.mxu0 0.0
        %3910 = vmatprep.subr.mxu0 0.0
        %3911 = vmatpush1.msra.mxu0 0.0
        %3912 = vmatprep.subr.mxu0 0.0
        %3913 = vmatpush1.msra.mxu0 0.0
        %3914 = vmatprep.subr.mxu0 0.0
        %3915 = vmatpush1.msra.mxu0 0.0
        %3916 = vmatprep.subr.mxu0 0.0
        %3917 = vmatpush1.msra.mxu0 0.0
        %3918 = vmatprep.subr.mxu0 0.0
        %3919 = vmatpush1.msra.mxu0 0.0
        %3920 = vmatprep.subr.mxu0 0.0
        %3921 = vmatpush1.msra.mxu0 0.0
        %3922 = vmatprep.subr.mxu0 0.0
        %3923 = vmatpush1.msra.mxu0 0.0
        %3924 = vmatprep.subr.mxu0 0.0
        %3925 = vmatpush1.msra.mxu0 0.0
        %3926 = vmatprep.subr.mxu0 0.0
        %3927 = vmatpush1.msra.mxu0 0.0
        %3928 = vmatprep.subr.mxu0 0.0
        %3929 = vmatpush1.msra.mxu0 0.0
        %3930 = vmatprep.subr.mxu0 0.0
        %3931 = vmatpush1.msra.mxu0 0.0
        %3932 = vmatprep.subr.mxu0 0.0
        %3933 = vmatpush1.msra.mxu0 0.0
        %3934 = vmatprep.subr.mxu0 0.0
        %3935 = vmatpush1.msra.mxu0 0.0
        %3936 = vmatprep.subr.mxu0 0.0
        %3937 = vmatpush1.msra.mxu0 0.0
        %3938 = vmatprep.subr.mxu0 0.0
        %3939 = vmatpush1.msra.mxu0 0.0
        %3940 = vmatprep.subr.mxu0 0.0
        %3941 = vmatpush1.msra.mxu0 0.0
        %3942 = vmatprep.subr.mxu0 0.0
        %3943 = vmatpush1.msra.mxu0 0.0
        %3944 = vmatprep.subr.mxu0 0.0
        %3945 = vmatpush1.msra.mxu0 0.0
        %3946 = vmatprep.subr.mxu0 0.0
        %3947 = vmatpush1.msra.mxu0 0.0
        %3948 = vmatprep.subr.mxu0 0.0
        %3949 = vmatpush1.msra.mxu0 0.0
        %3950 = vmatprep.subr.mxu0 0.0
        %3951 = vmatpush1.msra.mxu0 0.0
        %3952 = vmatprep.subr.mxu0 0.0
        %3953 = vmatpush1.msra.mxu0 0.0
        %3954 = vmatprep.subr.mxu0 0.0
        %3955 = vmatpush1.msra.mxu0 0.0
        %3956 = vmatprep.subr.mxu0 0.0
        %3957 = vmatpush1.msra.mxu0 0.0
        %3958 = vmatprep.subr.mxu0 0.0
        %3959 = vmatpush1.msra.mxu0 0.0
        %3960 = vmatprep.subr.mxu0 0.0
        %3961 = vmatpush1.msra.mxu0 0.0
        %3962 = vmatprep.subr.mxu0 0.0
        %3963 = vmatpush1.msra.mxu0 0.0
        %3964 = vmatprep.subr.mxu0 0.0
        %3965 = vmatpush1.msra.mxu0 0.0
        %3966 = vmatprep.mubr.f32.mxu0 0.0
        %3967 = vmatmul.mubr.f32.gmra.mrb[0].mxu0 %v3897
        %v3968 = vpop.f32.mrb[0].mxu0
        %v3969 = vadd.f32 0.0, %v3968
        %v3970 = vpop.f32.mrb[0].mxu0
        %3971 = vmatprep.mubr.f32.mxu0 0.0
        %3972 = vmatmul.mubr.f32.gmra.mrb[0].mxu0 %v3900
        %v3973 = vpop.f32.mrb[0].mxu0
        %v3974 = vadd.f32 0.0, %v3973
        %v3975 = vpop.f32.mrb[0].mxu0
        %3976 = vdwg.mxu0
        %v3978 = vsel %vm1211, %v2913, 0
        %v3981 = vsel %vm1211, %v2915, 0
        %3983 = vmatprep.subr.mxu0 0.0
        %3984 = vmatpush1.msra.mxu0 %v1194
        %3985 = vmatprep.subr.mxu0 0.0
        %3986 = vmatpush1.msra.mxu0 %v1196
        %3987 = vmatprep.subr.mxu0 0.0
        %3988 = vmatpush1.msra.mxu0 0.0
        %3989 = vmatprep.subr.mxu0 0.0
        %3990 = vmatpush1.msra.mxu0 0.0
        %3991 = vmatprep.subr.mxu0 0.0
        %3992 = vmatpush1.msra.mxu0 0.0
        %3993 = vmatprep.subr.mxu0 0.0
        %3994 = vmatpush1.msra.mxu0 0.0
        %3995 = vmatprep.subr.mxu0 0.0
        %3996 = vmatpush1.msra.mxu0 0.0
        %3997 = vmatprep.subr.mxu0 0.0
        %3998 = vmatpush1.msra.mxu0 0.0
        %3999 = vmatprep.subr.mxu0 0.0
        %4000 = vmatpush1.msra.mxu0 0.0
        %4001 = vmatprep.subr.mxu0 0.0
        %4002 = vmatpush1.msra.mxu0 0.0
        %4003 = vmatprep.subr.mxu0 0.0
        %4004 = vmatpush1.msra.mxu0 0.0
        %4005 = vmatprep.subr.mxu0 0.0
        %4006 = vmatpush1.msra.mxu0 0.0
        %4007 = vmatprep.subr.mxu0 0.0
        %4008 = vmatpush1.msra.mxu0 0.0
        %4009 = vmatprep.subr.mxu0 0.0
        %4010 = vmatpush1.msra.mxu0 0.0
        %4011 = vmatprep.subr.mxu0 0.0
        %4012 = vmatpush1.msra.mxu0 0.0
        %4013 = vmatprep.subr.mxu0 0.0
        %4014 = vmatpush1.msra.mxu0 0.0
        %4015 = vmatprep.subr.mxu0 0.0
        %4016 = vmatpush1.msra.mxu0 0.0
        %4017 = vmatprep.subr.mxu0 0.0
        %4018 = vmatpush1.msra.mxu0 0.0
        %4019 = vmatprep.subr.mxu0 0.0
        %4020 = vmatpush1.msra.mxu0 0.0
        %4021 = vmatprep.subr.mxu0 0.0
        %4022 = vmatpush1.msra.mxu0 0.0
        %4023 = vmatprep.subr.mxu0 0.0
        %4024 = vmatpush1.msra.mxu0 0.0
        %4025 = vmatprep.subr.mxu0 0.0
        %4026 = vmatpush1.msra.mxu0 0.0
        %4027 = vmatprep.subr.mxu0 0.0
        %4028 = vmatpush1.msra.mxu0 0.0
        %4029 = vmatprep.subr.mxu0 0.0
        %4030 = vmatpush1.msra.mxu0 0.0
        %4031 = vmatprep.subr.mxu0 0.0
        %4032 = vmatpush1.msra.mxu0 0.0
        %4033 = vmatprep.subr.mxu0 0.0
        %4034 = vmatpush1.msra.mxu0 0.0
        %4035 = vmatprep.subr.mxu0 0.0
        %4036 = vmatpush1.msra.mxu0 0.0
        %4037 = vmatprep.subr.mxu0 0.0
        %4038 = vmatpush1.msra.mxu0 0.0
        %4039 = vmatprep.subr.mxu0 0.0
        %4040 = vmatpush1.msra.mxu0 0.0
        %4041 = vmatprep.subr.mxu0 0.0
        %4042 = vmatpush1.msra.mxu0 0.0
        %4043 = vmatprep.subr.mxu0 0.0
        %4044 = vmatpush1.msra.mxu0 0.0
        %4045 = vmatprep.subr.mxu0 0.0
        %4046 = vmatpush1.msra.mxu0 0.0
        %4047 = vmatprep.mubr.f32.mxu0 0.0
        %4048 = vmatmul.mubr.f32.gmra.mrb[0].mxu0 %v3978
        %v4049 = vpop.f32.mrb[0].mxu0
        %v4050 = vadd.f32 0.0, %v4049
        %v4051 = vpop.f32.mrb[0].mxu0
        %4052 = vmatprep.mubr.f32.mxu0 0.0
        %4053 = vmatmul.mubr.f32.gmra.mrb[0].mxu0 %v3981
        %v4054 = vpop.f32.mrb[0].mxu0
        %v4055 = vadd.f32 0.0, %v4054
        %v4056 = vpop.f32.mrb[0].mxu0
        %4057 = vdwg.mxu0
        %v4059 = vsel %vm1211, %v2917, 0
        %v4062 = vsel %vm1211, %v2919, 0
        %4064 = vmatprep.subr.mxu0 0.0
        %4065 = vmatpush1.msra.mxu0 %v1200
        %4066 = vmatprep.subr.mxu0 0.0
        %4067 = vmatpush1.msra.mxu0 %v1202
        %4068 = vmatprep.subr.mxu0 0.0
        %4069 = vmatpush1.msra.mxu0 0.0
        %4070 = vmatprep.subr.mxu0 0.0
        %4071 = vmatpush1.msra.mxu0 0.0
        %4072 = vmatprep.subr.mxu0 0.0
        %4073 = vmatpush1.msra.mxu0 0.0
        %4074 = vmatprep.subr.mxu0 0.0
        %4075 = vmatpush1.msra.mxu0 0.0
        %4076 = vmatprep.subr.mxu0 0.0
        %4077 = vmatpush1.msra.mxu0 0.0
        %4078 = vmatprep.subr.mxu0 0.0
        %4079 = vmatpush1.msra.mxu0 0.0
        %4080 = vmatprep.subr.mxu0 0.0
        %4081 = vmatpush1.msra.mxu0 0.0
        %4082 = vmatprep.subr.mxu0 0.0
        %4083 = vmatpush1.msra.mxu0 0.0
        %4084 = vmatprep.subr.mxu0 0.0
        %4085 = vmatpush1.msra.mxu0 0.0
        %4086 = vmatprep.subr.mxu0 0.0
        %4087 = vmatpush1.msra.mxu0 0.0
        %4088 = vmatprep.subr.mxu0 0.0
        %4089 = vmatpush1.msra.mxu0 0.0
        %4090 = vmatprep.subr.mxu0 0.0
        %4091 = vmatpush1.msra.mxu0 0.0
        %4092 = vmatprep.subr.mxu0 0.0
        %4093 = vmatpush1.msra.mxu0 0.0
        %4094 = vmatprep.subr.mxu0 0.0
        %4095 = vmatpush1.msra.mxu0 0.0
        %4096 = vmatprep.subr.mxu0 0.0
        %4097 = vmatpush1.msra.mxu0 0.0
        %4098 = vmatprep.subr.mxu0 0.0
        %4099 = vmatpush1.msra.mxu0 0.0
        %4100 = vmatprep.subr.mxu0 0.0
        %4101 = vmatpush1.msra.mxu0 0.0
        %4102 = vmatprep.subr.mxu0 0.0
        %4103 = vmatpush1.msra.mxu0 0.0
        %4104 = vmatprep.subr.mxu0 0.0
        %4105 = vmatpush1.msra.mxu0 0.0
        %4106 = vmatprep.subr.mxu0 0.0
        %4107 = vmatpush1.msra.mxu0 0.0
        %4108 = vmatprep.subr.mxu0 0.0
        %4109 = vmatpush1.msra.mxu0 0.0
        %4110 = vmatprep.subr.mxu0 0.0
        %4111 = vmatpush1.msra.mxu0 0.0
        %4112 = vmatprep.subr.mxu0 0.0
        %4113 = vmatpush1.msra.mxu0 0.0
        %4114 = vmatprep.subr.mxu0 0.0
        %4115 = vmatpush1.msra.mxu0 0.0
        %4116 = vmatprep.subr.mxu0 0.0
        %4117 = vmatpush1.msra.mxu0 0.0
        %4118 = vmatprep.subr.mxu0 0.0
        %4119 = vmatpush1.msra.mxu0 0.0
        %4120 = vmatprep.subr.mxu0 0.0
        %4121 = vmatpush1.msra.mxu0 0.0
        %4122 = vmatprep.subr.mxu0 0.0
        %4123 = vmatpush1.msra.mxu0 0.0
        %4124 = vmatprep.subr.mxu0 0.0
        %4125 = vmatpush1.msra.mxu0 0.0
        %4126 = vmatprep.subr.mxu0 0.0
        %4127 = vmatpush1.msra.mxu0 0.0
        %4128 = vmatprep.mubr.f32.mxu0 0.0
        %4129 = vmatmul.mubr.f32.gmra.mrb[0].mxu0 %v4059
        %v4130 = vpop.f32.mrb[0].mxu0
        %v4131 = vadd.f32 0.0, %v4130
        %v4132 = vpop.f32.mrb[0].mxu0
        %4133 = vmatprep.mubr.f32.mxu0 0.0
        %4134 = vmatmul.mubr.f32.gmra.mrb[0].mxu0 %v4062
        %v4135 = vpop.f32.mrb[0].mxu0
        %v4136 = vadd.f32 0.0, %v4135
        %v4137 = vpop.f32.mrb[0].mxu0
        %4138 = vdwg.mxu0
        %v4140 = vsel %vm1211, %v2921, 0
        %v4143 = vsel %vm1211, %v2923, 0
        %4145 = vmatprep.subr.mxu0 0.0
        %4146 = vmatpush1.msra.mxu0 %v1206
        %4147 = vmatprep.subr.mxu0 0.0
        %4148 = vmatpush1.msra.mxu0 %v1208
        %4149 = vmatprep.subr.mxu0 0.0
        %4150 = vmatpush1.msra.mxu0 0.0
        %4151 = vmatprep.subr.mxu0 0.0
        %4152 = vmatpush1.msra.mxu0 0.0
        %4153 = vmatprep.subr.mxu0 0.0
        %4154 = vmatpush1.msra.mxu0 0.0
        %4155 = vmatprep.subr.mxu0 0.0
        %4156 = vmatpush1.msra.mxu0 0.0
        %4157 = vmatprep.subr.mxu0 0.0
        %4158 = vmatpush1.msra.mxu0 0.0
        %4159 = vmatprep.subr.mxu0 0.0
        %4160 = vmatpush1.msra.mxu0 0.0
        %4161 = vmatprep.subr.mxu0 0.0
        %4162 = vmatpush1.msra.mxu0 0.0
        %4163 = vmatprep.subr.mxu0 0.0
        %4164 = vmatpush1.msra.mxu0 0.0
        %4165 = vmatprep.subr.mxu0 0.0
        %4166 = vmatpush1.msra.mxu0 0.0
        %4167 = vmatprep.subr.mxu0 0.0
        %4168 = vmatpush1.msra.mxu0 0.0
        %4169 = vmatprep.subr.mxu0 0.0
        %4170 = vmatpush1.msra.mxu0 0.0
        %4171 = vmatprep.subr.mxu0 0.0
        %4172 = vmatpush1.msra.mxu0 0.0
        %4173 = vmatprep.subr.mxu0 0.0
        %4174 = vmatpush1.msra.mxu0 0.0
        %4175 = vmatprep.subr.mxu0 0.0
        %4176 = vmatpush1.msra.mxu0 0.0
        %4177 = vmatprep.subr.mxu0 0.0
        %4178 = vmatpush1.msra.mxu0 0.0
        %4179 = vmatprep.subr.mxu0 0.0
        %4180 = vmatpush1.msra.mxu0 0.0
        %4181 = vmatprep.subr.mxu0 0.0
        %4182 = vmatpush1.msra.mxu0 0.0
        %4183 = vmatprep.subr.mxu0 0.0
        %4184 = vmatpush1.msra.mxu0 0.0
        %4185 = vmatprep.subr.mxu0 0.0
        %4186 = vmatpush1.msra.mxu0 0.0
        %4187 = vmatprep.subr.mxu0 0.0
        %4188 = vmatpush1.msra.mxu0 0.0
        %4189 = vmatprep.subr.mxu0 0.0
        %4190 = vmatpush1.msra.mxu0 0.0
        %4191 = vmatprep.subr.mxu0 0.0
        %4192 = vmatpush1.msra.mxu0 0.0
        %4193 = vmatprep.subr.mxu0 0.0
        %4194 = vmatpush1.msra.mxu0 0.0
        %4195 = vmatprep.subr.mxu0 0.0
        %4196 = vmatpush1.msra.mxu0 0.0
        %4197 = vmatprep.subr.mxu0 0.0
        %4198 = vmatpush1.msra.mxu0 0.0
        %4199 = vmatprep.subr.mxu0 0.0
        %4200 = vmatpush1.msra.mxu0 0.0
        %4201 = vmatprep.subr.mxu0 0.0
        %4202 = vmatpush1.msra.mxu0 0.0
        %4203 = vmatprep.subr.mxu0 0.0
        %4204 = vmatpush1.msra.mxu0 0.0
        %4205 = vmatprep.subr.mxu0 0.0
        %4206 = vmatpush1.msra.mxu0 0.0
        %4207 = vmatprep.subr.mxu0 0.0
        %4208 = vmatpush1.msra.mxu0 0.0
        %4209 = vmatprep.mubr.f32.mxu0 0.0
        %4210 = vmatmul.mubr.f32.gmra.mrb[0].mxu0 %v4140
        %v4211 = vpop.f32.mrb[0].mxu0
        %v4212 = vadd.f32 0.0, %v4211
        %v4213 = vpop.f32.mrb[0].mxu0
        %4214 = vmatprep.mubr.f32.mxu0 0.0
        %4215 = vmatmul.mubr.f32.gmra.mrb[0].mxu0 %v4143
        %v4216 = vpop.f32.mrb[0].mxu0
        %v4217 = vadd.f32 0.0, %v4216
        %v4218 = vpop.f32.mrb[0].mxu0
        %4219 = vdwg.mxu0
        %4220 = vst.msk [vmem:[#allocation3] sm:$0xff] %vm1211, %v2997
        %4221 = vst.msk [vmem:[#allocation3 + $0x10] sm:$0xff] %vm1211, %v3002
        %4224 = vrot.lane.b32.xlu0 %v3078, 16
        %v4225 = vpop.permute.xlu0 %4224
        %4226 = vrot.lane.b32.xlu0 %v3083, 16
        %v4227 = vpop.permute.xlu0 %4226
        %vm4230 = vcmask 261248
        %4231 = vst.msk [vmem:[#allocation3] sm:$0xff] %vm4230, %v4225
        %4232 = vst.msk [vmem:[#allocation3 + $0x10] sm:$0xff] %vm4230, %v4227
        %4235 = vrot.lane.b32.xlu0 %v3159, 32
        %v4236 = vpop.permute.xlu0 %4235
        %4237 = vrot.lane.b32.xlu0 %v3164, 32
        %v4238 = vpop.permute.xlu0 %4237
        %vm4241 = vcmask 392448
        %4242 = vst.msk [vmem:[#allocation3] sm:$0xff] %vm4241, %v4236
        %4243 = vst.msk [vmem:[#allocation3 + $0x10] sm:$0xff] %vm4241, %v4238
        %4246 = vrot.lane.b32.xlu0 %v3240, 48
        %v4247 = vpop.permute.xlu0 %4246
        %4248 = vrot.lane.b32.xlu0 %v3245, 48
        %v4249 = vpop.permute.xlu0 %4248
        %vm4252 = vcmask 523648
        %4253 = vst.msk [vmem:[#allocation3] sm:$0xff] %vm4252, %v4247
        %4254 = vst.msk [vmem:[#allocation3 + $0x10] sm:$0xff] %vm4252, %v4249
        %4257 = vrot.lane.b32.xlu0 %v3321, 64
        %v4258 = vpop.permute.xlu0 %4257
        %4259 = vrot.lane.b32.xlu0 %v3326, 64
        %v4260 = vpop.permute.xlu0 %4259
        %vm4263 = vcmask 654848
        %4264 = vst.msk [vmem:[#allocation3] sm:$0xff] %vm4263, %v4258
        %4265 = vst.msk [vmem:[#allocation3 + $0x10] sm:$0xff] %vm4263, %v4260
        %4268 = vrot.lane.b32.xlu0 %v3402, 80
        %v4269 = vpop.permute.xlu0 %4268
        %4270 = vrot.lane.b32.xlu0 %v3407, 80
        %v4271 = vpop.permute.xlu0 %4270
        %vm4274 = vcmask 786048
        %4275 = vst.msk [vmem:[#allocation3] sm:$0xff] %vm4274, %v4269
        %4276 = vst.msk [vmem:[#allocation3 + $0x10] sm:$0xff] %vm4274, %v4271
        %4279 = vrot.lane.b32.xlu0 %v3483, 96
        %v4280 = vpop.permute.xlu0 %4279
        %4281 = vrot.lane.b32.xlu0 %v3488, 96
        %v4282 = vpop.permute.xlu0 %4281
        %vm4285 = vcmask 917248
        %4286 = vst.msk [vmem:[#allocation3] sm:$0xff] %vm4285, %v4280
        %4287 = vst.msk [vmem:[#allocation3 + $0x10] sm:$0xff] %vm4285, %v4282
        %4290 = vrot.lane.b32.xlu0 %v3564, 112
        %v4291 = vpop.permute.xlu0 %4290
        %4292 = vrot.lane.b32.xlu0 %v3569, 112
        %v4293 = vpop.permute.xlu0 %4292
        %vm4296 = vcmask 1048448
        %4297 = vst.msk [vmem:[#allocation3] sm:$0xff] %vm4296, %v4291
        %4298 = vst.msk [vmem:[#allocation3 + $0x10] sm:$0xff] %vm4296, %v4293
        %4299 = vst.msk [vmem:[#allocation3 + $0x8] sm:$0xff] %vm1211, %v3645
        %4300 = vst.msk [vmem:[#allocation3 + $0x18] sm:$0xff] %vm1211, %v3650
        %4303 = vrot.lane.b32.xlu0 %v3726, 16
        %v4304 = vpop.permute.xlu0 %4303
        %4305 = vrot.lane.b32.xlu0 %v3731, 16
        %v4306 = vpop.permute.xlu0 %4305
        %4309 = vst.msk [vmem:[#allocation3 + $0x8] sm:$0xff] %vm4230, %v4304
        %4310 = vst.msk [vmem:[#allocation3 + $0x18] sm:$0xff] %vm4230, %v4306
        %4313 = vrot.lane.b32.xlu0 %v3807, 32
        %v4314 = vpop.permute.xlu0 %4313
        %4315 = vrot.lane.b32.xlu0 %v3812, 32
        %v4316 = vpop.permute.xlu0 %4315
        %4319 = vst.msk [vmem:[#allocation3 + $0x8] sm:$0xff] %vm4241, %v4314
        %4320 = vst.msk [vmem:[#allocation3 + $0x18] sm:$0xff] %vm4241, %v4316
        %4323 = vrot.lane.b32.xlu0 %v3888, 48
        %v4324 = vpop.permute.xlu0 %4323
        %4325 = vrot.lane.b32.xlu0 %v3893, 48
        %v4326 = vpop.permute.xlu0 %4325
        %4329 = vst.msk [vmem:[#allocation3 + $0x8] sm:$0xff] %vm4252, %v4324
        %4330 = vst.msk [vmem:[#allocation3 + $0x18] sm:$0xff] %vm4252, %v4326
        %4333 = vrot.lane.b32.xlu0 %v3969, 64
        %v4334 = vpop.permute.xlu0 %4333
        %4335 = vrot.lane.b32.xlu0 %v3974, 64
        %v4336 = vpop.permute.xlu0 %4335
        %4339 = vst.msk [vmem:[#allocation3 + $0x8] sm:$0xff] %vm4263, %v4334
        %4340 = vst.msk [vmem:[#allocation3 + $0x18] sm:$0xff] %vm4263, %v4336
        %4343 = vrot.lane.b32.xlu0 %v4050, 80
        %v4344 = vpop.permute.xlu0 %4343
        %4345 = vrot.lane.b32.xlu0 %v4055, 80
        %v4346 = vpop.permute.xlu0 %4345
        %4349 = vst.msk [vmem:[#allocation3 + $0x8] sm:$0xff] %vm4274, %v4344
        %4350 = vst.msk [vmem:[#allocation3 + $0x18] sm:$0xff] %vm4274, %v4346
        %4353 = vrot.lane.b32.xlu0 %v4131, 96
        %v4354 = vpop.permute.xlu0 %4353
        %4355 = vrot.lane.b32.xlu0 %v4136, 96
        %v4356 = vpop.permute.xlu0 %4355
        %4359 = vst.msk [vmem:[#allocation3 + $0x8] sm:$0xff] %vm4285, %v4354
        %4360 = vst.msk [vmem:[#allocation3 + $0x18] sm:$0xff] %vm4285, %v4356
        %4363 = vrot.lane.b32.xlu0 %v4212, 112
        %v4364 = vpop.permute.xlu0 %4363
        %4365 = vrot.lane.b32.xlu0 %v4217, 112
        %v4366 = vpop.permute.xlu0 %4365
        %4369 = vst.msk [vmem:[#allocation3 + $0x8] sm:$0xff] %vm4296, %v4364
        %4370 = vst.msk [vmem:[#allocation3 + $0x18] sm:$0xff] %vm4296, %v4366
        %v4371 = vld [vmem:[#allocation3] sm:$0xff]
        %v4372 = vld [vmem:[#allocation3 + $0x8] sm:$0xff]
        %v4373 = vld [vmem:[#allocation3 + $0x10] sm:$0xff]
        %v4374 = vld [vmem:[#allocation3 + $0x18] sm:$0xff]
        %v4375 = vld [vmem:[#allocation9] sm:$0xff]
        %v4376 = vld [vmem:[#allocation9 + $0x8] sm:$0xff]
        %v4377 = vld [vmem:[#allocation9 + $0x10] sm:$0xff]
        %v4378 = vld [vmem:[#allocation9 + $0x18] sm:$0xff]
        %v4379 = vld [vmem:[#allocation9 + $0x20] sm:$0xff]
        %v4380 = vld [vmem:[#allocation9 + $0x28] sm:$0xff]
        %v4381 = vld [vmem:[#allocation9 + $0x30] sm:$0xff]
        %v4382 = vld [vmem:[#allocation9 + $0x38] sm:$0xff]
        %v4383 = vld [vmem:[#allocation9 + $0x40] sm:$0xff]
        %v4384 = vld [vmem:[#allocation9 + $0x48] sm:$0xff]
        %v4385 = vld [vmem:[#allocation9 + $0x50] sm:$0xff]
        %v4386 = vld [vmem:[#allocation9 + $0x58] sm:$0xff]
        %v4387 = vld [vmem:[#allocation9 + $0x60] sm:$0xff]
        %v4388 = vld [vmem:[#allocation9 + $0x68] sm:$0xff]
        %v4389 = vld [vmem:[#allocation9 + $0x70] sm:$0xff]
        %v4390 = vld [vmem:[#allocation9 + $0x78] sm:$0xff]
        %v4391 = vld [vmem:[#allocation9 + $0x80] sm:$0xff]
        %v4392 = vld [vmem:[#allocation9 + $0x88] sm:$0xff]
        %v4393 = vld [vmem:[#allocation9 + $0x90] sm:$0xff]
        %v4394 = vld [vmem:[#allocation9 + $0x98] sm:$0xff]
        %v4395 = vld [vmem:[#allocation9 + $0xa0] sm:$0xff]
        %v4396 = vld [vmem:[#allocation9 + $0xa8] sm:$0xff]
        %v4397 = vld [vmem:[#allocation9 + $0xb0] sm:$0xff]
        %v4398 = vld [vmem:[#allocation9 + $0xb8] sm:$0xff]
        %v4399 = vld [vmem:[#allocation9 + $0xc0] sm:$0xff]
        %v4400 = vld [vmem:[#allocation9 + $0xc8] sm:$0xff]
        %v4401 = vld [vmem:[#allocation9 + $0xd0] sm:$0xff]
        %v4402 = vld [vmem:[#allocation9 + $0xd8] sm:$0xff]
        %v4403 = vld [vmem:[#allocation9 + $0xe0] sm:$0xff]
        %v4404 = vld [vmem:[#allocation9 + $0xe8] sm:$0xff]
        %v4405 = vld [vmem:[#allocation9 + $0xf0] sm:$0xff]
        %v4406 = vld [vmem:[#allocation9 + $0xf8] sm:$0xff]
        %v4407 = vld [vmem:[#allocation9 + $0x100] sm:$0xff]
        %v4408 = vld [vmem:[#allocation9 + $0x108] sm:$0xff]
        %v4409 = vld [vmem:[#allocation9 + $0x110] sm:$0xff]
        %v4410 = vld [vmem:[#allocation9 + $0x118] sm:$0xff]
        %v4411 = vld [vmem:[#allocation9 + $0x120] sm:$0xff]
        %v4412 = vld [vmem:[#allocation9 + $0x128] sm:$0xff]
        %v4413 = vld [vmem:[#allocation9 + $0x130] sm:$0xff]
        %v4414 = vld [vmem:[#allocation9 + $0x138] sm:$0xff]
        %v4415 = vld [vmem:[#allocation9 + $0x140] sm:$0xff]
        %v4416 = vld [vmem:[#allocation9 + $0x148] sm:$0xff]
        %v4417 = vld [vmem:[#allocation9 + $0x150] sm:$0xff]
        %v4418 = vld [vmem:[#allocation9 + $0x158] sm:$0xff]
        %v4419 = vld [vmem:[#allocation9 + $0x160] sm:$0xff]
        %v4420 = vld [vmem:[#allocation9 + $0x168] sm:$0xff]
        %v4421 = vld [vmem:[#allocation9 + $0x170] sm:$0xff]
        %v4422 = vld [vmem:[#allocation9 + $0x178] sm:$0xff]
        %v4423 = vld [vmem:[#allocation9 + $0x180] sm:$0xff]
        %v4424 = vld [vmem:[#allocation9 + $0x188] sm:$0xff]
        %v4425 = vld [vmem:[#allocation9 + $0x190] sm:$0xff]
        %v4426 = vld [vmem:[#allocation9 + $0x198] sm:$0xff]
        %v4427 = vld [vmem:[#allocation9 + $0x1a0] sm:$0xff]
        %v4428 = vld [vmem:[#allocation9 + $0x1a8] sm:$0xff]
        %v4429 = vld [vmem:[#allocation9 + $0x1b0] sm:$0xff]
        %v4430 = vld [vmem:[#allocation9 + $0x1b8] sm:$0xff]
        %v4431 = vld [vmem:[#allocation9 + $0x1c0] sm:$0xff]
        %v4432 = vld [vmem:[#allocation9 + $0x1c8] sm:$0xff]
        %v4433 = vld [vmem:[#allocation9 + $0x1d0] sm:$0xff]
        %v4434 = vld [vmem:[#allocation9 + $0x1d8] sm:$0xff]
        %v4435 = vld [vmem:[#allocation9 + $0x1e0] sm:$0xff]
        %v4436 = vld [vmem:[#allocation9 + $0x1e8] sm:$0xff]
        %v4437 = vld [vmem:[#allocation9 + $0x1f0] sm:$0xff]
        %v4438 = vld [vmem:[#allocation9 + $0x1f8] sm:$0xff]
        %v4439 = vld [vmem:[%s4] sm:$0x3]
        %v4441 = vlaneseq
        %v4442 = vshrl.u32 %v4441, 7
        %v4443 = vsub.s32 0, %v4442
        %v4444 = vrot.slane %v4439, %v4443
        %v4445 = vlaneseq
        %v4446 = vshrl.u32 %v4445, 7
        %v4447 = vsub.s32 1, %v4446
        %v4448 = vrot.slane %v4439, %v4447
        %4451 = vmatprep.subr.mxu0 %v4376
        %4452 = vmatpush1.msra.mxu0 %v4375
        %4453 = vmatprep.subr.mxu0 %v4378
        %4454 = vmatpush1.msra.mxu0 %v4377
        %4455 = vmatprep.subr.mxu0 %v4380
        %4456 = vmatpush1.msra.mxu0 %v4379
        %4457 = vmatprep.subr.mxu0 %v4382
        %4458 = vmatpush1.msra.mxu0 %v4381
        %4459 = vmatprep.subr.mxu0 %v4384
        %4460 = vmatpush1.msra.mxu0 %v4383
        %4461 = vmatprep.subr.mxu0 %v4386
        %4462 = vmatpush1.msra.mxu0 %v4385
        %4463 = vmatprep.subr.mxu0 %v4388
        %4464 = vmatpush1.msra.mxu0 %v4387
        %4465 = vmatprep.subr.mxu0 %v4390
        %4466 = vmatpush1.msra.mxu0 %v4389
        %4467 = vmatprep.subr.mxu0 %v4392
        %4468 = vmatpush1.msra.mxu0 %v4391
        %4469 = vmatprep.subr.mxu0 %v4394
        %4470 = vmatpush1.msra.mxu0 %v4393
        %4471 = vmatprep.subr.mxu0 %v4396
        %4472 = vmatpush1.msra.mxu0 %v4395
        %4473 = vmatprep.subr.mxu0 %v4398
        %4474 = vmatpush1.msra.mxu0 %v4397
        %4475 = vmatprep.subr.mxu0 %v4400
        %4476 = vmatpush1.msra.mxu0 %v4399
        %4477 = vmatprep.subr.mxu0 %v4402
        %4478 = vmatpush1.msra.mxu0 %v4401
        %4479 = vmatprep.subr.mxu0 %v4404
        %4480 = vmatpush1.msra.mxu0 %v4403
        %4481 = vmatprep.subr.mxu0 %v4406
        %4482 = vmatpush1.msra.mxu0 %v4405
        %4483 = vmatprep.subr.mxu0 %v4408
        %4484 = vmatpush1.msra.mxu0 %v4407
        %4485 = vmatprep.subr.mxu0 %v4410
        %4486 = vmatpush1.msra.mxu0 %v4409
        %4487 = vmatprep.subr.mxu0 %v4412
        %4488 = vmatpush1.msra.mxu0 %v4411
        %4489 = vmatprep.subr.mxu0 %v4414
        %4490 = vmatpush1.msra.mxu0 %v4413
        %4491 = vmatprep.subr.mxu0 %v4416
        %4492 = vmatpush1.msra.mxu0 %v4415
        %4493 = vmatprep.subr.mxu0 %v4418
        %4494 = vmatpush1.msra.mxu0 %v4417
        %4495 = vmatprep.subr.mxu0 %v4420
        %4496 = vmatpush1.msra.mxu0 %v4419
        %4497 = vmatprep.subr.mxu0 %v4422
        %4498 = vmatpush1.msra.mxu0 %v4421
        %4499 = vmatprep.subr.mxu0 %v4424
        %4500 = vmatpush1.msra.mxu0 %v4423
        %4501 = vmatprep.subr.mxu0 %v4426
        %4502 = vmatpush1.msra.mxu0 %v4425
        %4503 = vmatprep.subr.mxu0 %v4428
        %4504 = vmatpush1.msra.mxu0 %v4427
        %4505 = vmatprep.subr.mxu0 %v4430
        %4506 = vmatpush1.msra.mxu0 %v4429
        %4507 = vmatprep.subr.mxu0 %v4432
        %4508 = vmatpush1.msra.mxu0 %v4431
        %4509 = vmatprep.subr.mxu0 %v4434
        %4510 = vmatpush1.msra.mxu0 %v4433
        %4511 = vmatprep.subr.mxu0 %v4436
        %4512 = vmatpush1.msra.mxu0 %v4435
        %4513 = vmatprep.subr.mxu0 %v4438
        %4514 = vmatpush1.msra.mxu0 %v4437
        %4515 = vmatprep.mubr.f32.mxu0 %v4372
        %4516 = vmatmul.mubr.f32.gmra.mrb[0].mxu0 %v4371
        %v4517 = vpop.f32.mrb[0].mxu0
        %v4518 = vadd.f32 %v4444, %v4517
        %v4519 = vpop.f32.mrb[0].mxu0
        %v4520 = vadd.f32 %v4448, %v4519
        %4521 = vmatprep.mubr.f32.mxu0 %v4374
        %4522 = vmatmul.mubr.f32.gmra.mrb[0].mxu0 %v4373
        %v4523 = vpop.f32.mrb[0].mxu0
        %v4524 = vadd.f32 %v4444, %v4523
        %v4525 = vpop.f32.mrb[0].mxu0
        %v4526 = vadd.f32 %v4448, %v4525
        %4527 = vdwg.mxu0
        %v4528 = vadd.f32 %v520, %v4518
        %v4529 = vadd.f32 %v521, %v4520
        %v4530 = vadd.f32 %v522, %v4524
        %v4531 = vadd.f32 %v523, %v4526
        %v4532 = vadd.f32 %v4528, %v4529
        %4533 = vadd.xlane.f32.xlu0 %v4532
        %v4534 = vpop.xlane.xlu0 %4533
        %v4535 = vadd.f32 %v4530, %v4531
        %4536 = vadd.xlane.f32.xlu0 %v4535
        %v4537 = vpop.xlane.xlu0 %4536
        %v4538 = vrcp.pop 256.0
        %v4539 = vmul.f32 %v4534, %v4538
        %v4540 = vmul.f32 %v4537, %v4538
        %v4541 = vsub.f32 %v4528, %v4539
        %v4542 = vsub.f32 %v4529, %v4539
        %v4543 = vsub.f32 %v4530, %v4540
        %v4544 = vsub.f32 %v4531, %v4540
        %v4545 = vmul.f32 %v4541, %v4541
        %v4546 = vmul.f32 %v4542, %v4542
        %v4547 = vmul.f32 %v4543, %v4543
        %v4548 = vmul.f32 %v4544, %v4544
        %v4549 = vadd.f32 %v4545, %v4546
        %4550 = vadd.xlane.f32.xlu0 %v4549
        %v4551 = vpop.xlane.xlu0 %4550
        %v4552 = vadd.f32 %v4547, %v4548
        %4553 = vadd.xlane.f32.xlu0 %v4552
        %v4554 = vpop.xlane.xlu0 %4553
        %v4555 = vmul.f32 %v4551, %v4538
        %v4556 = vmul.f32 %v4554, %v4538
        %v4557 = vadd.f32 %v4555, 1e-12
        %v4558 = vadd.f32 %v4556, 1e-12
        %v4559 = vrsqrt.pop %v4557
        %v4560 = vrsqrt.pop %v4558
        %v4561 = vmul.f32 %v4541, %v4559
        %v4562 = vmul.f32 %v4542, %v4559
        %v4563 = vmul.f32 %v4543, %v4560
        %v4564 = vmul.f32 %v4544, %v4560
        %v4565 = vld [vmem:[%s5] sm:$0x3]
        %v4567 = vlaneseq
        %v4568 = vshrl.u32 %v4567, 7
        %v4569 = vsub.s32 0, %v4568
        %v4570 = vrot.slane %v4565, %v4569
        %v4571 = vlaneseq
        %v4572 = vshrl.u32 %v4571, 7
        %v4573 = vsub.s32 1, %v4572
        %v4574 = vrot.slane %v4565, %v4573
        %v4577 = vmul.f32 %v4561, %v4570
        %v4578 = vmul.f32 %v4562, %v4574
        %v4579 = vmul.f32 %v4563, %v4570
        %v4580 = vmul.f32 %v4564, %v4574
        %v4581 = vld [vmem:[%s6] sm:$0x3]
        %v4583 = vlaneseq
        %v4584 = vshrl.u32 %v4583, 7
        %v4585 = vsub.s32 0, %v4584
        %v4586 = vrot.slane %v4581, %v4585
        %v4587 = vlaneseq
        %v4588 = vshrl.u32 %v4587, 7
        %v4589 = vsub.s32 1, %v4588
        %v4590 = vrot.slane %v4581, %v4589
        %v4593 = vadd.f32 %v4577, %v4586
        %v4594 = vadd.f32 %v4578, %v4590
        %v4595 = vadd.f32 %v4579, %v4586
        %v4596 = vadd.f32 %v4580, %v4590
        %v4597 = vld [vmem:[#allocation10] sm:$0xff]
        %v4598 = vld [vmem:[#allocation10 + $0x8] sm:$0xff]
        %v4599 = vld [vmem:[#allocation10 + $0x10] sm:$0xff]
        %v4600 = vld [vmem:[#allocation10 + $0x18] sm:$0xff]
        %v4601 = vld [vmem:[#allocation10 + $0x20] sm:$0xff]
        %v4602 = vld [vmem:[#allocation10 + $0x28] sm:$0xff]
        %v4603 = vld [vmem:[#allocation10 + $0x30] sm:$0xff]
        %v4604 = vld [vmem:[#allocation10 + $0x38] sm:$0xff]
        %v4605 = vld [vmem:[#allocation10 + $0x40] sm:$0xff]
        %v4606 = vld [vmem:[#allocation10 + $0x48] sm:$0xff]
        %v4607 = vld [vmem:[#allocation10 + $0x50] sm:$0xff]
        %v4608 = vld [vmem:[#allocation10 + $0x58] sm:$0xff]
        %v4609 = vld [vmem:[#allocation10 + $0x60] sm:$0xff]
        %v4610 = vld [vmem:[#allocation10 + $0x68] sm:$0xff]
        %v4611 = vld [vmem:[#allocation10 + $0x70] sm:$0xff]
        %v4612 = vld [vmem:[#allocation10 + $0x78] sm:$0xff]
        %v4613 = vld [vmem:[#allocation10 + $0x80] sm:$0xff]
        %v4614 = vld [vmem:[#allocation10 + $0x88] sm:$0xff]
        %v4615 = vld [vmem:[#allocation10 + $0x90] sm:$0xff]
        %v4616 = vld [vmem:[#allocation10 + $0x98] sm:$0xff]
        %v4617 = vld [vmem:[#allocation10 + $0xa0] sm:$0xff]
        %v4618 = vld [vmem:[#allocation10 + $0xa8] sm:$0xff]
        %v4619 = vld [vmem:[#allocation10 + $0xb0] sm:$0xff]
        %v4620 = vld [vmem:[#allocation10 + $0xb8] sm:$0xff]
        %v4621 = vld [vmem:[#allocation10 + $0xc0] sm:$0xff]
        %v4622 = vld [vmem:[#allocation10 + $0xc8] sm:$0xff]
        %v4623 = vld [vmem:[#allocation10 + $0xd0] sm:$0xff]
        %v4624 = vld [vmem:[#allocation10 + $0xd8] sm:$0xff]
        %v4625 = vld [vmem:[#allocation10 + $0xe0] sm:$0xff]
        %v4626 = vld [vmem:[#allocation10 + $0xe8] sm:$0xff]
        %v4627 = vld [vmem:[#allocation10 + $0xf0] sm:$0xff]
        %v4628 = vld [vmem:[#allocation10 + $0xf8] sm:$0xff]
        %v4629 = vld [vmem:[#allocation10 + $0x100] sm:$0xff]
        %v4630 = vld [vmem:[#allocation10 + $0x108] sm:$0xff]
        %v4631 = vld [vmem:[#allocation10 + $0x110] sm:$0xff]
        %v4632 = vld [vmem:[#allocation10 + $0x118] sm:$0xff]
        %v4633 = vld [vmem:[#allocation10 + $0x120] sm:$0xff]
        %v4634 = vld [vmem:[#allocation10 + $0x128] sm:$0xff]
        %v4635 = vld [vmem:[#allocation10 + $0x130] sm:$0xff]
        %v4636 = vld [vmem:[#allocation10 + $0x138] sm:$0xff]
        %v4637 = vld [vmem:[#allocation10 + $0x140] sm:$0xff]
        %v4638 = vld [vmem:[#allocation10 + $0x148] sm:$0xff]
        %v4639 = vld [vmem:[#allocation10 + $0x150] sm:$0xff]
        %v4640 = vld [vmem:[#allocation10 + $0x158] sm:$0xff]
        %v4641 = vld [vmem:[#allocation10 + $0x160] sm:$0xff]
        %v4642 = vld [vmem:[#allocation10 + $0x168] sm:$0xff]
        %v4643 = vld [vmem:[#allocation10 + $0x170] sm:$0xff]
        %v4644 = vld [vmem:[#allocation10 + $0x178] sm:$0xff]
        %v4645 = vld [vmem:[#allocation10 + $0x180] sm:$0xff]
        %v4646 = vld [vmem:[#allocation10 + $0x188] sm:$0xff]
        %v4647 = vld [vmem:[#allocation10 + $0x190] sm:$0xff]
        %v4648 = vld [vmem:[#allocation10 + $0x198] sm:$0xff]
        %v4649 = vld [vmem:[#allocation10 + $0x1a0] sm:$0xff]
        %v4650 = vld [vmem:[#allocation10 + $0x1a8] sm:$0xff]
        %v4651 = vld [vmem:[#allocation10 + $0x1b0] sm:$0xff]
        %v4652 = vld [vmem:[#allocation10 + $0x1b8] sm:$0xff]
        %v4653 = vld [vmem:[#allocation10 + $0x1c0] sm:$0xff]
        %v4654 = vld [vmem:[#allocation10 + $0x1c8] sm:$0xff]
        %v4655 = vld [vmem:[#allocation10 + $0x1d0] sm:$0xff]
        %v4656 = vld [vmem:[#allocation10 + $0x1d8] sm:$0xff]
        %v4657 = vld [vmem:[#allocation10 + $0x1e0] sm:$0xff]
        %v4658 = vld [vmem:[#allocation10 + $0x1e8] sm:$0xff]
        %v4659 = vld [vmem:[#allocation10 + $0x1f0] sm:$0xff]
        %v4660 = vld [vmem:[#allocation10 + $0x1f8] sm:$0xff]
        %v4661 = vld [vmem:[#allocation10 + $0x200] sm:$0xff]
        %v4662 = vld [vmem:[#allocation10 + $0x208] sm:$0xff]
        %v4663 = vld [vmem:[#allocation10 + $0x210] sm:$0xff]
        %v4664 = vld [vmem:[#allocation10 + $0x218] sm:$0xff]
        %v4665 = vld [vmem:[#allocation10 + $0x220] sm:$0xff]
        %v4666 = vld [vmem:[#allocation10 + $0x228] sm:$0xff]
        %v4667 = vld [vmem:[#allocation10 + $0x230] sm:$0xff]
        %v4668 = vld [vmem:[#allocation10 + $0x238] sm:$0xff]
        %v4669 = vld [vmem:[#allocation10 + $0x240] sm:$0xff]
        %v4670 = vld [vmem:[#allocation10 + $0x248] sm:$0xff]
        %v4671 = vld [vmem:[#allocation10 + $0x250] sm:$0xff]
        %v4672 = vld [vmem:[#allocation10 + $0x258] sm:$0xff]
        %v4673 = vld [vmem:[#allocation10 + $0x260] sm:$0xff]
        %v4674 = vld [vmem:[#allocation10 + $0x268] sm:$0xff]
        %v4675 = vld [vmem:[#allocation10 + $0x270] sm:$0xff]
        %v4676 = vld [vmem:[#allocation10 + $0x278] sm:$0xff]
        %v4677 = vld [vmem:[#allocation10 + $0x280] sm:$0xff]
        %v4678 = vld [vmem:[#allocation10 + $0x288] sm:$0xff]
        %v4679 = vld [vmem:[#allocation10 + $0x290] sm:$0xff]
        %v4680 = vld [vmem:[#allocation10 + $0x298] sm:$0xff]
        %v4681 = vld [vmem:[#allocation10 + $0x2a0] sm:$0xff]
        %v4682 = vld [vmem:[#allocation10 + $0x2a8] sm:$0xff]
        %v4683 = vld [vmem:[#allocation10 + $0x2b0] sm:$0xff]
        %v4684 = vld [vmem:[#allocation10 + $0x2b8] sm:$0xff]
        %v4685 = vld [vmem:[#allocation10 + $0x2c0] sm:$0xff]
        %v4686 = vld [vmem:[#allocation10 + $0x2c8] sm:$0xff]
        %v4687 = vld [vmem:[#allocation10 + $0x2d0] sm:$0xff]
        %v4688 = vld [vmem:[#allocation10 + $0x2d8] sm:$0xff]
        %v4689 = vld [vmem:[#allocation10 + $0x2e0] sm:$0xff]
        %v4690 = vld [vmem:[#allocation10 + $0x2e8] sm:$0xff]
        %v4691 = vld [vmem:[#allocation10 + $0x2f0] sm:$0xff]
        %v4692 = vld [vmem:[#allocation10 + $0x2f8] sm:$0xff]
        %v4693 = vld [vmem:[#allocation10 + $0x300] sm:$0xff]
        %v4694 = vld [vmem:[#allocation10 + $0x308] sm:$0xff]
        %v4695 = vld [vmem:[#allocation10 + $0x310] sm:$0xff]
        %v4696 = vld [vmem:[#allocation10 + $0x318] sm:$0xff]
        %v4697 = vld [vmem:[#allocation10 + $0x320] sm:$0xff]
        %v4698 = vld [vmem:[#allocation10 + $0x328] sm:$0xff]
        %v4699 = vld [vmem:[#allocation10 + $0x330] sm:$0xff]
        %v4700 = vld [vmem:[#allocation10 + $0x338] sm:$0xff]
        %v4701 = vld [vmem:[#allocation10 + $0x340] sm:$0xff]
        %v4702 = vld [vmem:[#allocation10 + $0x348] sm:$0xff]
        %v4703 = vld [vmem:[#allocation10 + $0x350] sm:$0xff]
        %v4704 = vld [vmem:[#allocation10 + $0x358] sm:$0xff]
        %v4705 = vld [vmem:[#allocation10 + $0x360] sm:$0xff]
        %v4706 = vld [vmem:[#allocation10 + $0x368] sm:$0xff]
        %v4707 = vld [vmem:[#allocation10 + $0x370] sm:$0xff]
        %v4708 = vld [vmem:[#allocation10 + $0x378] sm:$0xff]
        %v4709 = vld [vmem:[#allocation10 + $0x380] sm:$0xff]
        %v4710 = vld [vmem:[#allocation10 + $0x388] sm:$0xff]
        %v4711 = vld [vmem:[#allocation10 + $0x390] sm:$0xff]
        %v4712 = vld [vmem:[#allocation10 + $0x398] sm:$0xff]
        %v4713 = vld [vmem:[#allocation10 + $0x3a0] sm:$0xff]
        %v4714 = vld [vmem:[#allocation10 + $0x3a8] sm:$0xff]
        %v4715 = vld [vmem:[#allocation10 + $0x3b0] sm:$0xff]
        %v4716 = vld [vmem:[#allocation10 + $0x3b8] sm:$0xff]
        %v4717 = vld [vmem:[#allocation10 + $0x3c0] sm:$0xff]
        %v4718 = vld [vmem:[#allocation10 + $0x3c8] sm:$0xff]
        %v4719 = vld [vmem:[#allocation10 + $0x3d0] sm:$0xff]
        %v4720 = vld [vmem:[#allocation10 + $0x3d8] sm:$0xff]
        %v4721 = vld [vmem:[#allocation10 + $0x3e0] sm:$0xff]
        %v4722 = vld [vmem:[#allocation10 + $0x3e8] sm:$0xff]
        %v4723 = vld [vmem:[#allocation10 + $0x3f0] sm:$0xff]
        %v4724 = vld [vmem:[#allocation10 + $0x3f8] sm:$0xff]
        %v4725 = vld [vmem:[%s8] sm:$0xf]
        %v4727 = vlaneseq
        %v4728 = vshrl.u32 %v4727, 7
        %v4729 = vsub.s32 0, %v4728
        %v4730 = vrot.slane %v4725, %v4729
        %v4731 = vlaneseq
        %v4732 = vshrl.u32 %v4731, 7
        %v4733 = vsub.s32 1, %v4732
        %v4734 = vrot.slane %v4725, %v4733
        %v4735 = vlaneseq
        %v4736 = vshrl.u32 %v4735, 7
        %v4737 = vsub.s32 2, %v4736
        %v4738 = vrot.slane %v4725, %v4737
        %v4739 = vlaneseq
        %v4740 = vshrl.u32 %v4739, 7
        %v4741 = vsub.s32 3, %v4740
        %v4742 = vrot.slane %v4725, %v4741
        %4747 = vmatprep.subr.mxu0 %v4598
        %4748 = vmatpush1.msra.mxu0 %v4597
        %4749 = vmatprep.subr.mxu0 %v4602
        %4750 = vmatpush1.msra.mxu0 %v4601
        %4751 = vmatprep.subr.mxu0 %v4606
        %4752 = vmatpush1.msra.mxu0 %v4605
        %4753 = vmatprep.subr.mxu0 %v4610
        %4754 = vmatpush1.msra.mxu0 %v4609
        %4755 = vmatprep.subr.mxu0 %v4614
        %4756 = vmatpush1.msra.mxu0 %v4613
        %4757 = vmatprep.subr.mxu0 %v4618
        %4758 = vmatpush1.msra.mxu0 %v4617
        %4759 = vmatprep.subr.mxu0 %v4622
        %4760 = vmatpush1.msra.mxu0 %v4621
        %4761 = vmatprep.subr.mxu0 %v4626
        %4762 = vmatpush1.msra.mxu0 %v4625
        %4763 = vmatprep.subr.mxu0 %v4630
        %4764 = vmatpush1.msra.mxu0 %v4629
        %4765 = vmatprep.subr.mxu0 %v4634
        %4766 = vmatpush1.msra.mxu0 %v4633
        %4767 = vmatprep.subr.mxu0 %v4638
        %4768 = vmatpush1.msra.mxu0 %v4637
        %4769 = vmatprep.subr.mxu0 %v4642
        %4770 = vmatpush1.msra.mxu0 %v4641
        %4771 = vmatprep.subr.mxu0 %v4646
        %4772 = vmatpush1.msra.mxu0 %v4645
        %4773 = vmatprep.subr.mxu0 %v4650
        %4774 = vmatpush1.msra.mxu0 %v4649
        %4775 = vmatprep.subr.mxu0 %v4654
        %4776 = vmatpush1.msra.mxu0 %v4653
        %4777 = vmatprep.subr.mxu0 %v4658
        %4778 = vmatpush1.msra.mxu0 %v4657
        %4779 = vmatprep.subr.mxu0 %v4662
        %4780 = vmatpush1.msra.mxu0 %v4661
        %4781 = vmatprep.subr.mxu0 %v4666
        %4782 = vmatpush1.msra.mxu0 %v4665
        %4783 = vmatprep.subr.mxu0 %v4670
        %4784 = vmatpush1.msra.mxu0 %v4669
        %4785 = vmatprep.subr.mxu0 %v4674
        %4786 = vmatpush1.msra.mxu0 %v4673
        %4787 = vmatprep.subr.mxu0 %v4678
        %4788 = vmatpush1.msra.mxu0 %v4677
        %4789 = vmatprep.subr.mxu0 %v4682
        %4790 = vmatpush1.msra.mxu0 %v4681
        %4791 = vmatprep.subr.mxu0 %v4686
        %4792 = vmatpush1.msra.mxu0 %v4685
        %4793 = vmatprep.subr.mxu0 %v4690
        %4794 = vmatpush1.msra.mxu0 %v4689
        %4795 = vmatprep.subr.mxu0 %v4694
        %4796 = vmatpush1.msra.mxu0 %v4693
        %4797 = vmatprep.subr.mxu0 %v4698
        %4798 = vmatpush1.msra.mxu0 %v4697
        %4799 = vmatprep.subr.mxu0 %v4702
        %4800 = vmatpush1.msra.mxu0 %v4701
        %4801 = vmatprep.subr.mxu0 %v4706
        %4802 = vmatpush1.msra.mxu0 %v4705
        %4803 = vmatprep.subr.mxu0 %v4710
        %4804 = vmatpush1.msra.mxu0 %v4709
        %4805 = vmatprep.subr.mxu0 %v4714
        %4806 = vmatpush1.msra.mxu0 %v4713
        %4807 = vmatprep.subr.mxu0 %v4718
        %4808 = vmatpush1.msra.mxu0 %v4717
        %4809 = vmatprep.subr.mxu0 %v4722
        %4810 = vmatpush1.msra.mxu0 %v4721
        %4811 = vmatprep.mubr.f32.mxu0 %v4594
        %4812 = vmatmul.mubr.f32.gmra.mrb[0].mxu0 %v4593
        %v4813 = vpop.f32.mrb[0].mxu0
        %v4814 = vadd.f32 %v4730, %v4813
        %v4815 = vpop.f32.mrb[0].mxu0
        %v4816 = vadd.f32 %v4734, %v4815
        %4817 = vmatprep.mubr.f32.mxu0 %v4596
        %4818 = vmatmul.mubr.f32.gmra.mrb[0].mxu0 %v4595
        %v4819 = vpop.f32.mrb[0].mxu0
        %v4820 = vadd.f32 %v4730, %v4819
        %v4821 = vpop.f32.mrb[0].mxu0
        %v4822 = vadd.f32 %v4734, %v4821
        %4823 = vdwg.mxu0
        %4824 = vmatprep.subr.mxu0 %v4600
        %4825 = vmatpush1.msra.mxu0 %v4599
        %4826 = vmatprep.subr.mxu0 %v4604
        %4827 = vmatpush1.msra.mxu0 %v4603
        %4828 = vmatprep.subr.mxu0 %v4608
        %4829 = vmatpush1.msra.mxu0 %v4607
        %4830 = vmatprep.subr.mxu0 %v4612
        %4831 = vmatpush1.msra.mxu0 %v4611
        %4832 = vmatprep.subr.mxu0 %v4616
        %4833 = vmatpush1.msra.mxu0 %v4615
        %4834 = vmatprep.subr.mxu0 %v4620
        %4835 = vmatpush1.msra.mxu0 %v4619
        %4836 = vmatprep.subr.mxu0 %v4624
        %4837 = vmatpush1.msra.mxu0 %v4623
        %4838 = vmatprep.subr.mxu0 %v4628
        %4839 = vmatpush1.msra.mxu0 %v4627
        %4840 = vmatprep.subr.mxu0 %v4632
        %4841 = vmatpush1.msra.mxu0 %v4631
        %4842 = vmatprep.subr.mxu0 %v4636
        %4843 = vmatpush1.msra.mxu0 %v4635
        %4844 = vmatprep.subr.mxu0 %v4640
        %4845 = vmatpush1.msra.mxu0 %v4639
        %4846 = vmatprep.subr.mxu0 %v4644
        %4847 = vmatpush1.msra.mxu0 %v4643
        %4848 = vmatprep.subr.mxu0 %v4648
        %4849 = vmatpush1.msra.mxu0 %v4647
        %4850 = vmatprep.subr.mxu0 %v4652
        %4851 = vmatpush1.msra.mxu0 %v4651
        %4852 = vmatprep.subr.mxu0 %v4656
        %4853 = vmatpush1.msra.mxu0 %v4655
        %4854 = vmatprep.subr.mxu0 %v4660
        %4855 = vmatpush1.msra.mxu0 %v4659
        %4856 = vmatprep.subr.mxu0 %v4664
        %4857 = vmatpush1.msra.mxu0 %v4663
        %4858 = vmatprep.subr.mxu0 %v4668
        %4859 = vmatpush1.msra.mxu0 %v4667
        %4860 = vmatprep.subr.mxu0 %v4672
        %4861 = vmatpush1.msra.mxu0 %v4671
        %4862 = vmatprep.subr.mxu0 %v4676
        %4863 = vmatpush1.msra.mxu0 %v4675
        %4864 = vmatprep.subr.mxu0 %v4680
        %4865 = vmatpush1.msra.mxu0 %v4679
        %4866 = vmatprep.subr.mxu0 %v4684
        %4867 = vmatpush1.msra.mxu0 %v4683
        %4868 = vmatprep.subr.mxu0 %v4688
        %4869 = vmatpush1.msra.mxu0 %v4687
        %4870 = vmatprep.subr.mxu0 %v4692
        %4871 = vmatpush1.msra.mxu0 %v4691
        %4872 = vmatprep.subr.mxu0 %v4696
        %4873 = vmatpush1.msra.mxu0 %v4695
        %4874 = vmatprep.subr.mxu0 %v4700
        %4875 = vmatpush1.msra.mxu0 %v4699
        %4876 = vmatprep.subr.mxu0 %v4704
        %4877 = vmatpush1.msra.mxu0 %v4703
        %4878 = vmatprep.subr.mxu0 %v4708
        %4879 = vmatpush1.msra.mxu0 %v4707
        %4880 = vmatprep.subr.mxu0 %v4712
        %4881 = vmatpush1.msra.mxu0 %v4711
        %4882 = vmatprep.subr.mxu0 %v4716
        %4883 = vmatpush1.msra.mxu0 %v4715
        %4884 = vmatprep.subr.mxu0 %v4720
        %4885 = vmatpush1.msra.mxu0 %v4719
        %4886 = vmatprep.subr.mxu0 %v4724
        %4887 = vmatpush1.msra.mxu0 %v4723
        %4888 = vmatprep.mubr.f32.mxu0 %v4594
        %4889 = vmatmul.mubr.f32.gmra.mrb[0].mxu0 %v4593
        %v4890 = vpop.f32.mrb[0].mxu0
        %v4891 = vadd.f32 %v4738, %v4890
        %v4892 = vpop.f32.mrb[0].mxu0
        %v4893 = vadd.f32 %v4742, %v4892
        %4894 = vmatprep.mubr.f32.mxu0 %v4596
        %4895 = vmatmul.mubr.f32.gmra.mrb[0].mxu0 %v4595
        %v4896 = vpop.f32.mrb[0].mxu0
        %v4897 = vadd.f32 %v4738, %v4896
        %v4898 = vpop.f32.mrb[0].mxu0
        %v4899 = vadd.f32 %v4742, %v4898
        %4900 = vdwg.mxu0
        %v4901 = vmul.f32 %v4814, 0.5
        %v4902 = vmul.f32 %v4816, 0.5
        %v4903 = vmul.f32 %v4891, 0.5
        %v4904 = vmul.f32 %v4893, 0.5
        %v4905 = vmul.f32 %v4820, 0.5
        %v4906 = vmul.f32 %v4822, 0.5
        %v4907 = vmul.f32 %v4897, 0.5
        %v4908 = vmul.f32 %v4899, 0.5
        %v4909 = vmul.f32 %v4814, 0.70710677
        %v4910 = vmul.f32 %v4816, 0.70710677
        %v4911 = vmul.f32 %v4891, 0.70710677
        %v4912 = vmul.f32 %v4893, 0.70710677
        %v4913 = vmul.f32 %v4820, 0.70710677
        %v4914 = vmul.f32 %v4822, 0.70710677
        %v4915 = vmul.f32 %v4897, 0.70710677
        %v4916 = vmul.f32 %v4899, 0.70710677
        %v4917 = verf.f32.pop %v4909
        %v4918 = verf.f32.pop %v4910
        %v4919 = verf.f32.pop %v4911
        %v4920 = verf.f32.pop %v4912
        %v4921 = verf.f32.pop %v4913
        %v4922 = verf.f32.pop %v4914
        %v4923 = verf.f32.pop %v4915
        %v4924 = verf.f32.pop %v4916
        %v4925 = vadd.f32 %v4917, 1.0
        %v4926 = vadd.f32 %v4918, 1.0
        %v4927 = vadd.f32 %v4919, 1.0
        %v4928 = vadd.f32 %v4920, 1.0
        %v4929 = vadd.f32 %v4921, 1.0
        %v4930 = vadd.f32 %v4922, 1.0
        %v4931 = vadd.f32 %v4923, 1.0
        %v4932 = vadd.f32 %v4924, 1.0
        %v4933 = vmul.f32 %v4901, %v4925
        %v4934 = vmul.f32 %v4902, %v4926
        %v4935 = vmul.f32 %v4903, %v4927
        %v4936 = vmul.f32 %v4904, %v4928
        %v4937 = vmul.f32 %v4905, %v4929
        %v4938 = vmul.f32 %v4906, %v4930
        %v4939 = vmul.f32 %v4907, %v4931
        %v4940 = vmul.f32 %v4908, %v4932
        %v4941 = vld [vmem:[#allocation12] sm:$0xff]
        %v4942 = vld [vmem:[#allocation12 + $0x8] sm:$0xff]
        %v4943 = vld [vmem:[#allocation12 + $0x10] sm:$0xff]
        %v4944 = vld [vmem:[#allocation12 + $0x18] sm:$0xff]
        %v4945 = vld [vmem:[#allocation12 + $0x20] sm:$0xff]
        %v4946 = vld [vmem:[#allocation12 + $0x28] sm:$0xff]
        %v4947 = vld [vmem:[#allocation12 + $0x30] sm:$0xff]
        %v4948 = vld [vmem:[#allocation12 + $0x38] sm:$0xff]
        %v4949 = vld [vmem:[#allocation12 + $0x40] sm:$0xff]
        %v4950 = vld [vmem:[#allocation12 + $0x48] sm:$0xff]
        %v4951 = vld [vmem:[#allocation12 + $0x50] sm:$0xff]
        %v4952 = vld [vmem:[#allocation12 + $0x58] sm:$0xff]
        %v4953 = vld [vmem:[#allocation12 + $0x60] sm:$0xff]
        %v4954 = vld [vmem:[#allocation12 + $0x68] sm:$0xff]
        %v4955 = vld [vmem:[#allocation12 + $0x70] sm:$0xff]
        %v4956 = vld [vmem:[#allocation12 + $0x78] sm:$0xff]
        %v4957 = vld [vmem:[#allocation12 + $0x80] sm:$0xff]
        %v4958 = vld [vmem:[#allocation12 + $0x88] sm:$0xff]
        %v4959 = vld [vmem:[#allocation12 + $0x90] sm:$0xff]
        %v4960 = vld [vmem:[#allocation12 + $0x98] sm:$0xff]
        %v4961 = vld [vmem:[#allocation12 + $0xa0] sm:$0xff]
        %v4962 = vld [vmem:[#allocation12 + $0xa8] sm:$0xff]
        %v4963 = vld [vmem:[#allocation12 + $0xb0] sm:$0xff]
        %v4964 = vld [vmem:[#allocation12 + $0xb8] sm:$0xff]
        %v4965 = vld [vmem:[#allocation12 + $0xc0] sm:$0xff]
        %v4966 = vld [vmem:[#allocation12 + $0xc8] sm:$0xff]
        %v4967 = vld [vmem:[#allocation12 + $0xd0] sm:$0xff]
        %v4968 = vld [vmem:[#allocation12 + $0xd8] sm:$0xff]
        %v4969 = vld [vmem:[#allocation12 + $0xe0] sm:$0xff]
        %v4970 = vld [vmem:[#allocation12 + $0xe8] sm:$0xff]
        %v4971 = vld [vmem:[#allocation12 + $0xf0] sm:$0xff]
        %v4972 = vld [vmem:[#allocation12 + $0xf8] sm:$0xff]
        %v4973 = vld [vmem:[#allocation12 + $0x100] sm:$0xff]
        %v4974 = vld [vmem:[#allocation12 + $0x108] sm:$0xff]
        %v4975 = vld [vmem:[#allocation12 + $0x110] sm:$0xff]
        %v4976 = vld [vmem:[#allocation12 + $0x118] sm:$0xff]
        %v4977 = vld [vmem:[#allocation12 + $0x120] sm:$0xff]
        %v4978 = vld [vmem:[#allocation12 + $0x128] sm:$0xff]
        %v4979 = vld [vmem:[#allocation12 + $0x130] sm:$0xff]
        %v4980 = vld [vmem:[#allocation12 + $0x138] sm:$0xff]
        %v4981 = vld [vmem:[#allocation12 + $0x140] sm:$0xff]
        %v4982 = vld [vmem:[#allocation12 + $0x148] sm:$0xff]
        %v4983 = vld [vmem:[#allocation12 + $0x150] sm:$0xff]
        %v4984 = vld [vmem:[#allocation12 + $0x158] sm:$0xff]
        %v4985 = vld [vmem:[#allocation12 + $0x160] sm:$0xff]
        %v4986 = vld [vmem:[#allocation12 + $0x168] sm:$0xff]
        %v4987 = vld [vmem:[#allocation12 + $0x170] sm:$0xff]
        %v4988 = vld [vmem:[#allocation12 + $0x178] sm:$0xff]
        %v4989 = vld [vmem:[#allocation12 + $0x180] sm:$0xff]
        %v4990 = vld [vmem:[#allocation12 + $0x188] sm:$0xff]
        %v4991 = vld [vmem:[#allocation12 + $0x190] sm:$0xff]
        %v4992 = vld [vmem:[#allocation12 + $0x198] sm:$0xff]
        %v4993 = vld [vmem:[#allocation12 + $0x1a0] sm:$0xff]
        %v4994 = vld [vmem:[#allocation12 + $0x1a8] sm:$0xff]
        %v4995 = vld [vmem:[#allocation12 + $0x1b0] sm:$0xff]
        %v4996 = vld [vmem:[#allocation12 + $0x1b8] sm:$0xff]
        %v4997 = vld [vmem:[#allocation12 + $0x1c0] sm:$0xff]
        %v4998 = vld [vmem:[#allocation12 + $0x1c8] sm:$0xff]
        %v4999 = vld [vmem:[#allocation12 + $0x1d0] sm:$0xff]
        %v5000 = vld [vmem:[#allocation12 + $0x1d8] sm:$0xff]
        %v5001 = vld [vmem:[#allocation12 + $0x1e0] sm:$0xff]
        %v5002 = vld [vmem:[#allocation12 + $0x1e8] sm:$0xff]
        %v5003 = vld [vmem:[#allocation12 + $0x1f0] sm:$0xff]
        %v5004 = vld [vmem:[#allocation12 + $0x1f8] sm:$0xff]
        %v5005 = vld [vmem:[#allocation12 + $0x200] sm:$0xff]
        %v5006 = vld [vmem:[#allocation12 + $0x208] sm:$0xff]
        %v5007 = vld [vmem:[#allocation12 + $0x210] sm:$0xff]
        %v5008 = vld [vmem:[#allocation12 + $0x218] sm:$0xff]
        %v5009 = vld [vmem:[#allocation12 + $0x220] sm:$0xff]
        %v5010 = vld [vmem:[#allocation12 + $0x228] sm:$0xff]
        %v5011 = vld [vmem:[#allocation12 + $0x230] sm:$0xff]
        %v5012 = vld [vmem:[#allocation12 + $0x238] sm:$0xff]
        %v5013 = vld [vmem:[#allocation12 + $0x240] sm:$0xff]
        %v5014 = vld [vmem:[#allocation12 + $0x248] sm:$0xff]
        %v5015 = vld [vmem:[#allocation12 + $0x250] sm:$0xff]
        %v5016 = vld [vmem:[#allocation12 + $0x258] sm:$0xff]
        %v5017 = vld [vmem:[#allocation12 + $0x260] sm:$0xff]
        %v5018 = vld [vmem:[#allocation12 + $0x268] sm:$0xff]
        %v5019 = vld [vmem:[#allocation12 + $0x270] sm:$0xff]
        %v5020 = vld [vmem:[#allocation12 + $0x278] sm:$0xff]
        %v5021 = vld [vmem:[#allocation12 + $0x280] sm:$0xff]
        %v5022 = vld [vmem:[#allocation12 + $0x288] sm:$0xff]
        %v5023 = vld [vmem:[#allocation12 + $0x290] sm:$0xff]
        %v5024 = vld [vmem:[#allocation12 + $0x298] sm:$0xff]
        %v5025 = vld [vmem:[#allocation12 + $0x2a0] sm:$0xff]
        %v5026 = vld [vmem:[#allocation12 + $0x2a8] sm:$0xff]
        %v5027 = vld [vmem:[#allocation12 + $0x2b0] sm:$0xff]
        %v5028 = vld [vmem:[#allocation12 + $0x2b8] sm:$0xff]
        %v5029 = vld [vmem:[#allocation12 + $0x2c0] sm:$0xff]
        %v5030 = vld [vmem:[#allocation12 + $0x2c8] sm:$0xff]
        %v5031 = vld [vmem:[#allocation12 + $0x2d0] sm:$0xff]
        %v5032 = vld [vmem:[#allocation12 + $0x2d8] sm:$0xff]
        %v5033 = vld [vmem:[#allocation12 + $0x2e0] sm:$0xff]
        %v5034 = vld [vmem:[#allocation12 + $0x2e8] sm:$0xff]
        %v5035 = vld [vmem:[#allocation12 + $0x2f0] sm:$0xff]
        %v5036 = vld [vmem:[#allocation12 + $0x2f8] sm:$0xff]
        %v5037 = vld [vmem:[#allocation12 + $0x300] sm:$0xff]
        %v5038 = vld [vmem:[#allocation12 + $0x308] sm:$0xff]
        %v5039 = vld [vmem:[#allocation12 + $0x310] sm:$0xff]
        %v5040 = vld [vmem:[#allocation12 + $0x318] sm:$0xff]
        %v5041 = vld [vmem:[#allocation12 + $0x320] sm:$0xff]
        %v5042 = vld [vmem:[#allocation12 + $0x328] sm:$0xff]
        %v5043 = vld [vmem:[#allocation12 + $0x330] sm:$0xff]
        %v5044 = vld [vmem:[#allocation12 + $0x338] sm:$0xff]
        %v5045 = vld [vmem:[#allocation12 + $0x340] sm:$0xff]
        %v5046 = vld [vmem:[#allocation12 + $0x348] sm:$0xff]
        %v5047 = vld [vmem:[#allocation12 + $0x350] sm:$0xff]
        %v5048 = vld [vmem:[#allocation12 + $0x358] sm:$0xff]
        %v5049 = vld [vmem:[#allocation12 + $0x360] sm:$0xff]
        %v5050 = vld [vmem:[#allocation12 + $0x368] sm:$0xff]
        %v5051 = vld [vmem:[#allocation12 + $0x370] sm:$0xff]
        %v5052 = vld [vmem:[#allocation12 + $0x378] sm:$0xff]
        %v5053 = vld [vmem:[#allocation12 + $0x380] sm:$0xff]
        %v5054 = vld [vmem:[#allocation12 + $0x388] sm:$0xff]
        %v5055 = vld [vmem:[#allocation12 + $0x390] sm:$0xff]
        %v5056 = vld [vmem:[#allocation12 + $0x398] sm:$0xff]
        %v5057 = vld [vmem:[#allocation12 + $0x3a0] sm:$0xff]
        %v5058 = vld [vmem:[#allocation12 + $0x3a8] sm:$0xff]
        %v5059 = vld [vmem:[#allocation12 + $0x3b0] sm:$0xff]
        %v5060 = vld [vmem:[#allocation12 + $0x3b8] sm:$0xff]
        %v5061 = vld [vmem:[#allocation12 + $0x3c0] sm:$0xff]
        %v5062 = vld [vmem:[#allocation12 + $0x3c8] sm:$0xff]
        %v5063 = vld [vmem:[#allocation12 + $0x3d0] sm:$0xff]
        %v5064 = vld [vmem:[#allocation12 + $0x3d8] sm:$0xff]
        %v5065 = vld [vmem:[#allocation12 + $0x3e0] sm:$0xff]
        %v5066 = vld [vmem:[#allocation12 + $0x3e8] sm:$0xff]
        %v5067 = vld [vmem:[#allocation12 + $0x3f0] sm:$0xff]
        %v5068 = vld [vmem:[#allocation12 + $0x3f8] sm:$0xff]
        %v5069 = vld [vmem:[%s10] sm:$0x3]
        %v5071 = vlaneseq
        %v5072 = vshrl.u32 %v5071, 7
        %v5073 = vsub.s32 0, %v5072
        %v5074 = vrot.slane %v5069, %v5073
        %v5075 = vlaneseq
        %v5076 = vshrl.u32 %v5075, 7
        %v5077 = vsub.s32 1, %v5076
        %v5078 = vrot.slane %v5069, %v5077
        %5081 = vmatprep.subr.mxu0 %v4942
        %5082 = vmatpush1.msra.mxu0 %v4941
        %5083 = vmatprep.subr.mxu0 %v4944
        %5084 = vmatpush1.msra.mxu0 %v4943
        %5085 = vmatprep.subr.mxu0 %v4946
        %5086 = vmatpush1.msra.mxu0 %v4945
        %5087 = vmatprep.subr.mxu0 %v4948
        %5088 = vmatpush1.msra.mxu0 %v4947
        %5089 = vmatprep.subr.mxu0 %v4950
        %5090 = vmatpush1.msra.mxu0 %v4949
        %5091 = vmatprep.subr.mxu0 %v4952
        %5092 = vmatpush1.msra.mxu0 %v4951
        %5093 = vmatprep.subr.mxu0 %v4954
        %5094 = vmatpush1.msra.mxu0 %v4953
        %5095 = vmatprep.subr.mxu0 %v4956
        %5096 = vmatpush1.msra.mxu0 %v4955
        %5097 = vmatprep.subr.mxu0 %v4958
        %5098 = vmatpush1.msra.mxu0 %v4957
        %5099 = vmatprep.subr.mxu0 %v4960
        %5100 = vmatpush1.msra.mxu0 %v4959
        %5101 = vmatprep.subr.mxu0 %v4962
        %5102 = vmatpush1.msra.mxu0 %v4961
        %5103 = vmatprep.subr.mxu0 %v4964
        %5104 = vmatpush1.msra.mxu0 %v4963
        %5105 = vmatprep.subr.mxu0 %v4966
        %5106 = vmatpush1.msra.mxu0 %v4965
        %5107 = vmatprep.subr.mxu0 %v4968
        %5108 = vmatpush1.msra.mxu0 %v4967
        %5109 = vmatprep.subr.mxu0 %v4970
        %5110 = vmatpush1.msra.mxu0 %v4969
        %5111 = vmatprep.subr.mxu0 %v4972
        %5112 = vmatpush1.msra.mxu0 %v4971
        %5113 = vmatprep.subr.mxu0 %v4974
        %5114 = vmatpush1.msra.mxu0 %v4973
        %5115 = vmatprep.subr.mxu0 %v4976
        %5116 = vmatpush1.msra.mxu0 %v4975
        %5117 = vmatprep.subr.mxu0 %v4978
        %5118 = vmatpush1.msra.mxu0 %v4977
        %5119 = vmatprep.subr.mxu0 %v4980
        %5120 = vmatpush1.msra.mxu0 %v4979
        %5121 = vmatprep.subr.mxu0 %v4982
        %5122 = vmatpush1.msra.mxu0 %v4981
        %5123 = vmatprep.subr.mxu0 %v4984
        %5124 = vmatpush1.msra.mxu0 %v4983
        %5125 = vmatprep.subr.mxu0 %v4986
        %5126 = vmatpush1.msra.mxu0 %v4985
        %5127 = vmatprep.subr.mxu0 %v4988
        %5128 = vmatpush1.msra.mxu0 %v4987
        %5129 = vmatprep.subr.mxu0 %v4990
        %5130 = vmatpush1.msra.mxu0 %v4989
        %5131 = vmatprep.subr.mxu0 %v4992
        %5132 = vmatpush1.msra.mxu0 %v4991
        %5133 = vmatprep.subr.mxu0 %v4994
        %5134 = vmatpush1.msra.mxu0 %v4993
        %5135 = vmatprep.subr.mxu0 %v4996
        %5136 = vmatpush1.msra.mxu0 %v4995
        %5137 = vmatprep.subr.mxu0 %v4998
        %5138 = vmatpush1.msra.mxu0 %v4997
        %5139 = vmatprep.subr.mxu0 %v5000
        %5140 = vmatpush1.msra.mxu0 %v4999
        %5141 = vmatprep.subr.mxu0 %v5002
        %5142 = vmatpush1.msra.mxu0 %v5001
        %5143 = vmatprep.subr.mxu0 %v5004
        %5144 = vmatpush1.msra.mxu0 %v5003
        %5145 = vmatprep.mubr.f32.mxu0 %v4934
        %5146 = vmatmul.mubr.f32.gmra.mrb[0].mxu0 %v4933
        %v5147 = vpop.f32.mrb[0].mxu0
        %v5148 = vadd.f32 %v5074, %v5147
        %v5149 = vpop.f32.mrb[0].mxu0
        %v5150 = vadd.f32 %v5078, %v5149
        %5151 = vmatprep.mubr.f32.mxu0 %v4938
        %5152 = vmatmul.mubr.f32.gmra.mrb[0].mxu0 %v4937
        %v5153 = vpop.f32.mrb[0].mxu0
        %v5154 = vadd.f32 %v5074, %v5153
        %v5155 = vpop.f32.mrb[0].mxu0
        %v5156 = vadd.f32 %v5078, %v5155
        %5157 = vdwg.mxu0
        %5158 = vmatprep.subr.mxu0 %v5006
        %5159 = vmatpush1.msra.mxu0 %v5005
        %5160 = vmatprep.subr.mxu0 %v5008
        %5161 = vmatpush1.msra.mxu0 %v5007
        %5162 = vmatprep.subr.mxu0 %v5010
        %5163 = vmatpush1.msra.mxu0 %v5009
        %5164 = vmatprep.subr.mxu0 %v5012
        %5165 = vmatpush1.msra.mxu0 %v5011
        %5166 = vmatprep.subr.mxu0 %v5014
        %5167 = vmatpush1.msra.mxu0 %v5013
        %5168 = vmatprep.subr.mxu0 %v5016
        %5169 = vmatpush1.msra.mxu0 %v5015
        %5170 = vmatprep.subr.mxu0 %v5018
        %5171 = vmatpush1.msra.mxu0 %v5017
        %5172 = vmatprep.subr.mxu0 %v5020
        %5173 = vmatpush1.msra.mxu0 %v5019
        %5174 = vmatprep.subr.mxu0 %v5022
        %5175 = vmatpush1.msra.mxu0 %v5021
        %5176 = vmatprep.subr.mxu0 %v5024
        %5177 = vmatpush1.msra.mxu0 %v5023
        %5178 = vmatprep.subr.mxu0 %v5026
        %5179 = vmatpush1.msra.mxu0 %v5025
        %5180 = vmatprep.subr.mxu0 %v5028
        %5181 = vmatpush1.msra.mxu0 %v5027
        %5182 = vmatprep.subr.mxu0 %v5030
        %5183 = vmatpush1.msra.mxu0 %v5029
        %5184 = vmatprep.subr.mxu0 %v5032
        %5185 = vmatpush1.msra.mxu0 %v5031
        %5186 = vmatprep.subr.mxu0 %v5034
        %5187 = vmatpush1.msra.mxu0 %v5033
        %5188 = vmatprep.subr.mxu0 %v5036
        %5189 = vmatpush1.msra.mxu0 %v5035
        %5190 = vmatprep.subr.mxu0 %v5038
        %5191 = vmatpush1.msra.mxu0 %v5037
        %5192 = vmatprep.subr.mxu0 %v5040
        %5193 = vmatpush1.msra.mxu0 %v5039
        %5194 = vmatprep.subr.mxu0 %v5042
        %5195 = vmatpush1.msra.mxu0 %v5041
        %5196 = vmatprep.subr.mxu0 %v5044
        %5197 = vmatpush1.msra.mxu0 %v5043
        %5198 = vmatprep.subr.mxu0 %v5046
        %5199 = vmatpush1.msra.mxu0 %v5045
        %5200 = vmatprep.subr.mxu0 %v5048
        %5201 = vmatpush1.msra.mxu0 %v5047
        %5202 = vmatprep.subr.mxu0 %v5050
        %5203 = vmatpush1.msra.mxu0 %v5049
        %5204 = vmatprep.subr.mxu0 %v5052
        %5205 = vmatpush1.msra.mxu0 %v5051
        %5206 = vmatprep.subr.mxu0 %v5054
        %5207 = vmatpush1.msra.mxu0 %v5053
        %5208 = vmatprep.subr.mxu0 %v5056
        %5209 = vmatpush1.msra.mxu0 %v5055
        %5210 = vmatprep.subr.mxu0 %v5058
        %5211 = vmatpush1.msra.mxu0 %v5057
        %5212 = vmatprep.subr.mxu0 %v5060
        %5213 = vmatpush1.msra.mxu0 %v5059
        %5214 = vmatprep.subr.mxu0 %v5062
        %5215 = vmatpush1.msra.mxu0 %v5061
        %5216 = vmatprep.subr.mxu0 %v5064
        %5217 = vmatpush1.msra.mxu0 %v5063
        %5218 = vmatprep.subr.mxu0 %v5066
        %5219 = vmatpush1.msra.mxu0 %v5065
        %5220 = vmatprep.subr.mxu0 %v5068
        %5221 = vmatpush1.msra.mxu0 %v5067
        %5222 = vmatprep.mubr.f32.mxu0 %v4936
        %5223 = vmatmul.mubr.f32.gmra.mrb[0].mxu0 %v4935
        %v5224 = vpop.f32.mrb[0].mxu0
        %v5225 = vadd.f32 %v5148, %v5224
        %v5226 = vpop.f32.mrb[0].mxu0
        %v5227 = vadd.f32 %v5150, %v5226
        %5228 = vmatprep.mubr.f32.mxu0 %v4940
        %5229 = vmatmul.mubr.f32.gmra.mrb[0].mxu0 %v4939
        %v5230 = vpop.f32.mrb[0].mxu0
        %v5231 = vadd.f32 %v5154, %v5230
        %v5232 = vpop.f32.mrb[0].mxu0
        %v5233 = vadd.f32 %v5156, %v5232
        %5234 = vdwg.mxu0
        %v5235 = vadd.f32 %v4593, %v5225
        %v5236 = vadd.f32 %v4594, %v5227
        %v5237 = vadd.f32 %v4595, %v5231
        %v5238 = vadd.f32 %v4596, %v5233
        %v5239 = vadd.f32 %v5235, %v5236
        %5240 = vadd.xlane.f32.xlu0 %v5239
        %v5241 = vpop.xlane.xlu0 %5240
        %v5242 = vadd.f32 %v5237, %v5238
        %5243 = vadd.xlane.f32.xlu0 %v5242
        %v5244 = vpop.xlane.xlu0 %5243
        %v5245 = vmul.f32 %v5241, %v4538
        %v5246 = vmul.f32 %v5244, %v4538
        %v5247 = vsub.f32 %v5235, %v5245
        %v5248 = vsub.f32 %v5236, %v5245
        %v5249 = vsub.f32 %v5237, %v5246
        %v5250 = vsub.f32 %v5238, %v5246
        %v5251 = vmul.f32 %v5247, %v5247
        %v5252 = vmul.f32 %v5248, %v5248
        %v5253 = vmul.f32 %v5249, %v5249
        %v5254 = vmul.f32 %v5250, %v5250
        %v5255 = vadd.f32 %v5251, %v5252
        %5256 = vadd.xlane.f32.xlu0 %v5255
        %v5257 = vpop.xlane.xlu0 %5256
        %v5258 = vadd.f32 %v5253, %v5254
        %5259 = vadd.xlane.f32.xlu0 %v5258
        %v5260 = vpop.xlane.xlu0 %5259
        %v5261 = vmul.f32 %v5257, %v4538
        %v5262 = vmul.f32 %v5260, %v4538
        %v5263 = vadd.f32 %v5261, 1e-12
        %v5264 = vadd.f32 %v5262, 1e-12
        %v5265 = vrsqrt.pop %v5263
        %v5266 = vrsqrt.pop %v5264
        %v5267 = vmul.f32 %v5247, %v5265
        %v5268 = vmul.f32 %v5248, %v5265
        %v5269 = vmul.f32 %v5249, %v5266
        %v5270 = vmul.f32 %v5250, %v5266
        %v5271 = vld [vmem:[%s11] sm:$0x3]
        %v5273 = vlaneseq
        %v5274 = vshrl.u32 %v5273, 7
        %v5275 = vsub.s32 0, %v5274
        %v5276 = vrot.slane %v5271, %v5275
        %v5277 = vlaneseq
        %v5278 = vshrl.u32 %v5277, 7
        %v5279 = vsub.s32 1, %v5278
        %v5280 = vrot.slane %v5271, %v5279
        %v5283 = vmul.f32 %v5267, %v5276
        %v5284 = vmul.f32 %v5268, %v5280
        %v5285 = vmul.f32 %v5269, %v5276
        %v5286 = vmul.f32 %v5270, %v5280
        %v5287 = vld [vmem:[%s12] sm:$0x3]
        %v5289 = vlaneseq
        %v5290 = vshrl.u32 %v5289, 7
        %v5291 = vsub.s32 0, %v5290
        %v5292 = vrot.slane %v5287, %v5291
        %v5293 = vlaneseq
        %v5294 = vshrl.u32 %v5293, 7
        %v5295 = vsub.s32 1, %v5294
        %v5296 = vrot.slane %v5287, %v5295
        %v5299 = vadd.f32 %v5283, %v5292
        %v5300 = vadd.f32 %v5284, %v5296
        %v5301 = vadd.f32 %v5285, %v5292
        %v5302 = vadd.f32 %v5286, %v5296
        %5303 = vst [vmem:[%s517] sm:$0xff] %v5299
        %5304 = vst [vmem:[%s517 + $0x8] sm:$0xff] %v5300
        %5305 = vst [vmem:[%s517 + $0x10] sm:$0xff] %v5301
        %5306 = vst [vmem:[%s517 + $0x18] sm:$0xff] %v5302
        %s5307 = sand.u32 %s318, 1
        %s5308 = scalar_lea.sflag [#allocation6], %s5307
        %s5309 = sand.u32 %s318, 1
        %s5310 = smul.addr %s5309, 32
        %s5311 = scalar_lea.vmem [#allocation13], %s5310
        // Predicated region
        $region93: #{tpu_custom_call.1} parent=71 // pred_check
          %p5312 = pneg %p328
        $region94: #{tpu_custom_call.1} parent=71 // pred_check_branch
          %5314 = sbr.rel (%p5312) target = $region96
        $region95: #{tpu_custom_call.1} parent=71 // pred_region
          %s5315 = smul.u32 2, %s32
          %s5317 = ssub.s32 512, 512
          %5318 = vsyncadd %s5308, %s5317
          %s5319 = smul.addr %s5315, 2
          %s5320 = smul.addr %s5319, 128
          %s5321 = scalar_lea.hbm %s13, %s5320
          %s5322 = sshll.u32 %s5311, 4
          %s5323 = int_to_ptr.vmem [resolvable:$true] %s5322
          %5328 = dma.vmem_to_hbm [thread:$0]  %s5323, 512, %s5321, %s5308, 256, 256, 16
        $region96: #{tpu_custom_call.1} parent=71 // pred_fallthru
          _
      $region72: #{tpu_custom_call.1} parent=5 // pred_fallthru
        _
      %p5329 = scmp.le.s32.totalorder 2, %s27
      // Predicated region
      $region97: #{tpu_custom_call.1} parent=5 // pred_check
        %p5330 = pneg %p5329
      $region98: #{tpu_custom_call.1} parent=5 // pred_check_branch
        %5332 = sbr.rel (%p5330) target = $region100
      $region99: #{tpu_custom_call.1} parent=5 // pred_region
        %s5333 = ssub.s32 %s27, 2
        // Predicated region
        $region101: #{tpu_custom_call.1} parent=99 // pred_check
          %p5334 = pneg %p334
        $region102: #{tpu_custom_call.1} parent=99 // pred_check_branch
          %5336 = sbr.rel (%p5334) target = $region104
        $region103: #{tpu_custom_call.1} parent=99 // pred_region
          %s5337 = sand.u32 %s319, 1
          %s5338 = scalar_lea.sflag [#allocation6], %s5337
          %s5339 = sand.u32 %s319, 1
          %s5340 = smul.addr %s5339, 32
          %s5341 = scalar_lea.vmem [#allocation13], %s5340
          %5342 = dma.done %s5338, 512
        $region104: #{tpu_custom_call.1} parent=99 // pred_fallthru
          _
      $region100: #{tpu_custom_call.1} parent=5 // pred_fallthru
        _
    $region6: #{tpu_custom_call.1} parent=1 // loop_footer
      %s31 = sadd.s32 1, %s27
    $region7: #{tpu_custom_call.1} parent=1 // loop_footer_branch
      %26 = sbr.rel target = $region3
    $region8: #{tpu_custom_call.1} parent=1 // loop_exit
      _
    %5343 = vsyncpa [#allocation5], 1
    %s5344 = scalar_lea.sflag [#allocation5], 1
    %5345 = vsyncpa %s5344, 1
    %5346 = vsyncpa [#allocation8], 1
    %5347 = vsyncpa [#allocation11], 1
    %5348 = vsyncpa [#allocation6], 1
    %s5349 = scalar_lea.sflag [#allocation6], 1
    %5350 = vsyncpa %s5349, 1

</llo_original>
